<compile_context>
chip_gen: v5e
topology: v5e:2x2
jax: 0.10.0
libtpu: 0.0.40
codegen_flags: <defaults>
</compile_context>

<pallas_src>
import functools

import jax
import jax.numpy as jnp
from jax.experimental import pallas as pl
from jax.experimental.pallas import tpu as pltpu


# ----------------------------- Pallas kernels ------------------------------ #
def _matmul_bias_relu_kernel(x_ref, w_ref, b_ref, o_ref):
    # conv1 (+folded BN) + ReLU as one MXU GEMM: bf16 in, f32 accumulate.
    y = jnp.dot(x_ref[...], w_ref[...], preferred_element_type=jnp.float32)
    o_ref[...] = jnp.maximum(y + b_ref[...], 0.0).astype(o_ref.dtype)


def conv1_matmul_relu(patches, w, b):
    """patches: (M, 64) bf16, w: (64, 32) bf16, b: (1, 32) f32 -> (M, 32) bf16."""
    M, K = patches.shape
    OC = w.shape[1]
    out_shape = jax.ShapeDtypeStruct((M, OC), jnp.bfloat16)
    # M-grid (parallel) when M splits into sublane-aligned blocks: lets v7x use
    # both TensorCores and restores double-buffered DMA/compute overlap.
    n_blocks = next((g for g in (4, 3, 2) if M % (g * 8) == 0), 1)
    if n_blocks == 1:
        vmem = pl.BlockSpec(memory_space=pltpu.MemorySpace.VMEM)
        return pl.pallas_call(
            _matmul_bias_relu_kernel, out_shape=out_shape,
            in_specs=[vmem, vmem, vmem], out_specs=vmem,
        )(patches, w, b)
    bm = M // n_blocks
    return pl.pallas_call(
        _matmul_bias_relu_kernel,
        out_shape=out_shape,
        grid=(n_blocks,),
        in_specs=[pl.BlockSpec((bm, K), lambda i: (i, 0)),
                  pl.BlockSpec((K, OC), lambda i: (0, 0)),
                  pl.BlockSpec((1, OC), lambda i: (0, 0))],
        out_specs=pl.BlockSpec((bm, OC), lambda i: (i, 0)),
        compiler_params=pltpu.CompilerParams(dimension_semantics=("parallel",)),
    )(patches, w, b)


def _fused_conv23_kernel(pat_ref, w2_ref, b2_ref, w3_ref, b3_ref, o_ref, a2_ref,
                         *, n_pos, rows):
    # conv2 (+folded BN) + ReLU: one (n_pos*rows, K2) @ (K2, 64) MXU GEMM.
    y2 = jnp.dot(pat_ref[...], w2_ref[...], preferred_element_type=jnp.float32)
    a2_ref[...] = jnp.maximum(y2 + b2_ref[...], 0.0).astype(a2_ref.dtype)
    # conv3: its 5x5 kernel covers the whole 5x5 conv2 output, so accumulate
    # 25 per-position (rows,64)@(64,128) matmuls.  The stage-2 activation
    # never leaves VMEM (position-major rows => static 8-aligned slices).
    acc = jnp.zeros(o_ref.shape, jnp.float32)
    for pos in range(n_pos):
        blk = a2_ref[pl.ds(pos * rows, rows), :]
        acc = acc + jnp.dot(blk, w3_ref[pos], preferred_element_type=jnp.float32)
    o_ref[...] = acc + b3_ref[...]


def fused_conv23(patches, w2, b2, w3, b3, *, rows):
    """patches: (25*rows, K2) bf16 position-major; w3: (25, 64, 128) bf16."""
    n_pos, _, oc3 = w3.shape
    vmem = pl.BlockSpec(memory_space=pltpu.MemorySpace.VMEM)
    return pl.pallas_call(
        functools.partial(_fused_conv23_kernel, n_pos=n_pos, rows=rows),
        out_shape=jax.ShapeDtypeStruct((rows, oc3), jnp.float32),
        in_specs=[vmem] * 5,
        out_specs=vmem,
        scratch_shapes=[pltpu.VMEM((n_pos * rows, w2.shape[1]), jnp.bfloat16)],
    )(patches, w2, b2, w3, b3)


# ------------------------------- JAX glue ---------------------------------- #
def forward_batched(x_nchw, params):
    """x_nchw: (B, 1, 41, 41) f32, triplet-concatenated batch -> (B, 128) f32."""
    p1, p2, p3 = params
    B, _, H, W = x_nchw.shape
    # C == 1: NCHW -> NHW is a pure reshape; cast to bf16 before any movement.
    x = x_nchw.astype(jnp.bfloat16).reshape(B, H, W)

    # ---- stage 1 im2col: two constant gathers (k=7, s=2) instead of 49 slices.
    K1, S1 = 7, 2
    oh1 = (H - K1) // S1 + 1                                         # 18
    idx = (S1 * jnp.arange(oh1)[:, None] + jnp.arange(K1)[None, :]).reshape(-1)
    xg = jnp.take(jnp.take(x, idx, axis=1), idx, axis=2)             # (B, 126, 126)
    pat1 = (xg.reshape(B, oh1, K1, oh1, K1).transpose(0, 1, 3, 2, 4)
              .reshape(B * oh1 * oh1, K1 * K1))
    pat1 = jnp.pad(pat1, ((0, 0), (0, p1["w"].shape[0] - K1 * K1)))  # K 49 -> 64
    a1 = conv1_matmul_relu(pat1, p1["w"], p1["b"])                   # (B*324, 32) bf16
    a1 = a1.reshape(B, oh1, oh1, 32)

    # ---- stage 2 im2col: space-to-depth over the stride-3 phases + 2x2 taps.
    K2, S2, C1 = 6, 3, 32
    oh2 = (oh1 - K2) // S2 + 1                                       # 5
    Hs = oh1 // S2                                                   # 6
    s2d = (a1.reshape(B, Hs, S2, Hs, S2, C1).transpose(0, 1, 3, 2, 4, 5)
             .reshape(B, Hs, Hs, S2 * S2 * C1))                      # (B,6,6,288)
    taps = [s2d[:, r:r + oh2, s:s + oh2, :] for r in (0, 1) for s in (0, 1)]
    pat2 = jnp.stack(taps, axis=3).reshape(B, oh2 * oh2, 4 * S2 * S2 * C1)
    pat2 = jnp.transpose(pat2, (1, 0, 2))                            # (25, B, 1152)
    b_pad = ((B + 7) // 8) * 8                                       # 8-aligned rows
    pat2 = jnp.pad(pat2, ((0, 0), (0, b_pad - B), (0, 0)))
    pat2 = pat2.reshape(oh2 * oh2 * b_pad, 4 * S2 * S2 * C1)         # (200, 1152)

    # ---- stages 2+3 fused in one Pallas call; OH=OW=1 so flatten is a no-op.
    out = fused_conv23(pat2, p2["w"], p2["b"], p3["w"], p3["b"], rows=b_pad)
    return out[:B]                                                   # (B, 128) f32


def triplet_forward(x1, x2, x3, params):
    # Shared weights -> batch the triplet into one pass (N -> 3N).
    x = jnp.concatenate([x1, x2, x3], axis=0)
    out = forward_batched(x, params)
    n = x1.shape[0]
    return out[:n], out[n:2 * n], out[2 * n:]


# ------------------------------ parameters --------------------------------- #
def _folded_conv_params(key, ic, oc, k, with_bn):
    """Deterministic synthetic weights in PyTorch layout (OC, IC, KH, KW) with
    eval-mode BatchNorm folded in.  Returns ((KH, KW, IC, OC) weight, bias)."""
    kw_key, b_key, g_key, bt_key = jax.random.split(key, 4)
    w_oihw = jax.random.normal(kw_key, (oc, ic, k, k), jnp.float32) * 0.05
    conv_b = jax.random.normal(b_key, (oc,), jnp.float32) * 0.05
    if with_bn:
        gamma = 1.0 + 0.1 * jax.random.normal(g_key, (oc,), jnp.float32)
        beta = 0.1 * jax.random.normal(bt_key, (oc,), jnp.float32)
        running_mean = jnp.zeros((oc,), jnp.float32)
        running_var = jnp.ones((oc,), jnp.float32)
        scale = gamma / jnp.sqrt(running_var + 1e-5)
        bias = scale * (conv_b - running_mean) + beta
    else:
        scale = jnp.ones((oc,), jnp.float32)
        bias = conv_b
    w_khwc = jnp.transpose(w_oihw, (2, 3, 1, 0)) * scale[None, None, None, :]
    return w_khwc, bias


def make_params(key):
    k1, k2, k3 = jax.random.split(key, 3)
    # Conv2d(1->32, k7, s2) + BN + ReLU; K padded 49 -> 64 for alignment.
    w1, b1 = _folded_conv_params(k1, 1, 32, 7, True)
    w1 = jnp.pad(w1.reshape(49, 32), ((0, 15), (0, 0))).astype(jnp.bfloat16)
    # Conv2d(32->64, k6, s3) + BN + ReLU; rows ordered (R, S, hh, ww, c) to
    # match the space-to-depth im2col (kh = 3R+hh, kw = 3S+ww).
    w2, b2 = _folded_conv_params(k2, 32, 64, 6, True)
    w2 = (w2.reshape(2, 3, 2, 3, 32, 64).transpose(0, 2, 1, 3, 4, 5)
            .reshape(36 * 32, 64).astype(jnp.bfloat16))
    # Conv2d(64->128, k5, s4), no BN/ReLU; per-position (64,128) matrices.
    w3, b3 = _folded_conv_params(k3, 64, 128, 5, False)
    w3 = w3.reshape(25, 64, 128).astype(jnp.bfloat16)
    return (
        dict(w=w1, b=b1.reshape(1, 32)),
        dict(w=w2, b=b2.reshape(1, 64)),
        dict(w=w3, b=b3.reshape(1, 128)),
    )


# --------------------------------- main ------------------------------------ #
if __name__ == "__main__":
    key = jax.random.PRNGKey(0)
    k_in1, k_in2, k_in3, k_params = jax.random.split(key, 4)

    # Smallest spatial size that survives all three convs:
    # 41 --conv(7,s2)--> 18 --conv(6,s3)--> 5 --conv(5,s4)--> 1  => 128 features
    N, C, H, W = 2, 1, 41, 41
    x1 = jax.random.normal(k_in1, (N, C, H, W), jnp.float32)
    x2 = jax.random.normal(k_in2, (N, C, H, W), jnp.float32)
    x3 = jax.random.normal(k_in3, (N, C, H, W), jnp.float32)

    params = make_params(k_params)

    fwd = jax.jit(triplet_forward)
    out1, out2, out3 = fwd(x1, x2, x3, params)
    jax.block_until_ready((out1, out2, out3))

    assert out1.shape == (N, 128) and out2.shape == (N, 128) and out3.shape == (N, 128)
    assert out1.dtype == jnp.float32
    print("KERNEL_OK")
</pallas_src>

<mosaic_0001>
module attributes {stable_mosaic.version = 11 : i64} {
  func.func @_matmul_bias_relu_kernel(%arg0: i32, %arg1: memref<648x64xbf16, #tpu.memory_space<vmem>>, %arg2: memref<64x32xbf16, #tpu.memory_space<vmem>>, %arg3: memref<1x32xf32, #tpu.memory_space<vmem>>, %arg4: memref<648x32xbf16, #tpu.memory_space<vmem>>) attributes {dimension_semantics = [#tpu.dimension_semantics<parallel>], iteration_bounds = array<i64: 3>, scalar_prefetch = 0 : i64, scratch_operands = 0 : i64, tpu.core_type = #tpu.core_type<tc>, window_params = [{transform_indices = @transform_0, window_bounds = array<i64: 648, 64>}, {pipeline_mode = #tpu.pipeline_mode<synchronous>, transform_indices = @transform_1, window_bounds = array<i64: 64, 32>}, {pipeline_mode = #tpu.pipeline_mode<synchronous>, transform_indices = @transform_2, window_bounds = array<i64: 1, 32>}, {transform_indices = @transform_3, window_bounds = array<i64: 648, 32>}]} {
    %c0 = arith.constant 0 : index
    %c0_0 = arith.constant 0 : index
    %0 = vector.load %arg1[%c0, %c0_0] : memref<648x64xbf16, #tpu.memory_space<vmem>>, vector<648x64xbf16>
    %c0_1 = arith.constant 0 : index
    %c0_2 = arith.constant 0 : index
    %1 = vector.load %arg2[%c0_1, %c0_2] : memref<64x32xbf16, #tpu.memory_space<vmem>>, vector<64x32xbf16>
    %cst = arith.constant dense<0.000000e+00> : vector<648x32xf32>
    %2 = tpu.matmul %0, %1, %cst {dimension_numbers = #tpu.dot_dimension_numbers<[1], [0], [0], [1], [0, 0, 1, 1], [], []>} : vector<648x64xbf16>, vector<64x32xbf16>, vector<648x32xf32> -> vector<648x32xf32>
    %c0_3 = arith.constant 0 : index
    %c0_4 = arith.constant 0 : index
    %3 = vector.load %arg3[%c0_3, %c0_4] : memref<1x32xf32, #tpu.memory_space<vmem>>, vector<1x32xf32>
    %4 = vector.broadcast %3 : vector<1x32xf32> to vector<648x32xf32>
    %5 = arith.addf %2, %4 : vector<648x32xf32>
    %cst_5 = arith.constant 0.000000e+00 : f32
    %6 = vector.broadcast %cst_5 : f32 to vector<648x32xf32>
    %7 = arith.maximumf %5, %6 : vector<648x32xf32>
    %8 = arith.truncf %7 : vector<648x32xf32> to vector<648x32xbf16>
    %c0_6 = arith.constant 0 : index
    %c0_7 = arith.constant 0 : index
    %9 = vector.load %arg4[%c0_6, %c0_7] : memref<648x32xbf16, #tpu.memory_space<vmem>>, vector<648x32xbf16>
    tpu.vector_store %arg4[%c0_6, %c0_7], %8 {strides = array<i32>} : memref<648x32xbf16, #tpu.memory_space<vmem>>, vector<648x32xbf16>,
    return
  }
  func.func @transform_0(%arg0: i32) -> (i32, i32) {
    %c0_i32 = arith.constant 0 : i32
    %c0_i32_0 = arith.constant 0 : i32
    return %arg0, %c0_i32 : i32, i32
  }
  func.func @transform_1(%arg0: i32) -> (i32, i32) {
    %c0_i32 = arith.constant 0 : i32
    %c0_i32_0 = arith.constant 0 : i32
    %c0_i32_1 = arith.constant 0 : i32
    return %c0_i32, %c0_i32_0 : i32, i32
  }
  func.func @transform_2(%arg0: i32) -> (i32, i32) {
    %c0_i32 = arith.constant 0 : i32
    %c0_i32_0 = arith.constant 0 : i32
    %c0_i32_1 = arith.constant 0 : i32
    return %c0_i32, %c0_i32_0 : i32, i32
  }
  func.func @transform_3(%arg0: i32) -> (i32, i32) {
    %c0_i32 = arith.constant 0 : i32
    %c0_i32_0 = arith.constant 0 : i32
    return %arg0, %c0_i32 : i32, i32
  }
}

module attributes {stable_mosaic.version = 11 : i64} {
  func.func @_fused_conv23_kernel(%arg0: memref<200x1152xbf16, #tpu.memory_space<vmem>>, %arg1: memref<1152x64xbf16, #tpu.memory_space<vmem>>, %arg2: memref<1x64xf32, #tpu.memory_space<vmem>>, %arg3: memref<25x64x128xbf16, #tpu.memory_space<vmem>>, %arg4: memref<1x128xf32, #tpu.memory_space<vmem>>, %arg5: memref<8x128xf32, #tpu.memory_space<vmem>>, %arg6: memref<200x64xbf16, #tpu.memory_space<vmem>>) attributes {dimension_semantics = [], scalar_prefetch = 0 : i64, scratch_operands = 1 : i64, tpu.core_type = #tpu.core_type<tc>} {
    %c0 = arith.constant 0 : index
    %c0_0 = arith.constant 0 : index
    %0 = vector.load %arg0[%c0, %c0_0] : memref<200x1152xbf16, #tpu.memory_space<vmem>>, vector<200x1152xbf16>
    %c0_1 = arith.constant 0 : index
    %c0_2 = arith.constant 0 : index
    %1 = vector.load %arg1[%c0_1, %c0_2] : memref<1152x64xbf16, #tpu.memory_space<vmem>>, vector<1152x64xbf16>
    %cst = arith.constant dense<0.000000e+00> : vector<200x64xf32>
    %2 = tpu.matmul %0, %1, %cst {dimension_numbers = #tpu.dot_dimension_numbers<[1], [0], [0], [1], [0, 0, 1, 1], [], []>} : vector<200x1152xbf16>, vector<1152x64xbf16>, vector<200x64xf32> -> vector<200x64xf32>
    %c0_3 = arith.constant 0 : index
    %c0_4 = arith.constant 0 : index
    %3 = vector.load %arg2[%c0_3, %c0_4] : memref<1x64xf32, #tpu.memory_space<vmem>>, vector<1x64xf32>
    %4 = vector.broadcast %3 : vector<1x64xf32> to vector<200x64xf32>
    %5 = arith.addf %2, %4 : vector<200x64xf32>
    %cst_5 = arith.constant 0.000000e+00 : f32
    %6 = vector.broadcast %cst_5 : f32 to vector<200x64xf32>
    %7 = arith.maximumf %5, %6 : vector<200x64xf32>
    %8 = arith.truncf %7 : vector<200x64xf32> to vector<200x64xbf16>
    %c0_6 = arith.constant 0 : index
    %c0_7 = arith.constant 0 : index
    %9 = vector.load %arg6[%c0_6, %c0_7] : memref<200x64xbf16, #tpu.memory_space<vmem>>, vector<200x64xbf16>
    tpu.vector_store %arg6[%c0_6, %c0_7], %8 {strides = array<i32>} : memref<200x64xbf16, #tpu.memory_space<vmem>>, vector<200x64xbf16>,
    %cst_8 = arith.constant 0.000000e+00 : f32
    %10 = vector.broadcast %cst_8 : f32 to vector<8x128xf32>
    %c0_9 = arith.constant 0 : index
    %c0_10 = arith.constant 0 : index
    %11 = vector.load %arg6[%c0_9, %c0_10] : memref<200x64xbf16, #tpu.memory_space<vmem>>, vector<8x64xbf16>
    %c0_11 = arith.constant 0 : index
    %c0_12 = arith.constant 0 : index
    %c0_13 = arith.constant 0 : index
    %12 = vector.load %arg3[%c0_11, %c0_12, %c0_13] : memref<25x64x128xbf16, #tpu.memory_space<vmem>>, vector<1x64x128xbf16>
    %13 = vector.shape_cast %12 : vector<1x64x128xbf16> to vector<64x128xbf16>
    %cst_14 = arith.constant dense<0.000000e+00> : vector<8x128xf32>
    %14 = tpu.matmul %11, %13, %cst_14 {dimension_numbers = #tpu.dot_dimension_numbers<[1], [0], [0], [1], [0, 0, 1, 1], [], []>} : vector<8x64xbf16>, vector<64x128xbf16>, vector<8x128xf32> -> vector<8x128xf32>
    %15 = arith.addf %10, %14 : vector<8x128xf32>
    %c8 = arith.constant 8 : index
    %c0_15 = arith.constant 0 : index
    %16 = vector.load %arg6[%c8, %c0_15] : memref<200x64xbf16, #tpu.memory_space<vmem>>, vector<8x64xbf16>
    %c1 = arith.constant 1 : index
    %c0_16 = arith.constant 0 : index
    %c0_17 = arith.constant 0 : index
    %17 = vector.load %arg3[%c1, %c0_16, %c0_17] : memref<25x64x128xbf16, #tpu.memory_space<vmem>>, vector<1x64x128xbf16>
    %18 = vector.shape_cast %17 : vector<1x64x128xbf16> to vector<64x128xbf16>
    %cst_18 = arith.constant dense<0.000000e+00> : vector<8x128xf32>
    %19 = tpu.matmul %16, %18, %cst_18 {dimension_numbers = #tpu.dot_dimension_numbers<[1], [0], [0], [1], [0, 0, 1, 1], [], []>} : vector<8x64xbf16>, vector<64x128xbf16>, vector<8x128xf32> -> vector<8x128xf32>
    %20 = arith.addf %15, %19 : vector<8x128xf32>
    %c16 = arith.constant 16 : index
    %c0_19 = arith.constant 0 : index
    %21 = vector.load %arg6[%c16, %c0_19] : memref<200x64xbf16, #tpu.memory_space<vmem>>, vector<8x64xbf16>
    %c2 = arith.constant 2 : index
    %c0_20 = arith.constant 0 : index
    %c0_21 = arith.constant 0 : index
    %22 = vector.load %arg3[%c2, %c0_20, %c0_21] : memref<25x64x128xbf16, #tpu.memory_space<vmem>>, vector<1x64x128xbf16>
    %23 = vector.shape_cast %22 : vector<1x64x128xbf16> to vector<64x128xbf16>
    %cst_22 = arith.constant dense<0.000000e+00> : vector<8x128xf32>
    %24 = tpu.matmul %21, %23, %cst_22 {dimension_numbers = #tpu.dot_dimension_numbers<[1], [0], [0], [1], [0, 0, 1, 1], [], []>} : vector<8x64xbf16>, vector<64x128xbf16>, vector<8x128xf32> -> vector<8x128xf32>
    %25 = arith.addf %20, %24 : vector<8x128xf32>
    %c24 = arith.constant 24 : index
    %c0_23 = arith.constant 0 : index
    %26 = vector.load %arg6[%c24, %c0_23] : memref<200x64xbf16, #tpu.memory_space<vmem>>, vector<8x64xbf16>
    %c3 = arith.constant 3 : index
    %c0_24 = arith.constant 0 : index
    %c0_25 = arith.constant 0 : index
    %27 = vector.load %arg3[%c3, %c0_24, %c0_25] : memref<25x64x128xbf16, #tpu.memory_space<vmem>>, vector<1x64x128xbf16>
    %28 = vector.shape_cast %27 : vector<1x64x128xbf16> to vector<64x128xbf16>
    %cst_26 = arith.constant dense<0.000000e+00> : vector<8x128xf32>
    %29 = tpu.matmul %26, %28, %cst_26 {dimension_numbers = #tpu.dot_dimension_numbers<[1], [0], [0], [1], [0, 0, 1, 1], [], []>} : vector<8x64xbf16>, vector<64x128xbf16>, vector<8x128xf32> -> vector<8x128xf32>
    %30 = arith.addf %25, %29 : vector<8x128xf32>
    %c32 = arith.constant 32 : index
    %c0_27 = arith.constant 0 : index
    %31 = vector.load %arg6[%c32, %c0_27] : memref<200x64xbf16, #tpu.memory_space<vmem>>, vector<8x64xbf16>
    %c4 = arith.constant 4 : index
    %c0_28 = arith.constant 0 : index
    %c0_29 = arith.constant 0 : index
    %32 = vector.load %arg3[%c4, %c0_28, %c0_29] : memref<25x64x128xbf16, #tpu.memory_space<vmem>>, vector<1x64x128xbf16>
    %33 = vector.shape_cast %32 : vector<1x64x128xbf16> to vector<64x128xbf16>
    %cst_30 = arith.constant dense<0.000000e+00> : vector<8x128xf32>
    %34 = tpu.matmul %31, %33, %cst_30 {dimension_numbers = #tpu.dot_dimension_numbers<[1], [0], [0], [1], [0, 0, 1, 1], [], []>} : vector<8x64xbf16>, vector<64x128xbf16>, vector<8x128xf32> -> vector<8x128xf32>
    %35 = arith.addf %30, %34 : vector<8x128xf32>
    %c40 = arith.constant 40 : index
    %c0_31 = arith.constant 0 : index
    %36 = vector.load %arg6[%c40, %c0_31] : memref<200x64xbf16, #tpu.memory_space<vmem>>, vector<8x64xbf16>
    %c5 = arith.constant 5 : index
    %c0_32 = arith.constant 0 : index
    %c0_33 = arith.constant 0 : index
    %37 = vector.load %arg3[%c5, %c0_32, %c0_33] : memref<25x64x128xbf16, #tpu.memory_space<vmem>>, vector<1x64x128xbf16>
    %38 = vector.shape_cast %37 : vector<1x64x128xbf16> to vector<64x128xbf16>
    %cst_34 = arith.constant dense<0.000000e+00> : vector<8x128xf32>
    %39 = tpu.matmul %36, %38, %cst_34 {dimension_numbers = #tpu.dot_dimension_numbers<[1], [0], [0], [1], [0, 0, 1, 1], [], []>} : vector<8x64xbf16>, vector<64x128xbf16>, vector<8x128xf32> -> vector<8x128xf32>
    %40 = arith.addf %35, %39 : vector<8x128xf32>
    %c48 = arith.constant 48 : index
    %c0_35 = arith.constant 0 : index
    %41 = vector.load %arg6[%c48, %c0_35] : memref<200x64xbf16, #tpu.memory_space<vmem>>, vector<8x64xbf16>
    %c6 = arith.constant 6 : index
    %c0_36 = arith.constant 0 : index
    %c0_37 = arith.constant 0 : index
    %42 = vector.load %arg3[%c6, %c0_36, %c0_37] : memref<25x64x128xbf16, #tpu.memory_space<vmem>>, vector<1x64x128xbf16>
    %43 = vector.shape_cast %42 : vector<1x64x128xbf16> to vector<64x128xbf16>
    %cst_38 = arith.constant dense<0.000000e+00> : vector<8x128xf32>
    %44 = tpu.matmul %41, %43, %cst_38 {dimension_numbers = #tpu.dot_dimension_numbers<[1], [0], [0], [1], [0, 0, 1, 1], [], []>} : vector<8x64xbf16>, vector<64x128xbf16>, vector<8x128xf32> -> vector<8x128xf32>
    %45 = arith.addf %40, %44 : vector<8x128xf32>
    %c56 = arith.constant 56 : index
    %c0_39 = arith.constant 0 : index
    %46 = vector.load %arg6[%c56, %c0_39] : memref<200x64xbf16, #tpu.memory_space<vmem>>, vector<8x64xbf16>
    %c7 = arith.constant 7 : index
    %c0_40 = arith.constant 0 : index
    %c0_41 = arith.constant 0 : index
    %47 = vector.load %arg3[%c7, %c0_40, %c0_41] : memref<25x64x128xbf16, #tpu.memory_space<vmem>>, vector<1x64x128xbf16>
    %48 = vector.shape_cast %47 : vector<1x64x128xbf16> to vector<64x128xbf16>
    %cst_42 = arith.constant dense<0.000000e+00> : vector<8x128xf32>
    %49 = tpu.matmul %46, %48, %cst_42 {dimension_numbers = #tpu.dot_dimension_numbers<[1], [0], [0], [1], [0, 0, 1, 1], [], []>} : vector<8x64xbf16>, vector<64x128xbf16>, vector<8x128xf32> -> vector<8x128xf32>
    %50 = arith.addf %45, %49 : vector<8x128xf32>
    %c64 = arith.constant 64 : index
    %c0_43 = arith.constant 0 : index
    %51 = vector.load %arg6[%c64, %c0_43] : memref<200x64xbf16, #tpu.memory_space<vmem>>, vector<8x64xbf16>
    %c8_44 = arith.constant 8 : index
    %c0_45 = arith.constant 0 : index
    %c0_46 = arith.constant 0 : index
    %52 = vector.load %arg3[%c8_44, %c0_45, %c0_46] : memref<25x64x128xbf16, #tpu.memory_space<vmem>>, vector<1x64x128xbf16>
    %53 = vector.shape_cast %52 : vector<1x64x128xbf16> to vector<64x128xbf16>
    %cst_47 = arith.constant dense<0.000000e+00> : vector<8x128xf32>
    %54 = tpu.matmul %51, %53, %cst_47 {dimension_numbers = #tpu.dot_dimension_numbers<[1], [0], [0], [1], [0, 0, 1, 1], [], []>} : vector<8x64xbf16>, vector<64x128xbf16>, vector<8x128xf32> -> vector<8x128xf32>
    %55 = arith.addf %50, %54 : vector<8x128xf32>
    %c72 = arith.constant 72 : index
    %c0_48 = arith.constant 0 : index
    %56 = vector.load %arg6[%c72, %c0_48] : memref<200x64xbf16, #tpu.memory_space<vmem>>, vector<8x64xbf16>
    %c9 = arith.constant 9 : index
    %c0_49 = arith.constant 0 : index
    %c0_50 = arith.constant 0 : index
    %57 = vector.load %arg3[%c9, %c0_49, %c0_50] : memref<25x64x128xbf16, #tpu.memory_space<vmem>>, vector<1x64x128xbf16>
    %58 = vector.shape_cast %57 : vector<1x64x128xbf16> to vector<64x128xbf16>
    %cst_51 = arith.constant dense<0.000000e+00> : vector<8x128xf32>
    %59 = tpu.matmul %56, %58, %cst_51 {dimension_numbers = #tpu.dot_dimension_numbers<[1], [0], [0], [1], [0, 0, 1, 1], [], []>} : vector<8x64xbf16>, vector<64x128xbf16>, vector<8x128xf32> -> vector<8x128xf32>
    %60 = arith.addf %55, %59 : vector<8x128xf32>
    %c80 = arith.constant 80 : index
    %c0_52 = arith.constant 0 : index
    %61 = vector.load %arg6[%c80, %c0_52] : memref<200x64xbf16, #tpu.memory_space<vmem>>, vector<8x64xbf16>
    %c10 = arith.constant 10 : index
    %c0_53 = arith.constant 0 : index
    %c0_54 = arith.constant 0 : index
    %62 = vector.load %arg3[%c10, %c0_53, %c0_54] : memref<25x64x128xbf16, #tpu.memory_space<vmem>>, vector<1x64x128xbf16>
    %63 = vector.shape_cast %62 : vector<1x64x128xbf16> to vector<64x128xbf16>
    %cst_55 = arith.constant dense<0.000000e+00> : vector<8x128xf32>
    %64 = tpu.matmul %61, %63, %cst_55 {dimension_numbers = #tpu.dot_dimension_numbers<[1], [0], [0], [1], [0, 0, 1, 1], [], []>} : vector<8x64xbf16>, vector<64x128xbf16>, vector<8x128xf32> -> vector<8x128xf32>
    %65 = arith.addf %60, %64 : vector<8x128xf32>
    %c88 = arith.constant 88 : index
    %c0_56 = arith.constant 0 : index
    %66 = vector.load %arg6[%c88, %c0_56] : memref<200x64xbf16, #tpu.memory_space<vmem>>, vector<8x64xbf16>
    %c11 = arith.constant 11 : index
    %c0_57 = arith.constant 0 : index
    %c0_58 = arith.constant 0 : index
    %67 = vector.load %arg3[%c11, %c0_57, %c0_58] : memref<25x64x128xbf16, #tpu.memory_space<vmem>>, vector<1x64x128xbf16>
    %68 = vector.shape_cast %67 : vector<1x64x128xbf16> to vector<64x128xbf16>
    %cst_59 = arith.constant dense<0.000000e+00> : vector<8x128xf32>
    %69 = tpu.matmul %66, %68, %cst_59 {dimension_numbers = #tpu.dot_dimension_numbers<[1], [0], [0], [1], [0, 0, 1, 1], [], []>} : vector<8x64xbf16>, vector<64x128xbf16>, vector<8x128xf32> -> vector<8x128xf32>
    %70 = arith.addf %65, %69 : vector<8x128xf32>
    %c96 = arith.constant 96 : index
    %c0_60 = arith.constant 0 : index
    %71 = vector.load %arg6[%c96, %c0_60] : memref<200x64xbf16, #tpu.memory_space<vmem>>, vector<8x64xbf16>
    %c12 = arith.constant 12 : index
    %c0_61 = arith.constant 0 : index
    %c0_62 = arith.constant 0 : index
    %72 = vector.load %arg3[%c12, %c0_61, %c0_62] : memref<25x64x128xbf16, #tpu.memory_space<vmem>>, vector<1x64x128xbf16>
    %73 = vector.shape_cast %72 : vector<1x64x128xbf16> to vector<64x128xbf16>
    %cst_63 = arith.constant dense<0.000000e+00> : vector<8x128xf32>
    %74 = tpu.matmul %71, %73, %cst_63 {dimension_numbers = #tpu.dot_dimension_numbers<[1], [0], [0], [1], [0, 0, 1, 1], [], []>} : vector<8x64xbf16>, vector<64x128xbf16>, vector<8x128xf32> -> vector<8x128xf32>
    %75 = arith.addf %70, %74 : vector<8x128xf32>
    %c104 = arith.constant 104 : index
    %c0_64 = arith.constant 0 : index
    %76 = vector.load %arg6[%c104, %c0_64] : memref<200x64xbf16, #tpu.memory_space<vmem>>, vector<8x64xbf16>
    %c13 = arith.constant 13 : index
    %c0_65 = arith.constant 0 : index
    %c0_66 = arith.constant 0 : index
    %77 = vector.load %arg3[%c13, %c0_65, %c0_66] : memref<25x64x128xbf16, #tpu.memory_space<vmem>>, vector<1x64x128xbf16>
    %78 = vector.shape_cast %77 : vector<1x64x128xbf16> to vector<64x128xbf16>
    %cst_67 = arith.constant dense<0.000000e+00> : vector<8x128xf32>
    %79 = tpu.matmul %76, %78, %cst_67 {dimension_numbers = #tpu.dot_dimension_numbers<[1], [0], [0], [1], [0, 0, 1, 1], [], []>} : vector<8x64xbf16>, vector<64x128xbf16>, vector<8x128xf32> -> vector<8x128xf32>
    %80 = arith.addf %75, %79 : vector<8x128xf32>
    %c112 = arith.constant 112 : index
    %c0_68 = arith.constant 0 : index
    %81 = vector.load %arg6[%c112, %c0_68] : memref<200x64xbf16, #tpu.memory_space<vmem>>, vector<8x64xbf16>
    %c14 = arith.constant 14 : index
    %c0_69 = arith.constant 0 : index
    %c0_70 = arith.constant 0 : index
    %82 = vector.load %arg3[%c14, %c0_69, %c0_70] : memref<25x64x128xbf16, #tpu.memory_space<vmem>>, vector<1x64x128xbf16>
    %83 = vector.shape_cast %82 : vector<1x64x128xbf16> to vector<64x128xbf16>
    %cst_71 = arith.constant dense<0.000000e+00> : vector<8x128xf32>
    %84 = tpu.matmul %81, %83, %cst_71 {dimension_numbers = #tpu.dot_dimension_numbers<[1], [0], [0], [1], [0, 0, 1, 1], [], []>} : vector<8x64xbf16>, vector<64x128xbf16>, vector<8x128xf32> -> vector<8x128xf32>
    %85 = arith.addf %80, %84 : vector<8x128xf32>
    %c120 = arith.constant 120 : index
    %c0_72 = arith.constant 0 : index
    %86 = vector.load %arg6[%c120, %c0_72] : memref<200x64xbf16, #tpu.memory_space<vmem>>, vector<8x64xbf16>
    %c15 = arith.constant 15 : index
    %c0_73 = arith.constant 0 : index
    %c0_74 = arith.constant 0 : index
    %87 = vector.load %arg3[%c15, %c0_73, %c0_74] : memref<25x64x128xbf16, #tpu.memory_space<vmem>>, vector<1x64x128xbf16>
    %88 = vector.shape_cast %87 : vector<1x64x128xbf16> to vector<64x128xbf16>
    %cst_75 = arith.constant dense<0.000000e+00> : vector<8x128xf32>
    %89 = tpu.matmul %86, %88, %cst_75 {dimension_numbers = #tpu.dot_dimension_numbers<[1], [0], [0], [1], [0, 0, 1, 1], [], []>} : vector<8x64xbf16>, vector<64x128xbf16>, vector<8x128xf32> -> vector<8x128xf32>
    %90 = arith.addf %85, %89 : vector<8x128xf32>
    %c128 = arith.constant 128 : index
    %c0_76 = arith.constant 0 : index
    %91 = vector.load %arg6[%c128, %c0_76] : memref<200x64xbf16, #tpu.memory_space<vmem>>, vector<8x64xbf16>
    %c16_77 = arith.constant 16 : index
    %c0_78 = arith.constant 0 : index
    %c0_79 = arith.constant 0 : index
    %92 = vector.load %arg3[%c16_77, %c0_78, %c0_79] : memref<25x64x128xbf16, #tpu.memory_space<vmem>>, vector<1x64x128xbf16>
    %93 = vector.shape_cast %92 : vector<1x64x128xbf16> to vector<64x128xbf16>
    %cst_80 = arith.constant dense<0.000000e+00> : vector<8x128xf32>
    %94 = tpu.matmul %91, %93, %cst_80 {dimension_numbers = #tpu.dot_dimension_numbers<[1], [0], [0], [1], [0, 0, 1, 1], [], []>} : vector<8x64xbf16>, vector<64x128xbf16>, vector<8x128xf32> -> vector<8x128xf32>
    %95 = arith.addf %90, %94 : vector<8x128xf32>
    %c136 = arith.constant 136 : index
    %c0_81 = arith.constant 0 : index
    %96 = vector.load %arg6[%c136, %c0_81] : memref<200x64xbf16, #tpu.memory_space<vmem>>, vector<8x64xbf16>
    %c17 = arith.constant 17 : index
    %c0_82 = arith.constant 0 : index
    %c0_83 = arith.constant 0 : index
    %97 = vector.load %arg3[%c17, %c0_82, %c0_83] : memref<25x64x128xbf16, #tpu.memory_space<vmem>>, vector<1x64x128xbf16>
    %98 = vector.shape_cast %97 : vector<1x64x128xbf16> to vector<64x128xbf16>
    %cst_84 = arith.constant dense<0.000000e+00> : vector<8x128xf32>
    %99 = tpu.matmul %96, %98, %cst_84 {dimension_numbers = #tpu.dot_dimension_numbers<[1], [0], [0], [1], [0, 0, 1, 1], [], []>} : vector<8x64xbf16>, vector<64x128xbf16>, vector<8x128xf32> -> vector<8x128xf32>
    %100 = arith.addf %95, %99 : vector<8x128xf32>
    %c144 = arith.constant 144 : index
    %c0_85 = arith.constant 0 : index
    %101 = vector.load %arg6[%c144, %c0_85] : memref<200x64xbf16, #tpu.memory_space<vmem>>, vector<8x64xbf16>
    %c18 = arith.constant 18 : index
    %c0_86 = arith.constant 0 : index
    %c0_87 = arith.constant 0 : index
    %102 = vector.load %arg3[%c18, %c0_86, %c0_87] : memref<25x64x128xbf16, #tpu.memory_space<vmem>>, vector<1x64x128xbf16>
    %103 = vector.shape_cast %102 : vector<1x64x128xbf16> to vector<64x128xbf16>
    %cst_88 = arith.constant dense<0.000000e+00> : vector<8x128xf32>
    %104 = tpu.matmul %101, %103, %cst_88 {dimension_numbers = #tpu.dot_dimension_numbers<[1], [0], [0], [1], [0, 0, 1, 1], [], []>} : vector<8x64xbf16>, vector<64x128xbf16>, vector<8x128xf32> -> vector<8x128xf32>
    %105 = arith.addf %100, %104 : vector<8x128xf32>
    %c152 = arith.constant 152 : index
    %c0_89 = arith.constant 0 : index
    %106 = vector.load %arg6[%c152, %c0_89] : memref<200x64xbf16, #tpu.memory_space<vmem>>, vector<8x64xbf16>
    %c19 = arith.constant 19 : index
    %c0_90 = arith.constant 0 : index
    %c0_91 = arith.constant 0 : index
    %107 = vector.load %arg3[%c19, %c0_90, %c0_91] : memref<25x64x128xbf16, #tpu.memory_space<vmem>>, vector<1x64x128xbf16>
    %108 = vector.shape_cast %107 : vector<1x64x128xbf16> to vector<64x128xbf16>
    %cst_92 = arith.constant dense<0.000000e+00> : vector<8x128xf32>
    %109 = tpu.matmul %106, %108, %cst_92 {dimension_numbers = #tpu.dot_dimension_numbers<[1], [0], [0], [1], [0, 0, 1, 1], [], []>} : vector<8x64xbf16>, vector<64x128xbf16>, vector<8x128xf32> -> vector<8x128xf32>
    %110 = arith.addf %105, %109 : vector<8x128xf32>
    %c160 = arith.constant 160 : index
    %c0_93 = arith.constant 0 : index
    %111 = vector.load %arg6[%c160, %c0_93] : memref<200x64xbf16, #tpu.memory_space<vmem>>, vector<8x64xbf16>
    %c20 = arith.constant 20 : index
    %c0_94 = arith.constant 0 : index
    %c0_95 = arith.constant 0 : index
    %112 = vector.load %arg3[%c20, %c0_94, %c0_95] : memref<25x64x128xbf16, #tpu.memory_space<vmem>>, vector<1x64x128xbf16>
    %113 = vector.shape_cast %112 : vector<1x64x128xbf16> to vector<64x128xbf16>
    %cst_96 = arith.constant dense<0.000000e+00> : vector<8x128xf32>
    %114 = tpu.matmul %111, %113, %cst_96 {dimension_numbers = #tpu.dot_dimension_numbers<[1], [0], [0], [1], [0, 0, 1, 1], [], []>} : vector<8x64xbf16>, vector<64x128xbf16>, vector<8x128xf32> -> vector<8x128xf32>
    %115 = arith.addf %110, %114 : vector<8x128xf32>
    %c168 = arith.constant 168 : index
    %c0_97 = arith.constant 0 : index
    %116 = vector.load %arg6[%c168, %c0_97] : memref<200x64xbf16, #tpu.memory_space<vmem>>, vector<8x64xbf16>
    %c21 = arith.constant 21 : index
    %c0_98 = arith.constant 0 : index
    %c0_99 = arith.constant 0 : index
    %117 = vector.load %arg3[%c21, %c0_98, %c0_99] : memref<25x64x128xbf16, #tpu.memory_space<vmem>>, vector<1x64x128xbf16>
    %118 = vector.shape_cast %117 : vector<1x64x128xbf16> to vector<64x128xbf16>
    %cst_100 = arith.constant dense<0.000000e+00> : vector<8x128xf32>
    %119 = tpu.matmul %116, %118, %cst_100 {dimension_numbers = #tpu.dot_dimension_numbers<[1], [0], [0], [1], [0, 0, 1, 1], [], []>} : vector<8x64xbf16>, vector<64x128xbf16>, vector<8x128xf32> -> vector<8x128xf32>
    %120 = arith.addf %115, %119 : vector<8x128xf32>
    %c176 = arith.constant 176 : index
    %c0_101 = arith.constant 0 : index
    %121 = vector.load %arg6[%c176, %c0_101] : memref<200x64xbf16, #tpu.memory_space<vmem>>, vector<8x64xbf16>
    %c22 = arith.constant 22 : index
    %c0_102 = arith.constant 0 : index
    %c0_103 = arith.constant 0 : index
    %122 = vector.load %arg3[%c22, %c0_102, %c0_103] : memref<25x64x128xbf16, #tpu.memory_space<vmem>>, vector<1x64x128xbf16>
    %123 = vector.shape_cast %122 : vector<1x64x128xbf16> to vector<64x128xbf16>
    %cst_104 = arith.constant dense<0.000000e+00> : vector<8x128xf32>
    %124 = tpu.matmul %121, %123, %cst_104 {dimension_numbers = #tpu.dot_dimension_numbers<[1], [0], [0], [1], [0, 0, 1, 1], [], []>} : vector<8x64xbf16>, vector<64x128xbf16>, vector<8x128xf32> -> vector<8x128xf32>
    %125 = arith.addf %120, %124 : vector<8x128xf32>
    %c184 = arith.constant 184 : index
    %c0_105 = arith.constant 0 : index
    %126 = vector.load %arg6[%c184, %c0_105] : memref<200x64xbf16, #tpu.memory_space<vmem>>, vector<8x64xbf16>
    %c23 = arith.constant 23 : index
    %c0_106 = arith.constant 0 : index
    %c0_107 = arith.constant 0 : index
    %127 = vector.load %arg3[%c23, %c0_106, %c0_107] : memref<25x64x128xbf16, #tpu.memory_space<vmem>>, vector<1x64x128xbf16>
    %128 = vector.shape_cast %127 : vector<1x64x128xbf16> to vector<64x128xbf16>
    %cst_108 = arith.constant dense<0.000000e+00> : vector<8x128xf32>
    %129 = tpu.matmul %126, %128, %cst_108 {dimension_numbers = #tpu.dot_dimension_numbers<[1], [0], [0], [1], [0, 0, 1, 1], [], []>} : vector<8x64xbf16>, vector<64x128xbf16>, vector<8x128xf32> -> vector<8x128xf32>
    %130 = arith.addf %125, %129 : vector<8x128xf32>
    %c192 = arith.constant 192 : index
    %c0_109 = arith.constant 0 : index
    %131 = vector.load %arg6[%c192, %c0_109] : memref<200x64xbf16, #tpu.memory_space<vmem>>, vector<8x64xbf16>
    %c24_110 = arith.constant 24 : index
    %c0_111 = arith.constant 0 : index
    %c0_112 = arith.constant 0 : index
    %132 = vector.load %arg3[%c24_110, %c0_111, %c0_112] : memref<25x64x128xbf16, #tpu.memory_space<vmem>>, vector<1x64x128xbf16>
    %133 = vector.shape_cast %132 : vector<1x64x128xbf16> to vector<64x128xbf16>
    %cst_113 = arith.constant dense<0.000000e+00> : vector<8x128xf32>
    %134 = tpu.matmul %131, %133, %cst_113 {dimension_numbers = #tpu.dot_dimension_numbers<[1], [0], [0], [1], [0, 0, 1, 1], [], []>} : vector<8x64xbf16>, vector<64x128xbf16>, vector<8x128xf32> -> vector<8x128xf32>
    %135 = arith.addf %130, %134 : vector<8x128xf32>
    %c0_114 = arith.constant 0 : index
    %c0_115 = arith.constant 0 : index
    %136 = vector.load %arg4[%c0_114, %c0_115] : memref<1x128xf32, #tpu.memory_space<vmem>>, vector<1x128xf32>
    %137 = vector.broadcast %136 : vector<1x128xf32> to vector<8x128xf32>
    %138 = arith.addf %135, %137 : vector<8x128xf32>
    %c0_116 = arith.constant 0 : index
    %c0_117 = arith.constant 0 : index
    %139 = vector.load %arg5[%c0_116, %c0_117] : memref<8x128xf32, #tpu.memory_space<vmem>>, vector<8x128xf32>
    tpu.vector_store %arg5[%c0_116, %c0_117], %138 {strides = array<i32>} : memref<8x128xf32, #tpu.memory_space<vmem>>, vector<8x128xf32>,
    return
  }
}

</mosaic_0001>

<llo_original>
// kernel: triplet_forward.2
$region0: #{triplet_forward.2}
  #allocation0 [shape = 'u32[]', space=smem, size = 0x4, offset = 0x4, fixed_abs, tag = 'smem constant byte address 0x4 - core index']
  #allocation1 [shape = 'u32[72,128]{1,0:T(1,128)}', space=vmem, size = 0x9000, scoped, tag = 'internal scratch']
  %s0 = inlined_call_operand.vmem [shape: bf16[1944,64], index: 0, kind: input, shape index: {}]
  %s1 = inlined_call_operand.vmem [shape: bf16[64,32], index: 1, kind: input, shape index: {}]
  %s2 = inlined_call_operand.vmem [shape: f32[1,32], index: 2, kind: input, shape index: {}]
  %s3 = inlined_call_operand.vmem [shape: bf16[1944,32], index: 3, kind: output, shape index: {}]
  %s4 = sld [smem:[#allocation0]]
  $region45: #{triplet_forward.2} parent=0
    _
  %s6 = ssub.s32 1, %s4
  %s7 = scalar_select 0, %s6, %s4
  loop: start=0, step=1, limit=5
  $region2: #{triplet_forward.2} parent=0 // loop_pre_header
    _
  $region3: #{triplet_forward.2} parent=0 // loop_header
    %s9 = sphi 0, %s13
    %p10 = scmp.ge.s32.totalorder %s9, 5
    %s19 = sphi 0, %s21
    %s22 = sphi 0, %s19
    %s23 = sphi 0, %s22
    %s39 = sphi 0, %s23
    %s43 = sphi 0, %s43
    %s45 = sphi 0, %s43
    %s46 = sphi 0, %s45
    %s60 = sphi 0, %s46
    %s64 = sphi 0, %s64
    %s66 = sphi 0, %s64
    %s67 = sphi 0, %s66
    %s81 = sphi 0, %s67
    %s87 = sphi 0, %s89
    %s90 = sphi 0, %s87
    %s91 = sphi 0, %s90
    %s107 = sphi 0, %s91
  $region4: #{triplet_forward.2} parent=0 // loop_header_branch
    %12 = sbr.rel (%p10) target = $region8
  $region5: #{triplet_forward.2} parent=0 // loop_body
    %s14 = ssub.s32 %s9, 1
    %s15 = ssub.s32 %s9, 2
    %s16 = sadd.s32 %s9, 1
    %s17 = ssub.s32 %s9, %s16
    %p18 = scmp.eq.s32.totalorder %s17, 0
    %s20 = sadd.s32 %s19, 1
    %s21 = scalar_select %p18, %s19, %s20
    %p24 = pneg %p18
    %p25 = scmp.eq.s32.totalorder %s9, 2
    %p26 = por %p24, %p25
    %p27 = scmp.ne.s32.totalorder %s19, %s22
    %p28 = scmp.eq.s32.totalorder %s9, 0
    %p29 = por %p27, %p28
    %p30 = scmp.ne.s32.totalorder %s19, %s22
    %p31 = scmp.eq.s32.totalorder %s14, 2
    %p32 = por %p30, %p31
    %p33 = scmp.ne.s32.totalorder %s22, %s23
    %p34 = scmp.eq.s32.totalorder %s14, 0
    %p35 = por %p33, %p34
    %p36 = scmp.ne.s32.totalorder %s22, %s23
    %p37 = scmp.eq.s32.totalorder %s15, 2
    %p38 = por %p36, %p37
    %p40 = scmp.ne.s32.totalorder %s23, %s39
    %p41 = scmp.eq.s32.totalorder %s15, 0
    %p42 = por %p40, %p41
    %s44 = sadd.s32 %s43, 1
    %p47 = scmp.eq.s32.totalorder %s9, 2
    %p48 = scmp.ne.s32.totalorder %s43, %s45
    %p49 = scmp.eq.s32.totalorder %s9, 0
    %p50 = por %p48, %p49
    %p51 = scmp.ne.s32.totalorder %s43, %s45
    %p52 = scmp.eq.s32.totalorder %s14, 2
    %p53 = por %p51, %p52
    %p54 = scmp.ne.s32.totalorder %s45, %s46
    %p55 = scmp.eq.s32.totalorder %s14, 0
    %p56 = por %p54, %p55
    %p57 = scmp.ne.s32.totalorder %s45, %s46
    %p58 = scmp.eq.s32.totalorder %s15, 2
    %p59 = por %p57, %p58
    %p61 = scmp.ne.s32.totalorder %s46, %s60
    %p62 = scmp.eq.s32.totalorder %s15, 0
    %p63 = por %p61, %p62
    %s65 = sadd.s32 %s64, 1
    %p68 = scmp.eq.s32.totalorder %s9, 2
    %p69 = scmp.ne.s32.totalorder %s64, %s66
    %p70 = scmp.eq.s32.totalorder %s9, 0
    %p71 = por %p69, %p70
    %p72 = scmp.ne.s32.totalorder %s64, %s66
    %p73 = scmp.eq.s32.totalorder %s14, 2
    %p74 = por %p72, %p73
    %p75 = scmp.ne.s32.totalorder %s66, %s67
    %p76 = scmp.eq.s32.totalorder %s14, 0
    %p77 = por %p75, %p76
    %p78 = scmp.ne.s32.totalorder %s66, %s67
    %p79 = scmp.eq.s32.totalorder %s15, 2
    %p80 = por %p78, %p79
    %p82 = scmp.ne.s32.totalorder %s67, %s81
    %p83 = scmp.eq.s32.totalorder %s15, 0
    %p84 = por %p82, %p83
    %s85 = ssub.s32 %s9, %s16
    %p86 = scmp.eq.s32.totalorder %s85, 0
    %s88 = sadd.s32 %s87, 1
    %s89 = scalar_select %p86, %s87, %s88
    %p92 = pneg %p86
    %p93 = scmp.eq.s32.totalorder %s9, 2
    %p94 = por %p92, %p93
    %p95 = scmp.ne.s32.totalorder %s87, %s90
    %p96 = scmp.eq.s32.totalorder %s9, 0
    %p97 = por %p95, %p96
    %p98 = scmp.ne.s32.totalorder %s87, %s90
    %p99 = scmp.eq.s32.totalorder %s14, 2
    %p100 = por %p98, %p99
    %p101 = scmp.ne.s32.totalorder %s90, %s91
    %p102 = scmp.eq.s32.totalorder %s14, 0
    %p103 = por %p101, %p102
    %p104 = scmp.ne.s32.totalorder %s90, %s91
    %p105 = scmp.eq.s32.totalorder %s15, 2
    %p106 = por %p104, %p105
    %p108 = scmp.ne.s32.totalorder %s91, %s107
    %p109 = scmp.eq.s32.totalorder %s15, 0
    %p110 = por %p108, %p109
    %p111 = scmp.le.s32.totalorder 1, %s9
    %p112 = scmp.lt.s32.totalorder %s9, 4
    %p113 = pnand %p111, %p112
    %p114 = pneg %p113
    // Predicated region
    $region9: #{triplet_forward.2} parent=5 // pred_check
      _
    $region10: #{triplet_forward.2} parent=5 // pred_check_branch
      %116 = sbr.rel (%p113) target = $region12
    $region11: #{triplet_forward.2} parent=5 // pred_region
      %s117 = ssub.s32 %s9, 1
      // Predicated region
      $region13: #{triplet_forward.2} parent=11 // pred_check
        %p118 = pneg %p56
      $region14: #{triplet_forward.2} parent=11 // pred_check_branch
        %120 = sbr.rel (%p118) target = $region16
      $region15: #{triplet_forward.2} parent=11 // pred_region
        _
      $region16: #{triplet_forward.2} parent=11 // pred_fallthru
        _
      // Predicated region
      $region17: #{triplet_forward.2} parent=11 // pred_check
        %p121 = pneg %p77
      $region18: #{triplet_forward.2} parent=11 // pred_check_branch
        %123 = sbr.rel (%p121) target = $region20
      $region19: #{triplet_forward.2} parent=11 // pred_region
        _
      $region20: #{triplet_forward.2} parent=11 // pred_fallthru
        _
    $region12: #{triplet_forward.2} parent=5 // pred_fallthru
      _
    %p124 = scmp.lt.s32.totalorder %s9, 3
    // Predicated region
    $region21: #{triplet_forward.2} parent=5 // pred_check
      %p125 = pneg %p124
    $region22: #{triplet_forward.2} parent=5 // pred_check_branch
      %127 = sbr.rel (%p125) target = $region24
    $region23: #{triplet_forward.2} parent=5 // pred_region
      // Predicated region
      $region25: #{triplet_forward.2} parent=23 // pred_check
        %p128 = pneg %p29
      $region26: #{triplet_forward.2} parent=23 // pred_check_branch
        %130 = sbr.rel (%p128) target = $region28
      $region27: #{triplet_forward.2} parent=23 // pred_region
        %s131 = smul.u32 81, %s9
        %p132 = scmp.lt.s32.totalorder %s131, 242
        %s133 = scalar_select %p132, %s131, 242
        %s134 = smul.addr %s133, 4
        %s135 = scalar_lea.vmem %s0, %s134
        %s136 = smul.u32 81, %s9
      $region28: #{triplet_forward.2} parent=23 // pred_fallthru
        _
    $region24: #{triplet_forward.2} parent=5 // pred_fallthru
      _
    %p137 = scmp.le.s32.totalorder 1, %s9
    %p138 = scmp.lt.s32.totalorder %s9, 4
    %p139 = pnand %p137, %p138
    %p140 = pneg %p139
    // Predicated region
    $region29: #{triplet_forward.2} parent=5 // pred_check
      _
    $region30: #{triplet_forward.2} parent=5 // pred_check_branch
      %142 = sbr.rel (%p139) target = $region32
    $region31: #{triplet_forward.2} parent=5 // pred_region
      %s143 = ssub.s32 %s9, 1
      %s144 = smul.u32 81, %s14
      %p145 = scmp.lt.s32.totalorder %s144, 242
      %s146 = scalar_select %p145, %s144, 242
      %s147 = smul.addr %s146, 4
      %s148 = scalar_lea.vmem %s0, %s147
      %p149 = pneg %p35
      %p150 = pneg %p32
      %p151 = pneg %p56
      %p152 = pneg %p53
      %p153 = pneg %p77
      %p154 = pneg %p74
      %p155 = pneg %p103
      %p156 = pneg %p100
      %s157 = smul.u32 81, %s14
      %p158 = scmp.lt.s32.totalorder %s157, 242
      %s159 = scalar_select %p158, %s157, 242
      %s160 = smul.addr %s159, 4
      %s161 = scalar_lea.vmem %s3, %s160
      %s162 = smul.u32 81, %s14
      %p163 = scmp.lt.s32.totalorder %s162, 242
      %s164 = scalar_select %p163, %s162, 242
      %s165 = smul.addr %s164, 4
      %s166 = scalar_lea.vmem %s0, %s165
      %s167 = smul.u32 81, %s14
      %s168 = smul.u32 81, %s14
      %p169 = scmp.lt.s32.totalorder %s168, 242
      %s170 = scalar_select %p169, %s168, 242
      %s171 = smul.addr %s170, 4
      %s172 = scalar_lea.vmem %s3, %s171
      %s173 = smul.u32 81, %s14
      %v175 = vld [vmem:[%s166] sm:$0xf]
      %v176 = vld [vmem:[%s166 + $0x4] sm:$0xf]
      %v177 = vld [vmem:[%s166 + $0x8] sm:$0xf]
      %v178 = vld [vmem:[%s166 + $0xc] sm:$0xf]
      %v179 = vld [vmem:[%s166 + $0x10] sm:$0xf]
      %v180 = vld [vmem:[%s166 + $0x14] sm:$0xf]
      %v181 = vld [vmem:[%s166 + $0x18] sm:$0xf]
      %v182 = vld [vmem:[%s166 + $0x1c] sm:$0xf]
      %v183 = vld [vmem:[%s166 + $0x20] sm:$0xf]
      %v184 = vld [vmem:[%s166 + $0x24] sm:$0xf]
      %v185 = vld [vmem:[%s166 + $0x28] sm:$0xf]
      %v186 = vld [vmem:[%s166 + $0x2c] sm:$0xf]
      %v187 = vld [vmem:[%s166 + $0x30] sm:$0xf]
      %v188 = vld [vmem:[%s166 + $0x34] sm:$0xf]
      %v189 = vld [vmem:[%s166 + $0x38] sm:$0xf]
      %v190 = vld [vmem:[%s166 + $0x3c] sm:$0xf]
      %v191 = vld [vmem:[%s166 + $0x40] sm:$0xf]
      %v192 = vld [vmem:[%s166 + $0x44] sm:$0xf]
      %v193 = vld [vmem:[%s166 + $0x48] sm:$0xf]
      %v194 = vld [vmem:[%s166 + $0x4c] sm:$0xf]
      %v195 = vld [vmem:[%s166 + $0x50] sm:$0xf]
      %v196 = vld [vmem:[%s166 + $0x54] sm:$0xf]
      %v197 = vld [vmem:[%s166 + $0x58] sm:$0xf]
      %v198 = vld [vmem:[%s166 + $0x5c] sm:$0xf]
      %v199 = vld [vmem:[%s166 + $0x60] sm:$0xf]
      %v200 = vld [vmem:[%s166 + $0x64] sm:$0xf]
      %v201 = vld [vmem:[%s166 + $0x68] sm:$0xf]
      %v202 = vld [vmem:[%s166 + $0x6c] sm:$0xf]
      %v203 = vld [vmem:[%s166 + $0x70] sm:$0xf]
      %v204 = vld [vmem:[%s166 + $0x74] sm:$0xf]
      %v205 = vld [vmem:[%s166 + $0x78] sm:$0xf]
      %v206 = vld [vmem:[%s166 + $0x7c] sm:$0xf]
      %v207 = vld [vmem:[%s166 + $0x80] sm:$0xf]
      %v208 = vld [vmem:[%s166 + $0x84] sm:$0xf]
      %v209 = vld [vmem:[%s166 + $0x88] sm:$0xf]
      %v210 = vld [vmem:[%s166 + $0x8c] sm:$0xf]
      %v211 = vld [vmem:[%s166 + $0x90] sm:$0xf]
      %v212 = vld [vmem:[%s166 + $0x94] sm:$0xf]
      %v213 = vld [vmem:[%s166 + $0x98] sm:$0xf]
      %v214 = vld [vmem:[%s166 + $0x9c] sm:$0xf]
      %v215 = vld [vmem:[%s166 + $0xa0] sm:$0xf]
      %v216 = vld [vmem:[%s166 + $0xa4] sm:$0xf]
      %v217 = vld [vmem:[%s166 + $0xa8] sm:$0xf]
      %v218 = vld [vmem:[%s166 + $0xac] sm:$0xf]
      %v219 = vld [vmem:[%s166 + $0xb0] sm:$0xf]
      %v220 = vld [vmem:[%s166 + $0xb4] sm:$0xf]
      %v221 = vld [vmem:[%s166 + $0xb8] sm:$0xf]
      %v222 = vld [vmem:[%s166 + $0xbc] sm:$0xf]
      %v223 = vld [vmem:[%s166 + $0xc0] sm:$0xf]
      %v224 = vld [vmem:[%s166 + $0xc4] sm:$0xf]
      %v225 = vld [vmem:[%s166 + $0xc8] sm:$0xf]
      %v226 = vld [vmem:[%s166 + $0xcc] sm:$0xf]
      %v227 = vld [vmem:[%s166 + $0xd0] sm:$0xf]
      %v228 = vld [vmem:[%s166 + $0xd4] sm:$0xf]
      %v229 = vld [vmem:[%s166 + $0xd8] sm:$0xf]
      %v230 = vld [vmem:[%s166 + $0xdc] sm:$0xf]
      %v231 = vld [vmem:[%s166 + $0xe0] sm:$0xf]
      %v232 = vld [vmem:[%s166 + $0xe4] sm:$0xf]
      %v233 = vld [vmem:[%s166 + $0xe8] sm:$0xf]
      %v234 = vld [vmem:[%s166 + $0xec] sm:$0xf]
      %v235 = vld [vmem:[%s166 + $0xf0] sm:$0xf]
      %v236 = vld [vmem:[%s166 + $0xf4] sm:$0xf]
      %v237 = vld [vmem:[%s166 + $0xf8] sm:$0xf]
      %v238 = vld [vmem:[%s166 + $0xfc] sm:$0xf]
      %v239 = vld [vmem:[%s166 + $0x100] sm:$0xf]
      %v240 = vld [vmem:[%s166 + $0x104] sm:$0xf]
      %v241 = vld [vmem:[%s166 + $0x108] sm:$0xf]
      %v242 = vld [vmem:[%s166 + $0x10c] sm:$0xf]
      %v243 = vld [vmem:[%s166 + $0x110] sm:$0xf]
      %v244 = vld [vmem:[%s166 + $0x114] sm:$0xf]
      %v245 = vld [vmem:[%s166 + $0x118] sm:$0xf]
      %v246 = vld [vmem:[%s166 + $0x11c] sm:$0xf]
      %v247 = vld [vmem:[%s166 + $0x120] sm:$0xf]
      %v248 = vld [vmem:[%s166 + $0x124] sm:$0xf]
      %v249 = vld [vmem:[%s166 + $0x128] sm:$0xf]
      %v250 = vld [vmem:[%s166 + $0x12c] sm:$0xf]
      %v251 = vld [vmem:[%s166 + $0x130] sm:$0xf]
      %v252 = vld [vmem:[%s166 + $0x134] sm:$0xf]
      %v253 = vld [vmem:[%s166 + $0x138] sm:$0xf]
      %v254 = vld [vmem:[%s166 + $0x13c] sm:$0xf]
      %v255 = vld [vmem:[%s166 + $0x140] sm:$0xf]
      %v256 = vld [vmem:[%s1] sm:$0xf]
      %v257 = vld [vmem:[%s1 + $0x4] sm:$0xf]
      %v258 = vld [vmem:[%s1 + $0x8] sm:$0xf]
      %v259 = vld [vmem:[%s1 + $0xc] sm:$0xf]
      %v260 = vld [vmem:[%s1 + $0x10] sm:$0xf]
      %v261 = vld [vmem:[%s1 + $0x14] sm:$0xf]
      %v262 = vld [vmem:[%s1 + $0x18] sm:$0xf]
      %v263 = vld [vmem:[%s1 + $0x1c] sm:$0xf]
      %v264 = vld [vmem:[%s2] sm:$0x1]
      %v266 = vperm.slane %v264, 0
      %v349 = vunpack.c.l.b16 %v175
      %v350 = vunpack.c.l.b16 %v176
      %v351 = vunpack.c.l.b16 %v177
      %v352 = vunpack.c.l.b16 %v178
      %v353 = vunpack.c.l.b16 %v179
      %v354 = vunpack.c.l.b16 %v180
      %v355 = vunpack.c.l.b16 %v181
      %v356 = vunpack.c.l.b16 %v182
      %v357 = vunpack.c.l.b16 %v183
      %v358 = vunpack.c.l.b16 %v184
      %v359 = vunpack.c.l.b16 %v185
      %v360 = vunpack.c.l.b16 %v186
      %v361 = vunpack.c.l.b16 %v187
      %v362 = vunpack.c.l.b16 %v188
      %v363 = vunpack.c.l.b16 %v189
      %v364 = vunpack.c.l.b16 %v190
      %v365 = vunpack.c.l.b16 %v191
      %v366 = vunpack.c.l.b16 %v192
      %v367 = vunpack.c.l.b16 %v193
      %v368 = vunpack.c.l.b16 %v194
      %v369 = vunpack.c.l.b16 %v195
      %v370 = vunpack.c.l.b16 %v196
      %v371 = vunpack.c.l.b16 %v197
      %v372 = vunpack.c.l.b16 %v198
      %v373 = vunpack.c.l.b16 %v199
      %v374 = vunpack.c.l.b16 %v200
      %v375 = vunpack.c.l.b16 %v201
      %v376 = vunpack.c.l.b16 %v202
      %v377 = vunpack.c.l.b16 %v203
      %v378 = vunpack.c.l.b16 %v204
      %v379 = vunpack.c.l.b16 %v205
      %v380 = vunpack.c.l.b16 %v206
      %v381 = vunpack.c.l.b16 %v207
      %v382 = vunpack.c.l.b16 %v208
      %v383 = vunpack.c.l.b16 %v209
      %v384 = vunpack.c.l.b16 %v210
      %v385 = vunpack.c.l.b16 %v211
      %v386 = vunpack.c.l.b16 %v212
      %v387 = vunpack.c.l.b16 %v213
      %v388 = vunpack.c.l.b16 %v214
      %v389 = vunpack.c.l.b16 %v215
      %v390 = vunpack.c.l.b16 %v216
      %v391 = vunpack.c.l.b16 %v217
      %v392 = vunpack.c.l.b16 %v218
      %v393 = vunpack.c.l.b16 %v219
      %v394 = vunpack.c.l.b16 %v220
      %v395 = vunpack.c.l.b16 %v221
      %v396 = vunpack.c.l.b16 %v222
      %v397 = vunpack.c.l.b16 %v223
      %v398 = vunpack.c.l.b16 %v224
      %v399 = vunpack.c.l.b16 %v225
      %v400 = vunpack.c.l.b16 %v226
      %v401 = vunpack.c.l.b16 %v227
      %v402 = vunpack.c.l.b16 %v228
      %v403 = vunpack.c.l.b16 %v229
      %v404 = vunpack.c.l.b16 %v230
      %v405 = vunpack.c.l.b16 %v231
      %v406 = vunpack.c.l.b16 %v232
      %v407 = vunpack.c.l.b16 %v233
      %v408 = vunpack.c.l.b16 %v234
      %v409 = vunpack.c.l.b16 %v235
      %v410 = vunpack.c.l.b16 %v236
      %v411 = vunpack.c.l.b16 %v237
      %v412 = vunpack.c.l.b16 %v238
      %v413 = vunpack.c.l.b16 %v239
      %v414 = vunpack.c.l.b16 %v240
      %v415 = vunpack.c.l.b16 %v241
      %v416 = vunpack.c.l.b16 %v242
      %v417 = vunpack.c.l.b16 %v243
      %v418 = vunpack.c.l.b16 %v244
      %v419 = vunpack.c.l.b16 %v245
      %v420 = vunpack.c.l.b16 %v246
      %v421 = vunpack.c.l.b16 %v247
      %v422 = vunpack.c.l.b16 %v248
      %v423 = vunpack.c.l.b16 %v249
      %v424 = vunpack.c.l.b16 %v250
      %v425 = vunpack.c.l.b16 %v251
      %v426 = vunpack.c.l.b16 %v252
      %v427 = vunpack.c.l.b16 %v253
      %v428 = vunpack.c.l.b16 %v254
      %v429 = vunpack.c.l.b16 %v255
      %v430 = vpack.c.b16 %v350, %v349
      %v431 = vpack.c.b16 %v352, %v351
      %v432 = vpack.c.b16 %v354, %v353
      %v433 = vpack.c.b16 %v356, %v355
      %v434 = vpack.c.b16 %v358, %v357
      %v435 = vpack.c.b16 %v360, %v359
      %v436 = vpack.c.b16 %v362, %v361
      %v437 = vpack.c.b16 %v364, %v363
      %v438 = vpack.c.b16 %v366, %v365
      %v439 = vpack.c.b16 %v368, %v367
      %v440 = vpack.c.b16 %v370, %v369
      %v441 = vpack.c.b16 %v372, %v371
      %v442 = vpack.c.b16 %v374, %v373
      %v443 = vpack.c.b16 %v376, %v375
      %v444 = vpack.c.b16 %v378, %v377
      %v445 = vpack.c.b16 %v380, %v379
      %v446 = vpack.c.b16 %v382, %v381
      %v447 = vpack.c.b16 %v384, %v383
      %v448 = vpack.c.b16 %v386, %v385
      %v449 = vpack.c.b16 %v388, %v387
      %v450 = vpack.c.b16 %v390, %v389
      %v451 = vpack.c.b16 %v392, %v391
      %v452 = vpack.c.b16 %v394, %v393
      %v453 = vpack.c.b16 %v396, %v395
      %v454 = vpack.c.b16 %v398, %v397
      %v455 = vpack.c.b16 %v400, %v399
      %v456 = vpack.c.b16 %v402, %v401
      %v457 = vpack.c.b16 %v404, %v403
      %v458 = vpack.c.b16 %v406, %v405
      %v459 = vpack.c.b16 %v408, %v407
      %v460 = vpack.c.b16 %v410, %v409
      %v461 = vpack.c.b16 %v412, %v411
      %v462 = vpack.c.b16 %v414, %v413
      %v463 = vpack.c.b16 %v416, %v415
      %v464 = vpack.c.b16 %v418, %v417
      %v465 = vpack.c.b16 %v420, %v419
      %v466 = vpack.c.b16 %v422, %v421
      %v467 = vpack.c.b16 %v424, %v423
      %v468 = vpack.c.b16 %v426, %v425
      %v469 = vpack.c.b16 %v428, %v427
      %v470 = vpack.c.b16 %v429, %v429
      %v479 = vunpack.c.l.b16 %v256
      %v480 = vunpack.c.l.b16 %v257
      %v481 = vunpack.c.l.b16 %v258
      %v482 = vunpack.c.l.b16 %v259
      %v483 = vunpack.c.l.b16 %v260
      %v484 = vunpack.c.l.b16 %v261
      %v485 = vunpack.c.l.b16 %v262
      %v486 = vunpack.c.l.b16 %v263
      %v487 = vpack.c.b16 %v480, %v479
      %v488 = vpack.c.b16 %v482, %v481
      %v489 = vpack.c.b16 %v484, %v483
      %v490 = vpack.c.b16 %v486, %v485
      %vm495 = vcmask 523264
      %v497 = vsel %vm495, %v430, 0
      %v500 = vsel %vm495, %v431, 0
      %v503 = vsel %vm495, %v432, 0
      %v506 = vsel %vm495, %v433, 0
      %v509 = vsel %vm495, %v434, 0
      %v512 = vsel %vm495, %v435, 0
      %v515 = vsel %vm495, %v436, 0
      %v518 = vsel %vm495, %v437, 0
      %v521 = vsel %vm495, %v438, 0
      %v524 = vsel %vm495, %v439, 0
      %v527 = vsel %vm495, %v440, 0
      %v530 = vsel %vm495, %v441, 0
      %v533 = vsel %vm495, %v442, 0
      %v536 = vsel %vm495, %v443, 0
      %v539 = vsel %vm495, %v444, 0
      %v542 = vsel %vm495, %v445, 0
      %v545 = vsel %vm495, %v446, 0
      %v548 = vsel %vm495, %v447, 0
      %v551 = vsel %vm495, %v448, 0
      %v554 = vsel %vm495, %v449, 0
      %v557 = vsel %vm495, %v450, 0
      %v560 = vsel %vm495, %v451, 0
      %v563 = vsel %vm495, %v452, 0
      %v566 = vsel %vm495, %v453, 0
      %v569 = vsel %vm495, %v454, 0
      %v572 = vsel %vm495, %v455, 0
      %v575 = vsel %vm495, %v456, 0
      %v578 = vsel %vm495, %v457, 0
      %v581 = vsel %vm495, %v458, 0
      %v584 = vsel %vm495, %v459, 0
      %v587 = vsel %vm495, %v460, 0
      %v590 = vsel %vm495, %v461, 0
      %v593 = vsel %vm495, %v462, 0
      %v596 = vsel %vm495, %v463, 0
      %v599 = vsel %vm495, %v464, 0
      %v602 = vsel %vm495, %v465, 0
      %v605 = vsel %vm495, %v466, 0
      %v608 = vsel %vm495, %v467, 0
      %v611 = vsel %vm495, %v468, 0
      %v614 = vsel %vm495, %v469, 0
      %v617 = vsel %vm495, %v470, 0
      %619 = vmatpush.bf16.msra.mxu0 0
      %620 = vmatpush.bf16.msra.mxu0 0
      %621 = vmatpush.bf16.msra.mxu0 0
      %622 = vmatpush.bf16.msra.mxu0 0
      %623 = vmatpush.bf16.msra.mxu0 %v490
      %624 = vmatpush.bf16.msra.mxu0 %v489
      %625 = vmatpush.bf16.msra.mxu0 %v488
      %626 = vmatpush.bf16.msra.mxu0 %v487
      %627 = vmatmul.bf16.gmra.mxu0 %v497
      %v628 = vpop.f32.mrf.mxu0
      %v629 = vadd.f32 %v266, %v628
      %v630 = vpop.f32.mrf.mxu0
      %v631 = vadd.f32 %v266, %v630
      %632 = vmatmul.bf16.gmra.mxu0 %v500
      %v633 = vpop.f32.mrf.mxu0
      %v634 = vadd.f32 %v266, %v633
      %v635 = vpop.f32.mrf.mxu0
      %v636 = vadd.f32 %v266, %v635
      %637 = vmatmul.bf16.gmra.mxu0 %v503
      %v638 = vpop.f32.mrf.mxu0
      %v639 = vadd.f32 %v266, %v638
      %v640 = vpop.f32.mrf.mxu0
      %v641 = vadd.f32 %v266, %v640
      %642 = vmatmul.bf16.gmra.mxu0 %v506
      %v643 = vpop.f32.mrf.mxu0
      %v644 = vadd.f32 %v266, %v643
      %v645 = vpop.f32.mrf.mxu0
      %v646 = vadd.f32 %v266, %v645
      %647 = vmatmul.bf16.gmra.mxu0 %v509
      %v648 = vpop.f32.mrf.mxu0
      %v649 = vadd.f32 %v266, %v648
      %v650 = vpop.f32.mrf.mxu0
      %v651 = vadd.f32 %v266, %v650
      %652 = vmatmul.bf16.gmra.mxu0 %v512
      %v653 = vpop.f32.mrf.mxu0
      %v654 = vadd.f32 %v266, %v653
      %v655 = vpop.f32.mrf.mxu0
      %v656 = vadd.f32 %v266, %v655
      %657 = vmatmul.bf16.gmra.mxu0 %v515
      %v658 = vpop.f32.mrf.mxu0
      %v659 = vadd.f32 %v266, %v658
      %v660 = vpop.f32.mrf.mxu0
      %v661 = vadd.f32 %v266, %v660
      %662 = vmatmul.bf16.gmra.mxu0 %v518
      %v663 = vpop.f32.mrf.mxu0
      %v664 = vadd.f32 %v266, %v663
      %v665 = vpop.f32.mrf.mxu0
      %v666 = vadd.f32 %v266, %v665
      %667 = vmatmul.bf16.gmra.mxu0 %v521
      %v668 = vpop.f32.mrf.mxu0
      %v669 = vadd.f32 %v266, %v668
      %v670 = vpop.f32.mrf.mxu0
      %v671 = vadd.f32 %v266, %v670
      %672 = vmatmul.bf16.gmra.mxu0 %v524
      %v673 = vpop.f32.mrf.mxu0
      %v674 = vadd.f32 %v266, %v673
      %v675 = vpop.f32.mrf.mxu0
      %v676 = vadd.f32 %v266, %v675
      %677 = vmatmul.bf16.gmra.mxu0 %v527
      %v678 = vpop.f32.mrf.mxu0
      %v679 = vadd.f32 %v266, %v678
      %v680 = vpop.f32.mrf.mxu0
      %v681 = vadd.f32 %v266, %v680
      %682 = vmatmul.bf16.gmra.mxu0 %v530
      %v683 = vpop.f32.mrf.mxu0
      %v684 = vadd.f32 %v266, %v683
      %v685 = vpop.f32.mrf.mxu0
      %v686 = vadd.f32 %v266, %v685
      %687 = vmatmul.bf16.gmra.mxu0 %v533
      %v688 = vpop.f32.mrf.mxu0
      %v689 = vadd.f32 %v266, %v688
      %v690 = vpop.f32.mrf.mxu0
      %v691 = vadd.f32 %v266, %v690
      %692 = vmatmul.bf16.gmra.mxu0 %v536
      %v693 = vpop.f32.mrf.mxu0
      %v694 = vadd.f32 %v266, %v693
      %v695 = vpop.f32.mrf.mxu0
      %v696 = vadd.f32 %v266, %v695
      %697 = vmatmul.bf16.gmra.mxu0 %v539
      %v698 = vpop.f32.mrf.mxu0
      %v699 = vadd.f32 %v266, %v698
      %v700 = vpop.f32.mrf.mxu0
      %v701 = vadd.f32 %v266, %v700
      %702 = vmatmul.bf16.gmra.mxu0 %v542
      %v703 = vpop.f32.mrf.mxu0
      %v704 = vadd.f32 %v266, %v703
      %v705 = vpop.f32.mrf.mxu0
      %v706 = vadd.f32 %v266, %v705
      %707 = vmatmul.bf16.gmra.mxu0 %v545
      %v708 = vpop.f32.mrf.mxu0
      %v709 = vadd.f32 %v266, %v708
      %v710 = vpop.f32.mrf.mxu0
      %v711 = vadd.f32 %v266, %v710
      %712 = vmatmul.bf16.gmra.mxu0 %v548
      %v713 = vpop.f32.mrf.mxu0
      %v714 = vadd.f32 %v266, %v713
      %v715 = vpop.f32.mrf.mxu0
      %v716 = vadd.f32 %v266, %v715
      %717 = vmatmul.bf16.gmra.mxu0 %v551
      %v718 = vpop.f32.mrf.mxu0
      %v719 = vadd.f32 %v266, %v718
      %v720 = vpop.f32.mrf.mxu0
      %v721 = vadd.f32 %v266, %v720
      %722 = vmatmul.bf16.gmra.mxu0 %v554
      %v723 = vpop.f32.mrf.mxu0
      %v724 = vadd.f32 %v266, %v723
      %v725 = vpop.f32.mrf.mxu0
      %v726 = vadd.f32 %v266, %v725
      %727 = vmatmul.bf16.gmra.mxu0 %v557
      %v728 = vpop.f32.mrf.mxu0
      %v729 = vadd.f32 %v266, %v728
      %v730 = vpop.f32.mrf.mxu0
      %v731 = vadd.f32 %v266, %v730
      %732 = vmatmul.bf16.gmra.mxu0 %v560
      %v733 = vpop.f32.mrf.mxu0
      %v734 = vadd.f32 %v266, %v733
      %v735 = vpop.f32.mrf.mxu0
      %v736 = vadd.f32 %v266, %v735
      %737 = vmatmul.bf16.gmra.mxu0 %v563
      %v738 = vpop.f32.mrf.mxu0
      %v739 = vadd.f32 %v266, %v738
      %v740 = vpop.f32.mrf.mxu0
      %v741 = vadd.f32 %v266, %v740
      %742 = vmatmul.bf16.gmra.mxu0 %v566
      %v743 = vpop.f32.mrf.mxu0
      %v744 = vadd.f32 %v266, %v743
      %v745 = vpop.f32.mrf.mxu0
      %v746 = vadd.f32 %v266, %v745
      %747 = vmatmul.bf16.gmra.mxu0 %v569
      %v748 = vpop.f32.mrf.mxu0
      %v749 = vadd.f32 %v266, %v748
      %v750 = vpop.f32.mrf.mxu0
      %v751 = vadd.f32 %v266, %v750
      %752 = vmatmul.bf16.gmra.mxu0 %v572
      %v753 = vpop.f32.mrf.mxu0
      %v754 = vadd.f32 %v266, %v753
      %v755 = vpop.f32.mrf.mxu0
      %v756 = vadd.f32 %v266, %v755
      %757 = vmatmul.bf16.gmra.mxu0 %v575
      %v758 = vpop.f32.mrf.mxu0
      %v759 = vadd.f32 %v266, %v758
      %v760 = vpop.f32.mrf.mxu0
      %v761 = vadd.f32 %v266, %v760
      %762 = vmatmul.bf16.gmra.mxu0 %v578
      %v763 = vpop.f32.mrf.mxu0
      %v764 = vadd.f32 %v266, %v763
      %v765 = vpop.f32.mrf.mxu0
      %v766 = vadd.f32 %v266, %v765
      %767 = vmatmul.bf16.gmra.mxu0 %v581
      %v768 = vpop.f32.mrf.mxu0
      %v769 = vadd.f32 %v266, %v768
      %v770 = vpop.f32.mrf.mxu0
      %v771 = vadd.f32 %v266, %v770
      %772 = vmatmul.bf16.gmra.mxu0 %v584
      %v773 = vpop.f32.mrf.mxu0
      %v774 = vadd.f32 %v266, %v773
      %v775 = vpop.f32.mrf.mxu0
      %v776 = vadd.f32 %v266, %v775
      %777 = vmatmul.bf16.gmra.mxu0 %v587
      %v778 = vpop.f32.mrf.mxu0
      %v779 = vadd.f32 %v266, %v778
      %v780 = vpop.f32.mrf.mxu0
      %v781 = vadd.f32 %v266, %v780
      %782 = vmatmul.bf16.gmra.mxu0 %v590
      %v783 = vpop.f32.mrf.mxu0
      %v784 = vadd.f32 %v266, %v783
      %v785 = vpop.f32.mrf.mxu0
      %v786 = vadd.f32 %v266, %v785
      %787 = vmatmul.bf16.gmra.mxu0 %v593
      %v788 = vpop.f32.mrf.mxu0
      %v789 = vadd.f32 %v266, %v788
      %v790 = vpop.f32.mrf.mxu0
      %v791 = vadd.f32 %v266, %v790
      %792 = vmatmul.bf16.gmra.mxu0 %v596
      %v793 = vpop.f32.mrf.mxu0
      %v794 = vadd.f32 %v266, %v793
      %v795 = vpop.f32.mrf.mxu0
      %v796 = vadd.f32 %v266, %v795
      %797 = vmatmul.bf16.gmra.mxu0 %v599
      %v798 = vpop.f32.mrf.mxu0
      %v799 = vadd.f32 %v266, %v798
      %v800 = vpop.f32.mrf.mxu0
      %v801 = vadd.f32 %v266, %v800
      %802 = vmatmul.bf16.gmra.mxu0 %v602
      %v803 = vpop.f32.mrf.mxu0
      %v804 = vadd.f32 %v266, %v803
      %v805 = vpop.f32.mrf.mxu0
      %v806 = vadd.f32 %v266, %v805
      %807 = vmatmul.bf16.gmra.mxu0 %v605
      %v808 = vpop.f32.mrf.mxu0
      %v809 = vadd.f32 %v266, %v808
      %v810 = vpop.f32.mrf.mxu0
      %v811 = vadd.f32 %v266, %v810
      %812 = vmatmul.bf16.gmra.mxu0 %v608
      %v813 = vpop.f32.mrf.mxu0
      %v814 = vadd.f32 %v266, %v813
      %v815 = vpop.f32.mrf.mxu0
      %v816 = vadd.f32 %v266, %v815
      %817 = vmatmul.bf16.gmra.mxu0 %v611
      %v818 = vpop.f32.mrf.mxu0
      %v819 = vadd.f32 %v266, %v818
      %v820 = vpop.f32.mrf.mxu0
      %v821 = vadd.f32 %v266, %v820
      %822 = vmatmul.bf16.gmra.mxu0 %v614
      %v823 = vpop.f32.mrf.mxu0
      %v824 = vadd.f32 %v266, %v823
      %v825 = vpop.f32.mrf.mxu0
      %v826 = vadd.f32 %v266, %v825
      %827 = vmatmul.bf16.gmra.mxu0 %v617
      %v828 = vpop.f32.mrf.mxu0
      %v829 = vadd.f32 %v266, %v828
      %v830 = vpop.f32.mrf.mxu0
      %831 = vdwg.mxu0
      %v832 = vmax.f32 %v629, 0.0
      %v833 = vmax.f32 %v631, 0.0
      %v834 = vmax.f32 %v634, 0.0
      %v835 = vmax.f32 %v636, 0.0
      %v836 = vmax.f32 %v639, 0.0
      %v837 = vmax.f32 %v641, 0.0
      %v838 = vmax.f32 %v644, 0.0
      %v839 = vmax.f32 %v646, 0.0
      %v840 = vmax.f32 %v649, 0.0
      %v841 = vmax.f32 %v651, 0.0
      %v842 = vmax.f32 %v654, 0.0
      %v843 = vmax.f32 %v656, 0.0
      %v844 = vmax.f32 %v659, 0.0
      %v845 = vmax.f32 %v661, 0.0
      %v846 = vmax.f32 %v664, 0.0
      %v847 = vmax.f32 %v666, 0.0
      %v848 = vmax.f32 %v669, 0.0
      %v849 = vmax.f32 %v671, 0.0
      %v850 = vmax.f32 %v674, 0.0
      %v851 = vmax.f32 %v676, 0.0
      %v852 = vmax.f32 %v679, 0.0
      %v853 = vmax.f32 %v681, 0.0
      %v854 = vmax.f32 %v684, 0.0
      %v855 = vmax.f32 %v686, 0.0
      %v856 = vmax.f32 %v689, 0.0
      %v857 = vmax.f32 %v691, 0.0
      %v858 = vmax.f32 %v694, 0.0
      %v859 = vmax.f32 %v696, 0.0
      %v860 = vmax.f32 %v699, 0.0
      %v861 = vmax.f32 %v701, 0.0
      %v862 = vmax.f32 %v704, 0.0
      %v863 = vmax.f32 %v706, 0.0
      %v864 = vmax.f32 %v709, 0.0
      %v865 = vmax.f32 %v711, 0.0
      %v866 = vmax.f32 %v714, 0.0
      %v867 = vmax.f32 %v716, 0.0
      %v868 = vmax.f32 %v719, 0.0
      %v869 = vmax.f32 %v721, 0.0
      %v870 = vmax.f32 %v724, 0.0
      %v871 = vmax.f32 %v726, 0.0
      %v872 = vmax.f32 %v729, 0.0
      %v873 = vmax.f32 %v731, 0.0
      %v874 = vmax.f32 %v734, 0.0
      %v875 = vmax.f32 %v736, 0.0
      %v876 = vmax.f32 %v739, 0.0
      %v877 = vmax.f32 %v741, 0.0
      %v878 = vmax.f32 %v744, 0.0
      %v879 = vmax.f32 %v746, 0.0
      %v880 = vmax.f32 %v749, 0.0
      %v881 = vmax.f32 %v751, 0.0
      %v882 = vmax.f32 %v754, 0.0
      %v883 = vmax.f32 %v756, 0.0
      %v884 = vmax.f32 %v759, 0.0
      %v885 = vmax.f32 %v761, 0.0
      %v886 = vmax.f32 %v764, 0.0
      %v887 = vmax.f32 %v766, 0.0
      %v888 = vmax.f32 %v769, 0.0
      %v889 = vmax.f32 %v771, 0.0
      %v890 = vmax.f32 %v774, 0.0
      %v891 = vmax.f32 %v776, 0.0
      %v892 = vmax.f32 %v779, 0.0
      %v893 = vmax.f32 %v781, 0.0
      %v894 = vmax.f32 %v784, 0.0
      %v895 = vmax.f32 %v786, 0.0
      %v896 = vmax.f32 %v789, 0.0
      %v897 = vmax.f32 %v791, 0.0
      %v898 = vmax.f32 %v794, 0.0
      %v899 = vmax.f32 %v796, 0.0
      %v900 = vmax.f32 %v799, 0.0
      %v901 = vmax.f32 %v801, 0.0
      %v902 = vmax.f32 %v804, 0.0
      %v903 = vmax.f32 %v806, 0.0
      %v904 = vmax.f32 %v809, 0.0
      %v905 = vmax.f32 %v811, 0.0
      %v906 = vmax.f32 %v814, 0.0
      %v907 = vmax.f32 %v816, 0.0
      %v908 = vmax.f32 %v819, 0.0
      %v909 = vmax.f32 %v821, 0.0
      %v910 = vmax.f32 %v824, 0.0
      %v911 = vmax.f32 %v826, 0.0
      %v912 = vmax.f32 %v829, 0.0
      %v913 = vpack.c.bf16 %v832, %v832
      %v914 = vpack.c.bf16 %v833, %v833
      %v915 = vpack.c.bf16 %v834, %v834
      %v916 = vpack.c.bf16 %v835, %v835
      %v917 = vpack.c.bf16 %v836, %v836
      %v918 = vpack.c.bf16 %v837, %v837
      %v919 = vpack.c.bf16 %v838, %v838
      %v920 = vpack.c.bf16 %v839, %v839
      %v921 = vpack.c.bf16 %v840, %v840
      %v922 = vpack.c.bf16 %v841, %v841
      %v923 = vpack.c.bf16 %v842, %v842
      %v924 = vpack.c.bf16 %v843, %v843
      %v925 = vpack.c.bf16 %v844, %v844
      %v926 = vpack.c.bf16 %v845, %v845
      %v927 = vpack.c.bf16 %v846, %v846
      %v928 = vpack.c.bf16 %v847, %v847
      %v929 = vpack.c.bf16 %v848, %v848
      %v930 = vpack.c.bf16 %v849, %v849
      %v931 = vpack.c.bf16 %v850, %v850
      %v932 = vpack.c.bf16 %v851, %v851
      %v933 = vpack.c.bf16 %v852, %v852
      %v934 = vpack.c.bf16 %v853, %v853
      %v935 = vpack.c.bf16 %v854, %v854
      %v936 = vpack.c.bf16 %v855, %v855
      %v937 = vpack.c.bf16 %v856, %v856
      %v938 = vpack.c.bf16 %v857, %v857
      %v939 = vpack.c.bf16 %v858, %v858
      %v940 = vpack.c.bf16 %v859, %v859
      %v941 = vpack.c.bf16 %v860, %v860
      %v942 = vpack.c.bf16 %v861, %v861
      %v943 = vpack.c.bf16 %v862, %v862
      %v944 = vpack.c.bf16 %v863, %v863
      %v945 = vpack.c.bf16 %v864, %v864
      %v946 = vpack.c.bf16 %v865, %v865
      %v947 = vpack.c.bf16 %v866, %v866
      %v948 = vpack.c.bf16 %v867, %v867
      %v949 = vpack.c.bf16 %v868, %v868
      %v950 = vpack.c.bf16 %v869, %v869
      %v951 = vpack.c.bf16 %v870, %v870
      %v952 = vpack.c.bf16 %v871, %v871
      %v953 = vpack.c.bf16 %v872, %v872
      %v954 = vpack.c.bf16 %v873, %v873
      %v955 = vpack.c.bf16 %v874, %v874
      %v956 = vpack.c.bf16 %v875, %v875
      %v957 = vpack.c.bf16 %v876, %v876
      %v958 = vpack.c.bf16 %v877, %v877
      %v959 = vpack.c.bf16 %v878, %v878
      %v960 = vpack.c.bf16 %v879, %v879
      %v961 = vpack.c.bf16 %v880, %v880
      %v962 = vpack.c.bf16 %v881, %v881
      %v963 = vpack.c.bf16 %v882, %v882
      %v964 = vpack.c.bf16 %v883, %v883
      %v965 = vpack.c.bf16 %v884, %v884
      %v966 = vpack.c.bf16 %v885, %v885
      %v967 = vpack.c.bf16 %v886, %v886
      %v968 = vpack.c.bf16 %v887, %v887
      %v969 = vpack.c.bf16 %v888, %v888
      %v970 = vpack.c.bf16 %v889, %v889
      %v971 = vpack.c.bf16 %v890, %v890
      %v972 = vpack.c.bf16 %v891, %v891
      %v973 = vpack.c.bf16 %v892, %v892
      %v974 = vpack.c.bf16 %v893, %v893
      %v975 = vpack.c.bf16 %v894, %v894
      %v976 = vpack.c.bf16 %v895, %v895
      %v977 = vpack.c.bf16 %v896, %v896
      %v978 = vpack.c.bf16 %v897, %v897
      %v979 = vpack.c.bf16 %v898, %v898
      %v980 = vpack.c.bf16 %v899, %v899
      %v981 = vpack.c.bf16 %v900, %v900
      %v982 = vpack.c.bf16 %v901, %v901
      %v983 = vpack.c.bf16 %v902, %v902
      %v984 = vpack.c.bf16 %v903, %v903
      %v985 = vpack.c.bf16 %v904, %v904
      %v986 = vpack.c.bf16 %v905, %v905
      %v987 = vpack.c.bf16 %v906, %v906
      %v988 = vpack.c.bf16 %v907, %v907
      %v989 = vpack.c.bf16 %v908, %v908
      %v990 = vpack.c.bf16 %v909, %v909
      %v991 = vpack.c.bf16 %v910, %v910
      %v992 = vpack.c.bf16 %v911, %v911
      %v993 = vpack.c.bf16 %v912, %v912
      %vm994 = vcmask 257024
      %995 = vst.msk [vmem:[%s172] sm:$0xf] %vm994, %v913
      %996 = vst.msk [vmem:[%s172 + $0x4] sm:$0xf] %vm994, %v914
      %997 = vst.msk [vmem:[%s172 + $0x8] sm:$0xf] %vm994, %v915
      %998 = vst.msk [vmem:[%s172 + $0xc] sm:$0xf] %vm994, %v916
      %999 = vst.msk [vmem:[%s172 + $0x10] sm:$0xf] %vm994, %v917
      %1000 = vst.msk [vmem:[%s172 + $0x14] sm:$0xf] %vm994, %v918
      %1001 = vst.msk [vmem:[%s172 + $0x18] sm:$0xf] %vm994, %v919
      %1002 = vst.msk [vmem:[%s172 + $0x1c] sm:$0xf] %vm994, %v920
      %1003 = vst.msk [vmem:[%s172 + $0x20] sm:$0xf] %vm994, %v921
      %1004 = vst.msk [vmem:[%s172 + $0x24] sm:$0xf] %vm994, %v922
      %1005 = vst.msk [vmem:[%s172 + $0x28] sm:$0xf] %vm994, %v923
      %1006 = vst.msk [vmem:[%s172 + $0x2c] sm:$0xf] %vm994, %v924
      %1007 = vst.msk [vmem:[%s172 + $0x30] sm:$0xf] %vm994, %v925
      %1008 = vst.msk [vmem:[%s172 + $0x34] sm:$0xf] %vm994, %v926
      %1009 = vst.msk [vmem:[%s172 + $0x38] sm:$0xf] %vm994, %v927
      %1010 = vst.msk [vmem:[%s172 + $0x3c] sm:$0xf] %vm994, %v928
      %1011 = vst.msk [vmem:[%s172 + $0x40] sm:$0xf] %vm994, %v929
      %1012 = vst.msk [vmem:[%s172 + $0x44] sm:$0xf] %vm994, %v930
      %1013 = vst.msk [vmem:[%s172 + $0x48] sm:$0xf] %vm994, %v931
      %1014 = vst.msk [vmem:[%s172 + $0x4c] sm:$0xf] %vm994, %v932
      %1015 = vst.msk [vmem:[%s172 + $0x50] sm:$0xf] %vm994, %v933
      %1016 = vst.msk [vmem:[%s172 + $0x54] sm:$0xf] %vm994, %v934
      %1017 = vst.msk [vmem:[%s172 + $0x58] sm:$0xf] %vm994, %v935
      %1018 = vst.msk [vmem:[%s172 + $0x5c] sm:$0xf] %vm994, %v936
      %1019 = vst.msk [vmem:[%s172 + $0x60] sm:$0xf] %vm994, %v937
      %1020 = vst.msk [vmem:[%s172 + $0x64] sm:$0xf] %vm994, %v938
      %1021 = vst.msk [vmem:[%s172 + $0x68] sm:$0xf] %vm994, %v939
      %1022 = vst.msk [vmem:[%s172 + $0x6c] sm:$0xf] %vm994, %v940
      %1023 = vst.msk [vmem:[%s172 + $0x70] sm:$0xf] %vm994, %v941
      %1024 = vst.msk [vmem:[%s172 + $0x74] sm:$0xf] %vm994, %v942
      %1025 = vst.msk [vmem:[%s172 + $0x78] sm:$0xf] %vm994, %v943
      %1026 = vst.msk [vmem:[%s172 + $0x7c] sm:$0xf] %vm994, %v944
      %1027 = vst.msk [vmem:[%s172 + $0x80] sm:$0xf] %vm994, %v945
      %1028 = vst.msk [vmem:[%s172 + $0x84] sm:$0xf] %vm994, %v946
      %1029 = vst.msk [vmem:[%s172 + $0x88] sm:$0xf] %vm994, %v947
      %1030 = vst.msk [vmem:[%s172 + $0x8c] sm:$0xf] %vm994, %v948
      %1031 = vst.msk [vmem:[%s172 + $0x90] sm:$0xf] %vm994, %v949
      %1032 = vst.msk [vmem:[%s172 + $0x94] sm:$0xf] %vm994, %v950
      %1033 = vst.msk [vmem:[%s172 + $0x98] sm:$0xf] %vm994, %v951
      %1034 = vst.msk [vmem:[%s172 + $0x9c] sm:$0xf] %vm994, %v952
      %1035 = vst.msk [vmem:[%s172 + $0xa0] sm:$0xf] %vm994, %v953
      %1036 = vst.msk [vmem:[%s172 + $0xa4] sm:$0xf] %vm994, %v954
      %1037 = vst.msk [vmem:[%s172 + $0xa8] sm:$0xf] %vm994, %v955
      %1038 = vst.msk [vmem:[%s172 + $0xac] sm:$0xf] %vm994, %v956
      %1039 = vst.msk [vmem:[%s172 + $0xb0] sm:$0xf] %vm994, %v957
      %1040 = vst.msk [vmem:[%s172 + $0xb4] sm:$0xf] %vm994, %v958
      %1041 = vst.msk [vmem:[%s172 + $0xb8] sm:$0xf] %vm994, %v959
      %1042 = vst.msk [vmem:[%s172 + $0xbc] sm:$0xf] %vm994, %v960
      %1043 = vst.msk [vmem:[%s172 + $0xc0] sm:$0xf] %vm994, %v961
      %1044 = vst.msk [vmem:[%s172 + $0xc4] sm:$0xf] %vm994, %v962
      %1045 = vst.msk [vmem:[%s172 + $0xc8] sm:$0xf] %vm994, %v963
      %1046 = vst.msk [vmem:[%s172 + $0xcc] sm:$0xf] %vm994, %v964
      %1047 = vst.msk [vmem:[%s172 + $0xd0] sm:$0xf] %vm994, %v965
      %1048 = vst.msk [vmem:[%s172 + $0xd4] sm:$0xf] %vm994, %v966
      %1049 = vst.msk [vmem:[%s172 + $0xd8] sm:$0xf] %vm994, %v967
      %1050 = vst.msk [vmem:[%s172 + $0xdc] sm:$0xf] %vm994, %v968
      %1051 = vst.msk [vmem:[%s172 + $0xe0] sm:$0xf] %vm994, %v969
      %1052 = vst.msk [vmem:[%s172 + $0xe4] sm:$0xf] %vm994, %v970
      %1053 = vst.msk [vmem:[%s172 + $0xe8] sm:$0xf] %vm994, %v971
      %1054 = vst.msk [vmem:[%s172 + $0xec] sm:$0xf] %vm994, %v972
      %1055 = vst.msk [vmem:[%s172 + $0xf0] sm:$0xf] %vm994, %v973
      %1056 = vst.msk [vmem:[%s172 + $0xf4] sm:$0xf] %vm994, %v974
      %1057 = vst.msk [vmem:[%s172 + $0xf8] sm:$0xf] %vm994, %v975
      %1058 = vst.msk [vmem:[%s172 + $0xfc] sm:$0xf] %vm994, %v976
      %1059 = vst.msk [vmem:[%s172 + $0x100] sm:$0xf] %vm994, %v977
      %1060 = vst.msk [vmem:[%s172 + $0x104] sm:$0xf] %vm994, %v978
      %1061 = vst.msk [vmem:[%s172 + $0x108] sm:$0xf] %vm994, %v979
      %1062 = vst.msk [vmem:[%s172 + $0x10c] sm:$0xf] %vm994, %v980
      %1063 = vst.msk [vmem:[%s172 + $0x110] sm:$0xf] %vm994, %v981
      %1064 = vst.msk [vmem:[%s172 + $0x114] sm:$0xf] %vm994, %v982
      %1065 = vst.msk [vmem:[%s172 + $0x118] sm:$0xf] %vm994, %v983
      %1066 = vst.msk [vmem:[%s172 + $0x11c] sm:$0xf] %vm994, %v984
      %1067 = vst.msk [vmem:[%s172 + $0x120] sm:$0xf] %vm994, %v985
      %1068 = vst.msk [vmem:[%s172 + $0x124] sm:$0xf] %vm994, %v986
      %1069 = vst.msk [vmem:[%s172 + $0x128] sm:$0xf] %vm994, %v987
      %1070 = vst.msk [vmem:[%s172 + $0x12c] sm:$0xf] %vm994, %v988
      %1071 = vst.msk [vmem:[%s172 + $0x130] sm:$0xf] %vm994, %v989
      %1072 = vst.msk [vmem:[%s172 + $0x134] sm:$0xf] %vm994, %v990
      %1073 = vst.msk [vmem:[%s172 + $0x138] sm:$0xf] %vm994, %v991
      %1074 = vst.msk [vmem:[%s172 + $0x13c] sm:$0xf] %vm994, %v992
      %1075 = vst.msk [vmem:[%s172 + $0x140] sm:$0xf] %vm994, %v993
      %s1076 = smul.u32 81, %s14
      %p1077 = scmp.lt.s32.totalorder %s1076, 242
      %s1078 = scalar_select %p1077, %s1076, 242
      %s1079 = smul.addr %s1078, 4
      %s1080 = scalar_lea.vmem %s3, %s1079
      // Predicated region
      $region33: #{triplet_forward.2} parent=31 // pred_check
        %p1081 = pneg %p100
      $region34: #{triplet_forward.2} parent=31 // pred_check_branch
        %1083 = sbr.rel (%p1081) target = $region36
      $region35: #{triplet_forward.2} parent=31 // pred_region
        %s1084 = smul.u32 81, %s14
      $region36: #{triplet_forward.2} parent=31 // pred_fallthru
        _
    $region32: #{triplet_forward.2} parent=5 // pred_fallthru
      _
    %p1085 = scmp.le.s32.totalorder 2, %s9
    // Predicated region
    $region37: #{triplet_forward.2} parent=5 // pred_check
      %p1086 = pneg %p1085
    $region38: #{triplet_forward.2} parent=5 // pred_check_branch
      %1088 = sbr.rel (%p1086) target = $region40
    $region39: #{triplet_forward.2} parent=5 // pred_region
      %s1089 = ssub.s32 %s9, 2
      // Predicated region
      $region41: #{triplet_forward.2} parent=39 // pred_check
        %p1090 = pneg %p106
      $region42: #{triplet_forward.2} parent=39 // pred_check_branch
        %1092 = sbr.rel (%p1090) target = $region44
      $region43: #{triplet_forward.2} parent=39 // pred_region
        %s1093 = smul.u32 81, %s15
        %p1094 = scmp.lt.s32.totalorder %s1093, 242
        %s1095 = scalar_select %p1094, %s1093, 242
        %s1096 = smul.addr %s1095, 4
        %s1097 = scalar_lea.vmem %s3, %s1096
      $region44: #{triplet_forward.2} parent=39 // pred_fallthru
        _
    $region40: #{triplet_forward.2} parent=5 // pred_fallthru
      _
  $region6: #{triplet_forward.2} parent=0 // loop_footer
    %s13 = sadd.s32 1, %s9
  $region7: #{triplet_forward.2} parent=0 // loop_footer_branch
    %8 = sbr.rel target = $region3
  $region8: #{triplet_forward.2} parent=0 // loop_exit
    _

// kernel: triplet_forward.3
$region0: #{triplet_forward.3}
  #allocation0 [shape = 'u32[]', space=smem, size = 0x4, offset = 0x4, fixed_abs, tag = 'smem constant byte address 0x4 - core index']
  #allocation1 [shape = 'u32[72,128]{1,0:T(1,128)}', space=vmem, size = 0x9000, scoped, tag = 'internal scratch']
  #allocation2 [shape = 'bf16[200,64]{1,0:T(8,128)(2,1)}', space=vmem, size = 0xc800, scoped, tag = 'scratch operand']
  %s0 = inlined_call_operand.vmem [shape: bf16[200,1152], index: 0, kind: input, shape index: {}]
  %s1 = inlined_call_operand.vmem [shape: bf16[1152,64], index: 1, kind: input, shape index: {}]
  %s2 = inlined_call_operand.vmem [shape: f32[1,64], index: 2, kind: input, shape index: {}]
  %s3 = inlined_call_operand.vmem [shape: bf16[25,64,128], index: 3, kind: input, shape index: {}]
  %s4 = inlined_call_operand.vmem [shape: f32[1,128], index: 4, kind: input, shape index: {}]
  %s5 = inlined_call_operand.vmem [shape: f32[8,128], index: 5, kind: output, shape index: {}]
  %s6 = sld [smem:[#allocation0]]
  $region30: #{triplet_forward.3} parent=0
    _
  %s8 = ssub.s32 1, %s6
  %s9 = scalar_select 0, %s8, %s6
  // Predicated region
  $region2: #{triplet_forward.3} parent=0 // pred_check
    _
  $region3: #{triplet_forward.3} parent=0 // pred_check_branch
    %11 = sbr.rel (0) target = $region5
  $region4: #{triplet_forward.3} parent=0 // pred_region
    _
  $region5: #{triplet_forward.3} parent=0 // pred_fallthru
    _
  // Predicated region
  $region6: #{triplet_forward.3} parent=0 // pred_check
    _
  $region7: #{triplet_forward.3} parent=0 // pred_check_branch
    %13 = sbr.rel (0) target = $region9
  $region8: #{triplet_forward.3} parent=0 // pred_region
    _
  $region9: #{triplet_forward.3} parent=0 // pred_fallthru
    _
  // Predicated region
  $region10: #{triplet_forward.3} parent=0 // pred_check
    _
  $region11: #{triplet_forward.3} parent=0 // pred_check_branch
    %15 = sbr.rel (0) target = $region13
  $region12: #{triplet_forward.3} parent=0 // pred_region
    _
  $region13: #{triplet_forward.3} parent=0 // pred_fallthru
    _
  // Predicated region
  $region14: #{triplet_forward.3} parent=0 // pred_check
    _
  $region15: #{triplet_forward.3} parent=0 // pred_check_branch
    %17 = sbr.rel (0) target = $region17
  $region16: #{triplet_forward.3} parent=0 // pred_region
    _
  $region17: #{triplet_forward.3} parent=0 // pred_fallthru
    _
  // Predicated region
  $region18: #{triplet_forward.3} parent=0 // pred_check
    _
  $region19: #{triplet_forward.3} parent=0 // pred_check_branch
    %19 = sbr.rel (0) target = $region21
  $region20: #{triplet_forward.3} parent=0 // pred_region
    _
  $region21: #{triplet_forward.3} parent=0 // pred_fallthru
    _
  %v21 = vld [vmem:[%s0] sm:$0xff]
  %v22 = vld [vmem:[%s0 + $0x8] sm:$0xff]
  %v23 = vld [vmem:[%s0 + $0x10] sm:$0xff]
  %v24 = vld [vmem:[%s0 + $0x18] sm:$0xff]
  %v25 = vld [vmem:[%s0 + $0x20] sm:$0xf]
  %v26 = vld [vmem:[%s0 + $0x24] sm:$0xff]
  %v27 = vld [vmem:[%s0 + $0x2c] sm:$0xff]
  %v28 = vld [vmem:[%s0 + $0x34] sm:$0xff]
  %v29 = vld [vmem:[%s0 + $0x3c] sm:$0xff]
  %v30 = vld [vmem:[%s0 + $0x44] sm:$0xf]
  %v31 = vld [vmem:[%s0 + $0x48] sm:$0xff]
  %v32 = vld [vmem:[%s0 + $0x50] sm:$0xff]
  %v33 = vld [vmem:[%s0 + $0x58] sm:$0xff]
  %v34 = vld [vmem:[%s0 + $0x60] sm:$0xff]
  %v35 = vld [vmem:[%s0 + $0x68] sm:$0xf]
  %v36 = vld [vmem:[%s0 + $0x6c] sm:$0xff]
  %v37 = vld [vmem:[%s0 + $0x74] sm:$0xff]
  %v38 = vld [vmem:[%s0 + $0x7c] sm:$0xff]
  %v39 = vld [vmem:[%s0 + $0x84] sm:$0xff]
  %v40 = vld [vmem:[%s0 + $0x8c] sm:$0xf]
  %v41 = vld [vmem:[%s0 + $0x90] sm:$0xff]
  %v42 = vld [vmem:[%s0 + $0x98] sm:$0xff]
  %v43 = vld [vmem:[%s0 + $0xa0] sm:$0xff]
  %v44 = vld [vmem:[%s0 + $0xa8] sm:$0xff]
  %v45 = vld [vmem:[%s0 + $0xb0] sm:$0xf]
  %v46 = vld [vmem:[%s0 + $0xb4] sm:$0xff]
  %v47 = vld [vmem:[%s0 + $0xbc] sm:$0xff]
  %v48 = vld [vmem:[%s0 + $0xc4] sm:$0xff]
  %v49 = vld [vmem:[%s0 + $0xcc] sm:$0xff]
  %v50 = vld [vmem:[%s0 + $0xd4] sm:$0xf]
  %v51 = vld [vmem:[%s0 + $0xd8] sm:$0xff]
  %v52 = vld [vmem:[%s0 + $0xe0] sm:$0xff]
  %v53 = vld [vmem:[%s0 + $0xe8] sm:$0xff]
  %v54 = vld [vmem:[%s0 + $0xf0] sm:$0xff]
  %v55 = vld [vmem:[%s0 + $0xf8] sm:$0xf]
  %v56 = vld [vmem:[%s0 + $0xfc] sm:$0xff]
  %v57 = vld [vmem:[%s0 + $0x104] sm:$0xff]
  %v58 = vld [vmem:[%s0 + $0x10c] sm:$0xff]
  %v59 = vld [vmem:[%s0 + $0x114] sm:$0xff]
  %v60 = vld [vmem:[%s0 + $0x11c] sm:$0xf]
  %v61 = vld [vmem:[%s0 + $0x120] sm:$0xff]
  %v62 = vld [vmem:[%s0 + $0x128] sm:$0xff]
  %v63 = vld [vmem:[%s0 + $0x130] sm:$0xff]
  %v64 = vld [vmem:[%s0 + $0x138] sm:$0xff]
  %v65 = vld [vmem:[%s0 + $0x140] sm:$0xf]
  %v66 = vld [vmem:[%s0 + $0x144] sm:$0xff]
  %v67 = vld [vmem:[%s0 + $0x14c] sm:$0xff]
  %v68 = vld [vmem:[%s0 + $0x154] sm:$0xff]
  %v69 = vld [vmem:[%s0 + $0x15c] sm:$0xff]
  %v70 = vld [vmem:[%s0 + $0x164] sm:$0xf]
  %v71 = vld [vmem:[%s0 + $0x168] sm:$0xff]
  %v72 = vld [vmem:[%s0 + $0x170] sm:$0xff]
  %v73 = vld [vmem:[%s0 + $0x178] sm:$0xff]
  %v74 = vld [vmem:[%s0 + $0x180] sm:$0xff]
  %v75 = vld [vmem:[%s0 + $0x188] sm:$0xf]
  %v76 = vld [vmem:[%s0 + $0x18c] sm:$0xff]
  %v77 = vld [vmem:[%s0 + $0x194] sm:$0xff]
  %v78 = vld [vmem:[%s0 + $0x19c] sm:$0xff]
  %v79 = vld [vmem:[%s0 + $0x1a4] sm:$0xff]
  %v80 = vld [vmem:[%s0 + $0x1ac] sm:$0xf]
  %v81 = vld [vmem:[%s0 + $0x1b0] sm:$0xff]
  %v82 = vld [vmem:[%s0 + $0x1b8] sm:$0xff]
  %v83 = vld [vmem:[%s0 + $0x1c0] sm:$0xff]
  %v84 = vld [vmem:[%s0 + $0x1c8] sm:$0xff]
  %v85 = vld [vmem:[%s0 + $0x1d0] sm:$0xf]
  %v86 = vld [vmem:[%s0 + $0x1d4] sm:$0xff]
  %v87 = vld [vmem:[%s0 + $0x1dc] sm:$0xff]
  %v88 = vld [vmem:[%s0 + $0x1e4] sm:$0xff]
  %v89 = vld [vmem:[%s0 + $0x1ec] sm:$0xff]
  %v90 = vld [vmem:[%s0 + $0x1f4] sm:$0xf]
  %v91 = vld [vmem:[%s0 + $0x1f8] sm:$0xff]
  %v92 = vld [vmem:[%s0 + $0x200] sm:$0xff]
  %v93 = vld [vmem:[%s0 + $0x208] sm:$0xff]
  %v94 = vld [vmem:[%s0 + $0x210] sm:$0xff]
  %v95 = vld [vmem:[%s0 + $0x218] sm:$0xf]
  %v96 = vld [vmem:[%s0 + $0x21c] sm:$0xff]
  %v97 = vld [vmem:[%s0 + $0x224] sm:$0xff]
  %v98 = vld [vmem:[%s0 + $0x22c] sm:$0xff]
  %v99 = vld [vmem:[%s0 + $0x234] sm:$0xff]
  %v100 = vld [vmem:[%s0 + $0x23c] sm:$0xf]
  %v101 = vld [vmem:[%s0 + $0x240] sm:$0xff]
  %v102 = vld [vmem:[%s0 + $0x248] sm:$0xff]
  %v103 = vld [vmem:[%s0 + $0x250] sm:$0xff]
  %v104 = vld [vmem:[%s0 + $0x258] sm:$0xff]
  %v105 = vld [vmem:[%s0 + $0x260] sm:$0xf]
  %v106 = vld [vmem:[%s0 + $0x264] sm:$0xff]
  %v107 = vld [vmem:[%s0 + $0x26c] sm:$0xff]
  %v108 = vld [vmem:[%s0 + $0x274] sm:$0xff]
  %v109 = vld [vmem:[%s0 + $0x27c] sm:$0xff]
  %v110 = vld [vmem:[%s0 + $0x284] sm:$0xf]
  %v111 = vld [vmem:[%s0 + $0x288] sm:$0xff]
  %v112 = vld [vmem:[%s0 + $0x290] sm:$0xff]
  %v113 = vld [vmem:[%s0 + $0x298] sm:$0xff]
  %v114 = vld [vmem:[%s0 + $0x2a0] sm:$0xff]
  %v115 = vld [vmem:[%s0 + $0x2a8] sm:$0xf]
  %v116 = vld [vmem:[%s0 + $0x2ac] sm:$0xff]
  %v117 = vld [vmem:[%s0 + $0x2b4] sm:$0xff]
  %v118 = vld [vmem:[%s0 + $0x2bc] sm:$0xff]
  %v119 = vld [vmem:[%s0 + $0x2c4] sm:$0xff]
  %v120 = vld [vmem:[%s0 + $0x2cc] sm:$0xf]
  %v121 = vld [vmem:[%s0 + $0x2d0] sm:$0xff]
  %v122 = vld [vmem:[%s0 + $0x2d8] sm:$0xff]
  %v123 = vld [vmem:[%s0 + $0x2e0] sm:$0xff]
  %v124 = vld [vmem:[%s0 + $0x2e8] sm:$0xff]
  %v125 = vld [vmem:[%s0 + $0x2f0] sm:$0xf]
  %v126 = vld [vmem:[%s0 + $0x2f4] sm:$0xff]
  %v127 = vld [vmem:[%s0 + $0x2fc] sm:$0xff]
  %v128 = vld [vmem:[%s0 + $0x304] sm:$0xff]
  %v129 = vld [vmem:[%s0 + $0x30c] sm:$0xff]
  %v130 = vld [vmem:[%s0 + $0x314] sm:$0xf]
  %v131 = vld [vmem:[%s0 + $0x318] sm:$0xff]
  %v132 = vld [vmem:[%s0 + $0x320] sm:$0xff]
  %v133 = vld [vmem:[%s0 + $0x328] sm:$0xff]
  %v134 = vld [vmem:[%s0 + $0x330] sm:$0xff]
  %v135 = vld [vmem:[%s0 + $0x338] sm:$0xf]
  %v136 = vld [vmem:[%s0 + $0x33c] sm:$0xff]
  %v137 = vld [vmem:[%s0 + $0x344] sm:$0xff]
  %v138 = vld [vmem:[%s0 + $0x34c] sm:$0xff]
  %v139 = vld [vmem:[%s0 + $0x354] sm:$0xff]
  %v140 = vld [vmem:[%s0 + $0x35c] sm:$0xf]
  %v141 = vld [vmem:[%s0 + $0x360] sm:$0xff]
  %v142 = vld [vmem:[%s0 + $0x368] sm:$0xff]
  %v143 = vld [vmem:[%s0 + $0x370] sm:$0xff]
  %v144 = vld [vmem:[%s0 + $0x378] sm:$0xff]
  %v145 = vld [vmem:[%s0 + $0x380] sm:$0xf]
  %v146 = vld [vmem:[%s1] sm:$0xf]
  %v147 = vld [vmem:[%s1 + $0x4] sm:$0xf]
  %v148 = vld [vmem:[%s1 + $0x8] sm:$0xf]
  %v149 = vld [vmem:[%s1 + $0xc] sm:$0xf]
  %v150 = vld [vmem:[%s1 + $0x10] sm:$0xf]
  %v151 = vld [vmem:[%s1 + $0x14] sm:$0xf]
  %v152 = vld [vmem:[%s1 + $0x18] sm:$0xf]
  %v153 = vld [vmem:[%s1 + $0x1c] sm:$0xf]
  %v154 = vld [vmem:[%s1 + $0x20] sm:$0xf]
  %v155 = vld [vmem:[%s1 + $0x24] sm:$0xf]
  %v156 = vld [vmem:[%s1 + $0x28] sm:$0xf]
  %v157 = vld [vmem:[%s1 + $0x2c] sm:$0xf]
  %v158 = vld [vmem:[%s1 + $0x30] sm:$0xf]
  %v159 = vld [vmem:[%s1 + $0x34] sm:$0xf]
  %v160 = vld [vmem:[%s1 + $0x38] sm:$0xf]
  %v161 = vld [vmem:[%s1 + $0x3c] sm:$0xf]
  %v162 = vld [vmem:[%s1 + $0x40] sm:$0xf]
  %v163 = vld [vmem:[%s1 + $0x44] sm:$0xf]
  %v164 = vld [vmem:[%s1 + $0x48] sm:$0xf]
  %v165 = vld [vmem:[%s1 + $0x4c] sm:$0xf]
  %v166 = vld [vmem:[%s1 + $0x50] sm:$0xf]
  %v167 = vld [vmem:[%s1 + $0x54] sm:$0xf]
  %v168 = vld [vmem:[%s1 + $0x58] sm:$0xf]
  %v169 = vld [vmem:[%s1 + $0x5c] sm:$0xf]
  %v170 = vld [vmem:[%s1 + $0x60] sm:$0xf]
  %v171 = vld [vmem:[%s1 + $0x64] sm:$0xf]
  %v172 = vld [vmem:[%s1 + $0x68] sm:$0xf]
  %v173 = vld [vmem:[%s1 + $0x6c] sm:$0xf]
  %v174 = vld [vmem:[%s1 + $0x70] sm:$0xf]
  %v175 = vld [vmem:[%s1 + $0x74] sm:$0xf]
  %v176 = vld [vmem:[%s1 + $0x78] sm:$0xf]
  %v177 = vld [vmem:[%s1 + $0x7c] sm:$0xf]
  %v178 = vld [vmem:[%s1 + $0x80] sm:$0xf]
  %v179 = vld [vmem:[%s1 + $0x84] sm:$0xf]
  %v180 = vld [vmem:[%s1 + $0x88] sm:$0xf]
  %v181 = vld [vmem:[%s1 + $0x8c] sm:$0xf]
  %v182 = vld [vmem:[%s1 + $0x90] sm:$0xf]
  %v183 = vld [vmem:[%s1 + $0x94] sm:$0xf]
  %v184 = vld [vmem:[%s1 + $0x98] sm:$0xf]
  %v185 = vld [vmem:[%s1 + $0x9c] sm:$0xf]
  %v186 = vld [vmem:[%s1 + $0xa0] sm:$0xf]
  %v187 = vld [vmem:[%s1 + $0xa4] sm:$0xf]
  %v188 = vld [vmem:[%s1 + $0xa8] sm:$0xf]
  %v189 = vld [vmem:[%s1 + $0xac] sm:$0xf]
  %v190 = vld [vmem:[%s1 + $0xb0] sm:$0xf]
  %v191 = vld [vmem:[%s1 + $0xb4] sm:$0xf]
  %v192 = vld [vmem:[%s1 + $0xb8] sm:$0xf]
  %v193 = vld [vmem:[%s1 + $0xbc] sm:$0xf]
  %v194 = vld [vmem:[%s1 + $0xc0] sm:$0xf]
  %v195 = vld [vmem:[%s1 + $0xc4] sm:$0xf]
  %v196 = vld [vmem:[%s1 + $0xc8] sm:$0xf]
  %v197 = vld [vmem:[%s1 + $0xcc] sm:$0xf]
  %v198 = vld [vmem:[%s1 + $0xd0] sm:$0xf]
  %v199 = vld [vmem:[%s1 + $0xd4] sm:$0xf]
  %v200 = vld [vmem:[%s1 + $0xd8] sm:$0xf]
  %v201 = vld [vmem:[%s1 + $0xdc] sm:$0xf]
  %v202 = vld [vmem:[%s1 + $0xe0] sm:$0xf]
  %v203 = vld [vmem:[%s1 + $0xe4] sm:$0xf]
  %v204 = vld [vmem:[%s1 + $0xe8] sm:$0xf]
  %v205 = vld [vmem:[%s1 + $0xec] sm:$0xf]
  %v206 = vld [vmem:[%s1 + $0xf0] sm:$0xf]
  %v207 = vld [vmem:[%s1 + $0xf4] sm:$0xf]
  %v208 = vld [vmem:[%s1 + $0xf8] sm:$0xf]
  %v209 = vld [vmem:[%s1 + $0xfc] sm:$0xf]
  %v210 = vld [vmem:[%s1 + $0x100] sm:$0xf]
  %v211 = vld [vmem:[%s1 + $0x104] sm:$0xf]
  %v212 = vld [vmem:[%s1 + $0x108] sm:$0xf]
  %v213 = vld [vmem:[%s1 + $0x10c] sm:$0xf]
  %v214 = vld [vmem:[%s1 + $0x110] sm:$0xf]
  %v215 = vld [vmem:[%s1 + $0x114] sm:$0xf]
  %v216 = vld [vmem:[%s1 + $0x118] sm:$0xf]
  %v217 = vld [vmem:[%s1 + $0x11c] sm:$0xf]
  %v218 = vld [vmem:[%s1 + $0x120] sm:$0xf]
  %v219 = vld [vmem:[%s1 + $0x124] sm:$0xf]
  %v220 = vld [vmem:[%s1 + $0x128] sm:$0xf]
  %v221 = vld [vmem:[%s1 + $0x12c] sm:$0xf]
  %v222 = vld [vmem:[%s1 + $0x130] sm:$0xf]
  %v223 = vld [vmem:[%s1 + $0x134] sm:$0xf]
  %v224 = vld [vmem:[%s1 + $0x138] sm:$0xf]
  %v225 = vld [vmem:[%s1 + $0x13c] sm:$0xf]
  %v226 = vld [vmem:[%s1 + $0x140] sm:$0xf]
  %v227 = vld [vmem:[%s1 + $0x144] sm:$0xf]
  %v228 = vld [vmem:[%s1 + $0x148] sm:$0xf]
  %v229 = vld [vmem:[%s1 + $0x14c] sm:$0xf]
  %v230 = vld [vmem:[%s1 + $0x150] sm:$0xf]
  %v231 = vld [vmem:[%s1 + $0x154] sm:$0xf]
  %v232 = vld [vmem:[%s1 + $0x158] sm:$0xf]
  %v233 = vld [vmem:[%s1 + $0x15c] sm:$0xf]
  %v234 = vld [vmem:[%s1 + $0x160] sm:$0xf]
  %v235 = vld [vmem:[%s1 + $0x164] sm:$0xf]
  %v236 = vld [vmem:[%s1 + $0x168] sm:$0xf]
  %v237 = vld [vmem:[%s1 + $0x16c] sm:$0xf]
  %v238 = vld [vmem:[%s1 + $0x170] sm:$0xf]
  %v239 = vld [vmem:[%s1 + $0x174] sm:$0xf]
  %v240 = vld [vmem:[%s1 + $0x178] sm:$0xf]
  %v241 = vld [vmem:[%s1 + $0x17c] sm:$0xf]
  %v242 = vld [vmem:[%s1 + $0x180] sm:$0xf]
  %v243 = vld [vmem:[%s1 + $0x184] sm:$0xf]
  %v244 = vld [vmem:[%s1 + $0x188] sm:$0xf]
  %v245 = vld [vmem:[%s1 + $0x18c] sm:$0xf]
  %v246 = vld [vmem:[%s1 + $0x190] sm:$0xf]
  %v247 = vld [vmem:[%s1 + $0x194] sm:$0xf]
  %v248 = vld [vmem:[%s1 + $0x198] sm:$0xf]
  %v249 = vld [vmem:[%s1 + $0x19c] sm:$0xf]
  %v250 = vld [vmem:[%s1 + $0x1a0] sm:$0xf]
  %v251 = vld [vmem:[%s1 + $0x1a4] sm:$0xf]
  %v252 = vld [vmem:[%s1 + $0x1a8] sm:$0xf]
  %v253 = vld [vmem:[%s1 + $0x1ac] sm:$0xf]
  %v254 = vld [vmem:[%s1 + $0x1b0] sm:$0xf]
  %v255 = vld [vmem:[%s1 + $0x1b4] sm:$0xf]
  %v256 = vld [vmem:[%s1 + $0x1b8] sm:$0xf]
  %v257 = vld [vmem:[%s1 + $0x1bc] sm:$0xf]
  %v258 = vld [vmem:[%s1 + $0x1c0] sm:$0xf]
  %v259 = vld [vmem:[%s1 + $0x1c4] sm:$0xf]
  %v260 = vld [vmem:[%s1 + $0x1c8] sm:$0xf]
  %v261 = vld [vmem:[%s1 + $0x1cc] sm:$0xf]
  %v262 = vld [vmem:[%s1 + $0x1d0] sm:$0xf]
  %v263 = vld [vmem:[%s1 + $0x1d4] sm:$0xf]
  %v264 = vld [vmem:[%s1 + $0x1d8] sm:$0xf]
  %v265 = vld [vmem:[%s1 + $0x1dc] sm:$0xf]
  %v266 = vld [vmem:[%s1 + $0x1e0] sm:$0xf]
  %v267 = vld [vmem:[%s1 + $0x1e4] sm:$0xf]
  %v268 = vld [vmem:[%s1 + $0x1e8] sm:$0xf]
  %v269 = vld [vmem:[%s1 + $0x1ec] sm:$0xf]
  %v270 = vld [vmem:[%s1 + $0x1f0] sm:$0xf]
  %v271 = vld [vmem:[%s1 + $0x1f4] sm:$0xf]
  %v272 = vld [vmem:[%s1 + $0x1f8] sm:$0xf]
  %v273 = vld [vmem:[%s1 + $0x1fc] sm:$0xf]
  %v274 = vld [vmem:[%s1 + $0x200] sm:$0xf]
  %v275 = vld [vmem:[%s1 + $0x204] sm:$0xf]
  %v276 = vld [vmem:[%s1 + $0x208] sm:$0xf]
  %v277 = vld [vmem:[%s1 + $0x20c] sm:$0xf]
  %v278 = vld [vmem:[%s1 + $0x210] sm:$0xf]
  %v279 = vld [vmem:[%s1 + $0x214] sm:$0xf]
  %v280 = vld [vmem:[%s1 + $0x218] sm:$0xf]
  %v281 = vld [vmem:[%s1 + $0x21c] sm:$0xf]
  %v282 = vld [vmem:[%s1 + $0x220] sm:$0xf]
  %v283 = vld [vmem:[%s1 + $0x224] sm:$0xf]
  %v284 = vld [vmem:[%s1 + $0x228] sm:$0xf]
  %v285 = vld [vmem:[%s1 + $0x22c] sm:$0xf]
  %v286 = vld [vmem:[%s1 + $0x230] sm:$0xf]
  %v287 = vld [vmem:[%s1 + $0x234] sm:$0xf]
  %v288 = vld [vmem:[%s1 + $0x238] sm:$0xf]
  %v289 = vld [vmem:[%s1 + $0x23c] sm:$0xf]
  %v290 = vld [vmem:[%s2] sm:$0x1]
  %v292 = vperm.slane %v290, 0
  %v419 = vunpack.c.l.b16 %v21
  %v420 = vunpack.c.h.b16 %v21
  %v421 = vunpack.c.l.b16 %v22
  %v422 = vunpack.c.h.b16 %v22
  %v423 = vunpack.c.l.b16 %v23
  %v424 = vunpack.c.h.b16 %v23
  %v425 = vunpack.c.l.b16 %v24
  %v426 = vunpack.c.h.b16 %v24
  %v427 = vunpack.c.l.b16 %v25
  %v428 = vunpack.c.l.b16 %v26
  %v429 = vunpack.c.h.b16 %v26
  %v430 = vunpack.c.l.b16 %v27
  %v431 = vunpack.c.h.b16 %v27
  %v432 = vunpack.c.l.b16 %v28
  %v433 = vunpack.c.h.b16 %v28
  %v434 = vunpack.c.l.b16 %v29
  %v435 = vunpack.c.h.b16 %v29
  %v436 = vunpack.c.l.b16 %v30
  %v437 = vunpack.c.l.b16 %v31
  %v438 = vunpack.c.h.b16 %v31
  %v439 = vunpack.c.l.b16 %v32
  %v440 = vunpack.c.h.b16 %v32
  %v441 = vunpack.c.l.b16 %v33
  %v442 = vunpack.c.h.b16 %v33
  %v443 = vunpack.c.l.b16 %v34
  %v444 = vunpack.c.h.b16 %v34
  %v445 = vunpack.c.l.b16 %v35
  %v446 = vunpack.c.l.b16 %v36
  %v447 = vunpack.c.h.b16 %v36
  %v448 = vunpack.c.l.b16 %v37
  %v449 = vunpack.c.h.b16 %v37
  %v450 = vunpack.c.l.b16 %v38
  %v451 = vunpack.c.h.b16 %v38
  %v452 = vunpack.c.l.b16 %v39
  %v453 = vunpack.c.h.b16 %v39
  %v454 = vunpack.c.l.b16 %v40
  %v455 = vunpack.c.l.b16 %v41
  %v456 = vunpack.c.h.b16 %v41
  %v457 = vunpack.c.l.b16 %v42
  %v458 = vunpack.c.h.b16 %v42
  %v459 = vunpack.c.l.b16 %v43
  %v460 = vunpack.c.h.b16 %v43
  %v461 = vunpack.c.l.b16 %v44
  %v462 = vunpack.c.h.b16 %v44
  %v463 = vunpack.c.l.b16 %v45
  %v464 = vunpack.c.l.b16 %v46
  %v465 = vunpack.c.h.b16 %v46
  %v466 = vunpack.c.l.b16 %v47
  %v467 = vunpack.c.h.b16 %v47
  %v468 = vunpack.c.l.b16 %v48
  %v469 = vunpack.c.h.b16 %v48
  %v470 = vunpack.c.l.b16 %v49
  %v471 = vunpack.c.h.b16 %v49
  %v472 = vunpack.c.l.b16 %v50
  %v473 = vunpack.c.l.b16 %v51
  %v474 = vunpack.c.h.b16 %v51
  %v475 = vunpack.c.l.b16 %v52
  %v476 = vunpack.c.h.b16 %v52
  %v477 = vunpack.c.l.b16 %v53
  %v478 = vunpack.c.h.b16 %v53
  %v479 = vunpack.c.l.b16 %v54
  %v480 = vunpack.c.h.b16 %v54
  %v481 = vunpack.c.l.b16 %v55
  %v482 = vunpack.c.l.b16 %v56
  %v483 = vunpack.c.h.b16 %v56
  %v484 = vunpack.c.l.b16 %v57
  %v485 = vunpack.c.h.b16 %v57
  %v486 = vunpack.c.l.b16 %v58
  %v487 = vunpack.c.h.b16 %v58
  %v488 = vunpack.c.l.b16 %v59
  %v489 = vunpack.c.h.b16 %v59
  %v490 = vunpack.c.l.b16 %v60
  %v491 = vunpack.c.l.b16 %v61
  %v492 = vunpack.c.h.b16 %v61
  %v493 = vunpack.c.l.b16 %v62
  %v494 = vunpack.c.h.b16 %v62
  %v495 = vunpack.c.l.b16 %v63
  %v496 = vunpack.c.h.b16 %v63
  %v497 = vunpack.c.l.b16 %v64
  %v498 = vunpack.c.h.b16 %v64
  %v499 = vunpack.c.l.b16 %v65
  %v500 = vunpack.c.l.b16 %v66
  %v501 = vunpack.c.h.b16 %v66
  %v502 = vunpack.c.l.b16 %v67
  %v503 = vunpack.c.h.b16 %v67
  %v504 = vunpack.c.l.b16 %v68
  %v505 = vunpack.c.h.b16 %v68
  %v506 = vunpack.c.l.b16 %v69
  %v507 = vunpack.c.h.b16 %v69
  %v508 = vunpack.c.l.b16 %v70
  %v509 = vunpack.c.l.b16 %v71
  %v510 = vunpack.c.h.b16 %v71
  %v511 = vunpack.c.l.b16 %v72
  %v512 = vunpack.c.h.b16 %v72
  %v513 = vunpack.c.l.b16 %v73
  %v514 = vunpack.c.h.b16 %v73
  %v515 = vunpack.c.l.b16 %v74
  %v516 = vunpack.c.h.b16 %v74
  %v517 = vunpack.c.l.b16 %v75
  %v518 = vunpack.c.l.b16 %v76
  %v519 = vunpack.c.h.b16 %v76
  %v520 = vunpack.c.l.b16 %v77
  %v521 = vunpack.c.h.b16 %v77
  %v522 = vunpack.c.l.b16 %v78
  %v523 = vunpack.c.h.b16 %v78
  %v524 = vunpack.c.l.b16 %v79
  %v525 = vunpack.c.h.b16 %v79
  %v526 = vunpack.c.l.b16 %v80
  %v527 = vunpack.c.l.b16 %v81
  %v528 = vunpack.c.h.b16 %v81
  %v529 = vunpack.c.l.b16 %v82
  %v530 = vunpack.c.h.b16 %v82
  %v531 = vunpack.c.l.b16 %v83
  %v532 = vunpack.c.h.b16 %v83
  %v533 = vunpack.c.l.b16 %v84
  %v534 = vunpack.c.h.b16 %v84
  %v535 = vunpack.c.l.b16 %v85
  %v536 = vunpack.c.l.b16 %v86
  %v537 = vunpack.c.h.b16 %v86
  %v538 = vunpack.c.l.b16 %v87
  %v539 = vunpack.c.h.b16 %v87
  %v540 = vunpack.c.l.b16 %v88
  %v541 = vunpack.c.h.b16 %v88
  %v542 = vunpack.c.l.b16 %v89
  %v543 = vunpack.c.h.b16 %v89
  %v544 = vunpack.c.l.b16 %v90
  %v545 = vunpack.c.l.b16 %v91
  %v546 = vunpack.c.h.b16 %v91
  %v547 = vunpack.c.l.b16 %v92
  %v548 = vunpack.c.h.b16 %v92
  %v549 = vunpack.c.l.b16 %v93
  %v550 = vunpack.c.h.b16 %v93
  %v551 = vunpack.c.l.b16 %v94
  %v552 = vunpack.c.h.b16 %v94
  %v553 = vunpack.c.l.b16 %v95
  %v554 = vunpack.c.l.b16 %v96
  %v555 = vunpack.c.h.b16 %v96
  %v556 = vunpack.c.l.b16 %v97
  %v557 = vunpack.c.h.b16 %v97
  %v558 = vunpack.c.l.b16 %v98
  %v559 = vunpack.c.h.b16 %v98
  %v560 = vunpack.c.l.b16 %v99
  %v561 = vunpack.c.h.b16 %v99
  %v562 = vunpack.c.l.b16 %v100
  %v563 = vunpack.c.l.b16 %v101
  %v564 = vunpack.c.h.b16 %v101
  %v565 = vunpack.c.l.b16 %v102
  %v566 = vunpack.c.h.b16 %v102
  %v567 = vunpack.c.l.b16 %v103
  %v568 = vunpack.c.h.b16 %v103
  %v569 = vunpack.c.l.b16 %v104
  %v570 = vunpack.c.h.b16 %v104
  %v571 = vunpack.c.l.b16 %v105
  %v572 = vunpack.c.l.b16 %v106
  %v573 = vunpack.c.h.b16 %v106
  %v574 = vunpack.c.l.b16 %v107
  %v575 = vunpack.c.h.b16 %v107
  %v576 = vunpack.c.l.b16 %v108
  %v577 = vunpack.c.h.b16 %v108
  %v578 = vunpack.c.l.b16 %v109
  %v579 = vunpack.c.h.b16 %v109
  %v580 = vunpack.c.l.b16 %v110
  %v581 = vunpack.c.l.b16 %v111
  %v582 = vunpack.c.h.b16 %v111
  %v583 = vunpack.c.l.b16 %v112
  %v584 = vunpack.c.h.b16 %v112
  %v585 = vunpack.c.l.b16 %v113
  %v586 = vunpack.c.h.b16 %v113
  %v587 = vunpack.c.l.b16 %v114
  %v588 = vunpack.c.h.b16 %v114
  %v589 = vunpack.c.l.b16 %v115
  %v590 = vunpack.c.l.b16 %v116
  %v591 = vunpack.c.h.b16 %v116
  %v592 = vunpack.c.l.b16 %v117
  %v593 = vunpack.c.h.b16 %v117
  %v594 = vunpack.c.l.b16 %v118
  %v595 = vunpack.c.h.b16 %v118
  %v596 = vunpack.c.l.b16 %v119
  %v597 = vunpack.c.h.b16 %v119
  %v598 = vunpack.c.l.b16 %v120
  %v599 = vunpack.c.l.b16 %v121
  %v600 = vunpack.c.h.b16 %v121
  %v601 = vunpack.c.l.b16 %v122
  %v602 = vunpack.c.h.b16 %v122
  %v603 = vunpack.c.l.b16 %v123
  %v604 = vunpack.c.h.b16 %v123
  %v605 = vunpack.c.l.b16 %v124
  %v606 = vunpack.c.h.b16 %v124
  %v607 = vunpack.c.l.b16 %v125
  %v608 = vunpack.c.l.b16 %v126
  %v609 = vunpack.c.h.b16 %v126
  %v610 = vunpack.c.l.b16 %v127
  %v611 = vunpack.c.h.b16 %v127
  %v612 = vunpack.c.l.b16 %v128
  %v613 = vunpack.c.h.b16 %v128
  %v614 = vunpack.c.l.b16 %v129
  %v615 = vunpack.c.h.b16 %v129
  %v616 = vunpack.c.l.b16 %v130
  %v617 = vunpack.c.l.b16 %v131
  %v618 = vunpack.c.h.b16 %v131
  %v619 = vunpack.c.l.b16 %v132
  %v620 = vunpack.c.h.b16 %v132
  %v621 = vunpack.c.l.b16 %v133
  %v622 = vunpack.c.h.b16 %v133
  %v623 = vunpack.c.l.b16 %v134
  %v624 = vunpack.c.h.b16 %v134
  %v625 = vunpack.c.l.b16 %v135
  %v626 = vunpack.c.l.b16 %v136
  %v627 = vunpack.c.h.b16 %v136
  %v628 = vunpack.c.l.b16 %v137
  %v629 = vunpack.c.h.b16 %v137
  %v630 = vunpack.c.l.b16 %v138
  %v631 = vunpack.c.h.b16 %v138
  %v632 = vunpack.c.l.b16 %v139
  %v633 = vunpack.c.h.b16 %v139
  %v634 = vunpack.c.l.b16 %v140
  %v635 = vunpack.c.l.b16 %v141
  %v636 = vunpack.c.h.b16 %v141
  %v637 = vunpack.c.l.b16 %v142
  %v638 = vunpack.c.h.b16 %v142
  %v639 = vunpack.c.l.b16 %v143
  %v640 = vunpack.c.h.b16 %v143
  %v641 = vunpack.c.l.b16 %v144
  %v642 = vunpack.c.h.b16 %v144
  %v643 = vunpack.c.l.b16 %v145
  %v644 = vpack.c.b16 %v428, %v419
  %v645 = vpack.c.b16 %v429, %v420
  %v646 = vpack.c.b16 %v430, %v421
  %v647 = vpack.c.b16 %v431, %v422
  %v648 = vpack.c.b16 %v432, %v423
  %v649 = vpack.c.b16 %v433, %v424
  %v650 = vpack.c.b16 %v434, %v425
  %v651 = vpack.c.b16 %v435, %v426
  %v652 = vpack.c.b16 %v436, %v427
  %v653 = vpack.c.b16 %v446, %v437
  %v654 = vpack.c.b16 %v447, %v438
  %v655 = vpack.c.b16 %v448, %v439
  %v656 = vpack.c.b16 %v449, %v440
  %v657 = vpack.c.b16 %v450, %v441
  %v658 = vpack.c.b16 %v451, %v442
  %v659 = vpack.c.b16 %v452, %v443
  %v660 = vpack.c.b16 %v453, %v444
  %v661 = vpack.c.b16 %v454, %v445
  %v662 = vpack.c.b16 %v464, %v455
  %v663 = vpack.c.b16 %v465, %v456
  %v664 = vpack.c.b16 %v466, %v457
  %v665 = vpack.c.b16 %v467, %v458
  %v666 = vpack.c.b16 %v468, %v459
  %v667 = vpack.c.b16 %v469, %v460
  %v668 = vpack.c.b16 %v470, %v461
  %v669 = vpack.c.b16 %v471, %v462
  %v670 = vpack.c.b16 %v472, %v463
  %v671 = vpack.c.b16 %v482, %v473
  %v672 = vpack.c.b16 %v483, %v474
  %v673 = vpack.c.b16 %v484, %v475
  %v674 = vpack.c.b16 %v485, %v476
  %v675 = vpack.c.b16 %v486, %v477
  %v676 = vpack.c.b16 %v487, %v478
  %v677 = vpack.c.b16 %v488, %v479
  %v678 = vpack.c.b16 %v489, %v480
  %v679 = vpack.c.b16 %v490, %v481
  %v680 = vpack.c.b16 %v500, %v491
  %v681 = vpack.c.b16 %v501, %v492
  %v682 = vpack.c.b16 %v502, %v493
  %v683 = vpack.c.b16 %v503, %v494
  %v684 = vpack.c.b16 %v504, %v495
  %v685 = vpack.c.b16 %v505, %v496
  %v686 = vpack.c.b16 %v506, %v497
  %v687 = vpack.c.b16 %v507, %v498
  %v688 = vpack.c.b16 %v508, %v499
  %v689 = vpack.c.b16 %v518, %v509
  %v690 = vpack.c.b16 %v519, %v510
  %v691 = vpack.c.b16 %v520, %v511
  %v692 = vpack.c.b16 %v521, %v512
  %v693 = vpack.c.b16 %v522, %v513
  %v694 = vpack.c.b16 %v523, %v514
  %v695 = vpack.c.b16 %v524, %v515
  %v696 = vpack.c.b16 %v525, %v516
  %v697 = vpack.c.b16 %v526, %v517
  %v698 = vpack.c.b16 %v536, %v527
  %v699 = vpack.c.b16 %v537, %v528
  %v700 = vpack.c.b16 %v538, %v529
  %v701 = vpack.c.b16 %v539, %v530
  %v702 = vpack.c.b16 %v540, %v531
  %v703 = vpack.c.b16 %v541, %v532
  %v704 = vpack.c.b16 %v542, %v533
  %v705 = vpack.c.b16 %v543, %v534
  %v706 = vpack.c.b16 %v544, %v535
  %v707 = vpack.c.b16 %v554, %v545
  %v708 = vpack.c.b16 %v555, %v546
  %v709 = vpack.c.b16 %v556, %v547
  %v710 = vpack.c.b16 %v557, %v548
  %v711 = vpack.c.b16 %v558, %v549
  %v712 = vpack.c.b16 %v559, %v550
  %v713 = vpack.c.b16 %v560, %v551
  %v714 = vpack.c.b16 %v561, %v552
  %v715 = vpack.c.b16 %v562, %v553
  %v716 = vpack.c.b16 %v572, %v563
  %v717 = vpack.c.b16 %v573, %v564
  %v718 = vpack.c.b16 %v574, %v565
  %v719 = vpack.c.b16 %v575, %v566
  %v720 = vpack.c.b16 %v576, %v567
  %v721 = vpack.c.b16 %v577, %v568
  %v722 = vpack.c.b16 %v578, %v569
  %v723 = vpack.c.b16 %v579, %v570
  %v724 = vpack.c.b16 %v580, %v571
  %v725 = vpack.c.b16 %v590, %v581
  %v726 = vpack.c.b16 %v591, %v582
  %v727 = vpack.c.b16 %v592, %v583
  %v728 = vpack.c.b16 %v593, %v584
  %v729 = vpack.c.b16 %v594, %v585
  %v730 = vpack.c.b16 %v595, %v586
  %v731 = vpack.c.b16 %v596, %v587
  %v732 = vpack.c.b16 %v597, %v588
  %v733 = vpack.c.b16 %v598, %v589
  %v734 = vpack.c.b16 %v608, %v599
  %v735 = vpack.c.b16 %v609, %v600
  %v736 = vpack.c.b16 %v610, %v601
  %v737 = vpack.c.b16 %v611, %v602
  %v738 = vpack.c.b16 %v612, %v603
  %v739 = vpack.c.b16 %v613, %v604
  %v740 = vpack.c.b16 %v614, %v605
  %v741 = vpack.c.b16 %v615, %v606
  %v742 = vpack.c.b16 %v616, %v607
  %v743 = vpack.c.b16 %v626, %v617
  %v744 = vpack.c.b16 %v627, %v618
  %v745 = vpack.c.b16 %v628, %v619
  %v746 = vpack.c.b16 %v629, %v620
  %v747 = vpack.c.b16 %v630, %v621
  %v748 = vpack.c.b16 %v631, %v622
  %v749 = vpack.c.b16 %v632, %v623
  %v750 = vpack.c.b16 %v633, %v624
  %v751 = vpack.c.b16 %v634, %v625
  %v752 = vpack.c.b16 %v635, %v635
  %v753 = vpack.c.b16 %v636, %v636
  %v754 = vpack.c.b16 %v637, %v637
  %v755 = vpack.c.b16 %v638, %v638
  %v756 = vpack.c.b16 %v639, %v639
  %v757 = vpack.c.b16 %v640, %v640
  %v758 = vpack.c.b16 %v641, %v641
  %v759 = vpack.c.b16 %v642, %v642
  %v760 = vpack.c.b16 %v643, %v643
  %v1022 = vunpack.c.l.b16 %v146
  %v1023 = vunpack.c.l.b16 %v147
  %v1024 = vunpack.c.l.b16 %v148
  %v1025 = vunpack.c.l.b16 %v149
  %v1026 = vunpack.c.l.b16 %v150
  %v1027 = vunpack.c.l.b16 %v151
  %v1028 = vunpack.c.l.b16 %v152
  %v1029 = vunpack.c.l.b16 %v153
  %v1030 = vunpack.c.l.b16 %v154
  %v1031 = vunpack.c.l.b16 %v155
  %v1032 = vunpack.c.l.b16 %v156
  %v1033 = vunpack.c.l.b16 %v157
  %v1034 = vunpack.c.l.b16 %v158
  %v1035 = vunpack.c.l.b16 %v159
  %v1036 = vunpack.c.l.b16 %v160
  %v1037 = vunpack.c.l.b16 %v161
  %v1038 = vunpack.c.l.b16 %v162
  %v1039 = vunpack.c.l.b16 %v163
  %v1040 = vunpack.c.l.b16 %v164
  %v1041 = vunpack.c.l.b16 %v165
  %v1042 = vunpack.c.l.b16 %v166
  %v1043 = vunpack.c.l.b16 %v167
  %v1044 = vunpack.c.l.b16 %v168
  %v1045 = vunpack.c.l.b16 %v169
  %v1046 = vunpack.c.l.b16 %v170
  %v1047 = vunpack.c.l.b16 %v171
  %v1048 = vunpack.c.l.b16 %v172
  %v1049 = vunpack.c.l.b16 %v173
  %v1050 = vunpack.c.l.b16 %v174
  %v1051 = vunpack.c.l.b16 %v175
  %v1052 = vunpack.c.l.b16 %v176
  %v1053 = vunpack.c.l.b16 %v177
  %v1054 = vunpack.c.l.b16 %v178
  %v1055 = vunpack.c.l.b16 %v179
  %v1056 = vunpack.c.l.b16 %v180
  %v1057 = vunpack.c.l.b16 %v181
  %v1058 = vunpack.c.l.b16 %v182
  %v1059 = vunpack.c.l.b16 %v183
  %v1060 = vunpack.c.l.b16 %v184
  %v1061 = vunpack.c.l.b16 %v185
  %v1062 = vunpack.c.l.b16 %v186
  %v1063 = vunpack.c.l.b16 %v187
  %v1064 = vunpack.c.l.b16 %v188
  %v1065 = vunpack.c.l.b16 %v189
  %v1066 = vunpack.c.l.b16 %v190
  %v1067 = vunpack.c.l.b16 %v191
  %v1068 = vunpack.c.l.b16 %v192
  %v1069 = vunpack.c.l.b16 %v193
  %v1070 = vunpack.c.l.b16 %v194
  %v1071 = vunpack.c.l.b16 %v195
  %v1072 = vunpack.c.l.b16 %v196
  %v1073 = vunpack.c.l.b16 %v197
  %v1074 = vunpack.c.l.b16 %v198
  %v1075 = vunpack.c.l.b16 %v199
  %v1076 = vunpack.c.l.b16 %v200
  %v1077 = vunpack.c.l.b16 %v201
  %v1078 = vunpack.c.l.b16 %v202
  %v1079 = vunpack.c.l.b16 %v203
  %v1080 = vunpack.c.l.b16 %v204
  %v1081 = vunpack.c.l.b16 %v205
  %v1082 = vunpack.c.l.b16 %v206
  %v1083 = vunpack.c.l.b16 %v207
  %v1084 = vunpack.c.l.b16 %v208
  %v1085 = vunpack.c.l.b16 %v209
  %v1086 = vunpack.c.l.b16 %v210
  %v1087 = vunpack.c.l.b16 %v211
  %v1088 = vunpack.c.l.b16 %v212
  %v1089 = vunpack.c.l.b16 %v213
  %v1090 = vunpack.c.l.b16 %v214
  %v1091 = vunpack.c.l.b16 %v215
  %v1092 = vunpack.c.l.b16 %v216
  %v1093 = vunpack.c.l.b16 %v217
  %v1094 = vunpack.c.l.b16 %v218
  %v1095 = vunpack.c.l.b16 %v219
  %v1096 = vunpack.c.l.b16 %v220
  %v1097 = vunpack.c.l.b16 %v221
  %v1098 = vunpack.c.l.b16 %v222
  %v1099 = vunpack.c.l.b16 %v223
  %v1100 = vunpack.c.l.b16 %v224
  %v1101 = vunpack.c.l.b16 %v225
  %v1102 = vunpack.c.l.b16 %v226
  %v1103 = vunpack.c.l.b16 %v227
  %v1104 = vunpack.c.l.b16 %v228
  %v1105 = vunpack.c.l.b16 %v229
  %v1106 = vunpack.c.l.b16 %v230
  %v1107 = vunpack.c.l.b16 %v231
  %v1108 = vunpack.c.l.b16 %v232
  %v1109 = vunpack.c.l.b16 %v233
  %v1110 = vunpack.c.l.b16 %v234
  %v1111 = vunpack.c.l.b16 %v235
  %v1112 = vunpack.c.l.b16 %v236
  %v1113 = vunpack.c.l.b16 %v237
  %v1114 = vunpack.c.l.b16 %v238
  %v1115 = vunpack.c.l.b16 %v239
  %v1116 = vunpack.c.l.b16 %v240
  %v1117 = vunpack.c.l.b16 %v241
  %v1118 = vunpack.c.l.b16 %v242
  %v1119 = vunpack.c.l.b16 %v243
  %v1120 = vunpack.c.l.b16 %v244
  %v1121 = vunpack.c.l.b16 %v245
  %v1122 = vunpack.c.l.b16 %v246
  %v1123 = vunpack.c.l.b16 %v247
  %v1124 = vunpack.c.l.b16 %v248
  %v1125 = vunpack.c.l.b16 %v249
  %v1126 = vunpack.c.l.b16 %v250
  %v1127 = vunpack.c.l.b16 %v251
  %v1128 = vunpack.c.l.b16 %v252
  %v1129 = vunpack.c.l.b16 %v253
  %v1130 = vunpack.c.l.b16 %v254
  %v1131 = vunpack.c.l.b16 %v255
  %v1132 = vunpack.c.l.b16 %v256
  %v1133 = vunpack.c.l.b16 %v257
  %v1134 = vunpack.c.l.b16 %v258
  %v1135 = vunpack.c.l.b16 %v259
  %v1136 = vunpack.c.l.b16 %v260
  %v1137 = vunpack.c.l.b16 %v261
  %v1138 = vunpack.c.l.b16 %v262
  %v1139 = vunpack.c.l.b16 %v263
  %v1140 = vunpack.c.l.b16 %v264
  %v1141 = vunpack.c.l.b16 %v265
  %v1142 = vunpack.c.l.b16 %v266
  %v1143 = vunpack.c.l.b16 %v267
  %v1144 = vunpack.c.l.b16 %v268
  %v1145 = vunpack.c.l.b16 %v269
  %v1146 = vunpack.c.l.b16 %v270
  %v1147 = vunpack.c.l.b16 %v271
  %v1148 = vunpack.c.l.b16 %v272
  %v1149 = vunpack.c.l.b16 %v273
  %v1150 = vunpack.c.l.b16 %v274
  %v1151 = vunpack.c.l.b16 %v275
  %v1152 = vunpack.c.l.b16 %v276
  %v1153 = vunpack.c.l.b16 %v277
  %v1154 = vunpack.c.l.b16 %v278
  %v1155 = vunpack.c.l.b16 %v279
  %v1156 = vunpack.c.l.b16 %v280
  %v1157 = vunpack.c.l.b16 %v281
  %v1158 = vunpack.c.l.b16 %v282
  %v1159 = vunpack.c.l.b16 %v283
  %v1160 = vunpack.c.l.b16 %v284
  %v1161 = vunpack.c.l.b16 %v285
  %v1162 = vunpack.c.l.b16 %v286
  %v1163 = vunpack.c.l.b16 %v287
  %v1164 = vunpack.c.l.b16 %v288
  %v1165 = vunpack.c.l.b16 %v289
  %v1166 = vpack.c.b16 %v1023, %v1022
  %v1167 = vpack.c.b16 %v1025, %v1024
  %v1168 = vpack.c.b16 %v1027, %v1026
  %v1169 = vpack.c.b16 %v1029, %v1028
  %v1170 = vpack.c.b16 %v1031, %v1030
  %v1171 = vpack.c.b16 %v1033, %v1032
  %v1172 = vpack.c.b16 %v1035, %v1034
  %v1173 = vpack.c.b16 %v1037, %v1036
  %v1174 = vpack.c.b16 %v1039, %v1038
  %v1175 = vpack.c.b16 %v1041, %v1040
  %v1176 = vpack.c.b16 %v1043, %v1042
  %v1177 = vpack.c.b16 %v1045, %v1044
  %v1178 = vpack.c.b16 %v1047, %v1046
  %v1179 = vpack.c.b16 %v1049, %v1048
  %v1180 = vpack.c.b16 %v1051, %v1050
  %v1181 = vpack.c.b16 %v1053, %v1052
  %v1182 = vpack.c.b16 %v1055, %v1054
  %v1183 = vpack.c.b16 %v1057, %v1056
  %v1184 = vpack.c.b16 %v1059, %v1058
  %v1185 = vpack.c.b16 %v1061, %v1060
  %v1186 = vpack.c.b16 %v1063, %v1062
  %v1187 = vpack.c.b16 %v1065, %v1064
  %v1188 = vpack.c.b16 %v1067, %v1066
  %v1189 = vpack.c.b16 %v1069, %v1068
  %v1190 = vpack.c.b16 %v1071, %v1070
  %v1191 = vpack.c.b16 %v1073, %v1072
  %v1192 = vpack.c.b16 %v1075, %v1074
  %v1193 = vpack.c.b16 %v1077, %v1076
  %v1194 = vpack.c.b16 %v1079, %v1078
  %v1195 = vpack.c.b16 %v1081, %v1080
  %v1196 = vpack.c.b16 %v1083, %v1082
  %v1197 = vpack.c.b16 %v1085, %v1084
  %v1198 = vpack.c.b16 %v1087, %v1086
  %v1199 = vpack.c.b16 %v1089, %v1088
  %v1200 = vpack.c.b16 %v1091, %v1090
  %v1201 = vpack.c.b16 %v1093, %v1092
  %v1202 = vpack.c.b16 %v1095, %v1094
  %v1203 = vpack.c.b16 %v1097, %v1096
  %v1204 = vpack.c.b16 %v1099, %v1098
  %v1205 = vpack.c.b16 %v1101, %v1100
  %v1206 = vpack.c.b16 %v1103, %v1102
  %v1207 = vpack.c.b16 %v1105, %v1104
  %v1208 = vpack.c.b16 %v1107, %v1106
  %v1209 = vpack.c.b16 %v1109, %v1108
  %v1210 = vpack.c.b16 %v1111, %v1110
  %v1211 = vpack.c.b16 %v1113, %v1112
  %v1212 = vpack.c.b16 %v1115, %v1114
  %v1213 = vpack.c.b16 %v1117, %v1116
  %v1214 = vpack.c.b16 %v1119, %v1118
  %v1215 = vpack.c.b16 %v1121, %v1120
  %v1216 = vpack.c.b16 %v1123, %v1122
  %v1217 = vpack.c.b16 %v1125, %v1124
  %v1218 = vpack.c.b16 %v1127, %v1126
  %v1219 = vpack.c.b16 %v1129, %v1128
  %v1220 = vpack.c.b16 %v1131, %v1130
  %v1221 = vpack.c.b16 %v1133, %v1132
  %v1222 = vpack.c.b16 %v1135, %v1134
  %v1223 = vpack.c.b16 %v1137, %v1136
  %v1224 = vpack.c.b16 %v1139, %v1138
  %v1225 = vpack.c.b16 %v1141, %v1140
  %v1226 = vpack.c.b16 %v1143, %v1142
  %v1227 = vpack.c.b16 %v1145, %v1144
  %v1228 = vpack.c.b16 %v1147, %v1146
  %v1229 = vpack.c.b16 %v1149, %v1148
  %v1230 = vpack.c.b16 %v1151, %v1150
  %v1231 = vpack.c.b16 %v1153, %v1152
  %v1232 = vpack.c.b16 %v1155, %v1154
  %v1233 = vpack.c.b16 %v1157, %v1156
  %v1234 = vpack.c.b16 %v1159, %v1158
  %v1235 = vpack.c.b16 %v1161, %v1160
  %v1236 = vpack.c.b16 %v1163, %v1162
  %v1237 = vpack.c.b16 %v1165, %v1164
  %1310 = vmatpush.bf16.msra.mxu0 %v1173
  %1311 = vmatpush.bf16.msra.mxu0 %v1172
  %1312 = vmatpush.bf16.msra.mxu0 %v1171
  %1313 = vmatpush.bf16.msra.mxu0 %v1170
  %1314 = vmatpush.bf16.msra.mxu0 %v1169
  %1315 = vmatpush.bf16.msra.mxu0 %v1168
  %1316 = vmatpush.bf16.msra.mxu0 %v1167
  %1317 = vmatpush.bf16.msra.mxu0 %v1166
  %1318 = vmatmul.bf16.gmra.mxu0 %v644
  %v1319 = vpop.f32.mrf.mxu0
  %v1320 = vadd.f32 %v292, %v1319
  %v1321 = vpop.f32.mrf.mxu0
  %v1322 = vadd.f32 %v292, %v1321
  %1323 = vmatmul.bf16.gmra.mxu0 %v653
  %v1324 = vpop.f32.mrf.mxu0
  %v1325 = vadd.f32 %v292, %v1324
  %v1326 = vpop.f32.mrf.mxu0
  %v1327 = vadd.f32 %v292, %v1326
  %1328 = vmatmul.bf16.gmra.mxu0 %v662
  %v1329 = vpop.f32.mrf.mxu0
  %v1330 = vadd.f32 %v292, %v1329
  %v1331 = vpop.f32.mrf.mxu0
  %v1332 = vadd.f32 %v292, %v1331
  %1333 = vmatmul.bf16.gmra.mxu0 %v671
  %v1334 = vpop.f32.mrf.mxu0
  %v1335 = vadd.f32 %v292, %v1334
  %v1336 = vpop.f32.mrf.mxu0
  %v1337 = vadd.f32 %v292, %v1336
  %1338 = vmatmul.bf16.gmra.mxu0 %v680
  %v1339 = vpop.f32.mrf.mxu0
  %v1340 = vadd.f32 %v292, %v1339
  %v1341 = vpop.f32.mrf.mxu0
  %v1342 = vadd.f32 %v292, %v1341
  %1343 = vmatmul.bf16.gmra.mxu0 %v689
  %v1344 = vpop.f32.mrf.mxu0
  %v1345 = vadd.f32 %v292, %v1344
  %v1346 = vpop.f32.mrf.mxu0
  %v1347 = vadd.f32 %v292, %v1346
  %1348 = vmatmul.bf16.gmra.mxu0 %v698
  %v1349 = vpop.f32.mrf.mxu0
  %v1350 = vadd.f32 %v292, %v1349
  %v1351 = vpop.f32.mrf.mxu0
  %v1352 = vadd.f32 %v292, %v1351
  %1353 = vmatmul.bf16.gmra.mxu0 %v707
  %v1354 = vpop.f32.mrf.mxu0
  %v1355 = vadd.f32 %v292, %v1354
  %v1356 = vpop.f32.mrf.mxu0
  %v1357 = vadd.f32 %v292, %v1356
  %1358 = vmatmul.bf16.gmra.mxu0 %v716
  %v1359 = vpop.f32.mrf.mxu0
  %v1360 = vadd.f32 %v292, %v1359
  %v1361 = vpop.f32.mrf.mxu0
  %v1362 = vadd.f32 %v292, %v1361
  %1363 = vmatmul.bf16.gmra.mxu0 %v725
  %v1364 = vpop.f32.mrf.mxu0
  %v1365 = vadd.f32 %v292, %v1364
  %v1366 = vpop.f32.mrf.mxu0
  %v1367 = vadd.f32 %v292, %v1366
  %1368 = vmatmul.bf16.gmra.mxu0 %v734
  %v1369 = vpop.f32.mrf.mxu0
  %v1370 = vadd.f32 %v292, %v1369
  %v1371 = vpop.f32.mrf.mxu0
  %v1372 = vadd.f32 %v292, %v1371
  %1373 = vmatmul.bf16.gmra.mxu0 %v743
  %v1374 = vpop.f32.mrf.mxu0
  %v1375 = vadd.f32 %v292, %v1374
  %v1376 = vpop.f32.mrf.mxu0
  %v1377 = vadd.f32 %v292, %v1376
  %1378 = vmatmul.bf16.gmra.mxu0 %v752
  %v1379 = vpop.f32.mrf.mxu0
  %v1380 = vadd.f32 %v292, %v1379
  %v1381 = vpop.f32.mrf.mxu0
  %1382 = vdwg.mxu0
  %1383 = vmatpush.bf16.msra.mxu0 %v1181
  %1384 = vmatpush.bf16.msra.mxu0 %v1180
  %1385 = vmatpush.bf16.msra.mxu0 %v1179
  %1386 = vmatpush.bf16.msra.mxu0 %v1178
  %1387 = vmatpush.bf16.msra.mxu0 %v1177
  %1388 = vmatpush.bf16.msra.mxu0 %v1176
  %1389 = vmatpush.bf16.msra.mxu0 %v1175
  %1390 = vmatpush.bf16.msra.mxu0 %v1174
  %1391 = vmatmul.bf16.gmra.mxu0 %v645
  %v1392 = vpop.f32.mrf.mxu0
  %v1393 = vadd.f32 %v1320, %v1392
  %v1394 = vpop.f32.mrf.mxu0
  %v1395 = vadd.f32 %v1322, %v1394
  %1396 = vmatmul.bf16.gmra.mxu0 %v654
  %v1397 = vpop.f32.mrf.mxu0
  %v1398 = vadd.f32 %v1325, %v1397
  %v1399 = vpop.f32.mrf.mxu0
  %v1400 = vadd.f32 %v1327, %v1399
  %1401 = vmatmul.bf16.gmra.mxu0 %v663
  %v1402 = vpop.f32.mrf.mxu0
  %v1403 = vadd.f32 %v1330, %v1402
  %v1404 = vpop.f32.mrf.mxu0
  %v1405 = vadd.f32 %v1332, %v1404
  %1406 = vmatmul.bf16.gmra.mxu0 %v672
  %v1407 = vpop.f32.mrf.mxu0
  %v1408 = vadd.f32 %v1335, %v1407
  %v1409 = vpop.f32.mrf.mxu0
  %v1410 = vadd.f32 %v1337, %v1409
  %1411 = vmatmul.bf16.gmra.mxu0 %v681
  %v1412 = vpop.f32.mrf.mxu0
  %v1413 = vadd.f32 %v1340, %v1412
  %v1414 = vpop.f32.mrf.mxu0
  %v1415 = vadd.f32 %v1342, %v1414
  %1416 = vmatmul.bf16.gmra.mxu0 %v690
  %v1417 = vpop.f32.mrf.mxu0
  %v1418 = vadd.f32 %v1345, %v1417
  %v1419 = vpop.f32.mrf.mxu0
  %v1420 = vadd.f32 %v1347, %v1419
  %1421 = vmatmul.bf16.gmra.mxu0 %v699
  %v1422 = vpop.f32.mrf.mxu0
  %v1423 = vadd.f32 %v1350, %v1422
  %v1424 = vpop.f32.mrf.mxu0
  %v1425 = vadd.f32 %v1352, %v1424
  %1426 = vmatmul.bf16.gmra.mxu0 %v708
  %v1427 = vpop.f32.mrf.mxu0
  %v1428 = vadd.f32 %v1355, %v1427
  %v1429 = vpop.f32.mrf.mxu0
  %v1430 = vadd.f32 %v1357, %v1429
  %1431 = vmatmul.bf16.gmra.mxu0 %v717
  %v1432 = vpop.f32.mrf.mxu0
  %v1433 = vadd.f32 %v1360, %v1432
  %v1434 = vpop.f32.mrf.mxu0
  %v1435 = vadd.f32 %v1362, %v1434
  %1436 = vmatmul.bf16.gmra.mxu0 %v726
  %v1437 = vpop.f32.mrf.mxu0
  %v1438 = vadd.f32 %v1365, %v1437
  %v1439 = vpop.f32.mrf.mxu0
  %v1440 = vadd.f32 %v1367, %v1439
  %1441 = vmatmul.bf16.gmra.mxu0 %v735
  %v1442 = vpop.f32.mrf.mxu0
  %v1443 = vadd.f32 %v1370, %v1442
  %v1444 = vpop.f32.mrf.mxu0
  %v1445 = vadd.f32 %v1372, %v1444
  %1446 = vmatmul.bf16.gmra.mxu0 %v744
  %v1447 = vpop.f32.mrf.mxu0
  %v1448 = vadd.f32 %v1375, %v1447
  %v1449 = vpop.f32.mrf.mxu0
  %v1450 = vadd.f32 %v1377, %v1449
  %1451 = vmatmul.bf16.gmra.mxu0 %v753
  %v1452 = vpop.f32.mrf.mxu0
  %v1453 = vadd.f32 %v1380, %v1452
  %v1454 = vpop.f32.mrf.mxu0
  %1455 = vdwg.mxu0
  %1456 = vmatpush.bf16.msra.mxu0 %v1189
  %1457 = vmatpush.bf16.msra.mxu0 %v1188
  %1458 = vmatpush.bf16.msra.mxu0 %v1187
  %1459 = vmatpush.bf16.msra.mxu0 %v1186
  %1460 = vmatpush.bf16.msra.mxu0 %v1185
  %1461 = vmatpush.bf16.msra.mxu0 %v1184
  %1462 = vmatpush.bf16.msra.mxu0 %v1183
  %1463 = vmatpush.bf16.msra.mxu0 %v1182
  %1464 = vmatmul.bf16.gmra.mxu0 %v646
  %v1465 = vpop.f32.mrf.mxu0
  %v1466 = vadd.f32 %v1393, %v1465
  %v1467 = vpop.f32.mrf.mxu0
  %v1468 = vadd.f32 %v1395, %v1467
  %1469 = vmatmul.bf16.gmra.mxu0 %v655
  %v1470 = vpop.f32.mrf.mxu0
  %v1471 = vadd.f32 %v1398, %v1470
  %v1472 = vpop.f32.mrf.mxu0
  %v1473 = vadd.f32 %v1400, %v1472
  %1474 = vmatmul.bf16.gmra.mxu0 %v664
  %v1475 = vpop.f32.mrf.mxu0
  %v1476 = vadd.f32 %v1403, %v1475
  %v1477 = vpop.f32.mrf.mxu0
  %v1478 = vadd.f32 %v1405, %v1477
  %1479 = vmatmul.bf16.gmra.mxu0 %v673
  %v1480 = vpop.f32.mrf.mxu0
  %v1481 = vadd.f32 %v1408, %v1480
  %v1482 = vpop.f32.mrf.mxu0
  %v1483 = vadd.f32 %v1410, %v1482
  %1484 = vmatmul.bf16.gmra.mxu0 %v682
  %v1485 = vpop.f32.mrf.mxu0
  %v1486 = vadd.f32 %v1413, %v1485
  %v1487 = vpop.f32.mrf.mxu0
  %v1488 = vadd.f32 %v1415, %v1487
  %1489 = vmatmul.bf16.gmra.mxu0 %v691
  %v1490 = vpop.f32.mrf.mxu0
  %v1491 = vadd.f32 %v1418, %v1490
  %v1492 = vpop.f32.mrf.mxu0
  %v1493 = vadd.f32 %v1420, %v1492
  %1494 = vmatmul.bf16.gmra.mxu0 %v700
  %v1495 = vpop.f32.mrf.mxu0
  %v1496 = vadd.f32 %v1423, %v1495
  %v1497 = vpop.f32.mrf.mxu0
  %v1498 = vadd.f32 %v1425, %v1497
  %1499 = vmatmul.bf16.gmra.mxu0 %v709
  %v1500 = vpop.f32.mrf.mxu0
  %v1501 = vadd.f32 %v1428, %v1500
  %v1502 = vpop.f32.mrf.mxu0
  %v1503 = vadd.f32 %v1430, %v1502
  %1504 = vmatmul.bf16.gmra.mxu0 %v718
  %v1505 = vpop.f32.mrf.mxu0
  %v1506 = vadd.f32 %v1433, %v1505
  %v1507 = vpop.f32.mrf.mxu0
  %v1508 = vadd.f32 %v1435, %v1507
  %1509 = vmatmul.bf16.gmra.mxu0 %v727
  %v1510 = vpop.f32.mrf.mxu0
  %v1511 = vadd.f32 %v1438, %v1510
  %v1512 = vpop.f32.mrf.mxu0
  %v1513 = vadd.f32 %v1440, %v1512
  %1514 = vmatmul.bf16.gmra.mxu0 %v736
  %v1515 = vpop.f32.mrf.mxu0
  %v1516 = vadd.f32 %v1443, %v1515
  %v1517 = vpop.f32.mrf.mxu0
  %v1518 = vadd.f32 %v1445, %v1517
  %1519 = vmatmul.bf16.gmra.mxu0 %v745
  %v1520 = vpop.f32.mrf.mxu0
  %v1521 = vadd.f32 %v1448, %v1520
  %v1522 = vpop.f32.mrf.mxu0
  %v1523 = vadd.f32 %v1450, %v1522
  %1524 = vmatmul.bf16.gmra.mxu0 %v754
  %v1525 = vpop.f32.mrf.mxu0
  %v1526 = vadd.f32 %v1453, %v1525
  %v1527 = vpop.f32.mrf.mxu0
  %1528 = vdwg.mxu0
  %1529 = vmatpush.bf16.msra.mxu0 %v1197
  %1530 = vmatpush.bf16.msra.mxu0 %v1196
  %1531 = vmatpush.bf16.msra.mxu0 %v1195
  %1532 = vmatpush.bf16.msra.mxu0 %v1194
  %1533 = vmatpush.bf16.msra.mxu0 %v1193
  %1534 = vmatpush.bf16.msra.mxu0 %v1192
  %1535 = vmatpush.bf16.msra.mxu0 %v1191
  %1536 = vmatpush.bf16.msra.mxu0 %v1190
  %1537 = vmatmul.bf16.gmra.mxu0 %v647
  %v1538 = vpop.f32.mrf.mxu0
  %v1539 = vadd.f32 %v1466, %v1538
  %v1540 = vpop.f32.mrf.mxu0
  %v1541 = vadd.f32 %v1468, %v1540
  %1542 = vmatmul.bf16.gmra.mxu0 %v656
  %v1543 = vpop.f32.mrf.mxu0
  %v1544 = vadd.f32 %v1471, %v1543
  %v1545 = vpop.f32.mrf.mxu0
  %v1546 = vadd.f32 %v1473, %v1545
  %1547 = vmatmul.bf16.gmra.mxu0 %v665
  %v1548 = vpop.f32.mrf.mxu0
  %v1549 = vadd.f32 %v1476, %v1548
  %v1550 = vpop.f32.mrf.mxu0
  %v1551 = vadd.f32 %v1478, %v1550
  %1552 = vmatmul.bf16.gmra.mxu0 %v674
  %v1553 = vpop.f32.mrf.mxu0
  %v1554 = vadd.f32 %v1481, %v1553
  %v1555 = vpop.f32.mrf.mxu0
  %v1556 = vadd.f32 %v1483, %v1555
  %1557 = vmatmul.bf16.gmra.mxu0 %v683
  %v1558 = vpop.f32.mrf.mxu0
  %v1559 = vadd.f32 %v1486, %v1558
  %v1560 = vpop.f32.mrf.mxu0
  %v1561 = vadd.f32 %v1488, %v1560
  %1562 = vmatmul.bf16.gmra.mxu0 %v692
  %v1563 = vpop.f32.mrf.mxu0
  %v1564 = vadd.f32 %v1491, %v1563
  %v1565 = vpop.f32.mrf.mxu0
  %v1566 = vadd.f32 %v1493, %v1565
  %1567 = vmatmul.bf16.gmra.mxu0 %v701
  %v1568 = vpop.f32.mrf.mxu0
  %v1569 = vadd.f32 %v1496, %v1568
  %v1570 = vpop.f32.mrf.mxu0
  %v1571 = vadd.f32 %v1498, %v1570
  %1572 = vmatmul.bf16.gmra.mxu0 %v710
  %v1573 = vpop.f32.mrf.mxu0
  %v1574 = vadd.f32 %v1501, %v1573
  %v1575 = vpop.f32.mrf.mxu0
  %v1576 = vadd.f32 %v1503, %v1575
  %1577 = vmatmul.bf16.gmra.mxu0 %v719
  %v1578 = vpop.f32.mrf.mxu0
  %v1579 = vadd.f32 %v1506, %v1578
  %v1580 = vpop.f32.mrf.mxu0
  %v1581 = vadd.f32 %v1508, %v1580
  %1582 = vmatmul.bf16.gmra.mxu0 %v728
  %v1583 = vpop.f32.mrf.mxu0
  %v1584 = vadd.f32 %v1511, %v1583
  %v1585 = vpop.f32.mrf.mxu0
  %v1586 = vadd.f32 %v1513, %v1585
  %1587 = vmatmul.bf16.gmra.mxu0 %v737
  %v1588 = vpop.f32.mrf.mxu0
  %v1589 = vadd.f32 %v1516, %v1588
  %v1590 = vpop.f32.mrf.mxu0
  %v1591 = vadd.f32 %v1518, %v1590
  %1592 = vmatmul.bf16.gmra.mxu0 %v746
  %v1593 = vpop.f32.mrf.mxu0
  %v1594 = vadd.f32 %v1521, %v1593
  %v1595 = vpop.f32.mrf.mxu0
  %v1596 = vadd.f32 %v1523, %v1595
  %1597 = vmatmul.bf16.gmra.mxu0 %v755
  %v1598 = vpop.f32.mrf.mxu0
  %v1599 = vadd.f32 %v1526, %v1598
  %v1600 = vpop.f32.mrf.mxu0
  %1601 = vdwg.mxu0
  %1602 = vmatpush.bf16.msra.mxu0 %v1205
  %1603 = vmatpush.bf16.msra.mxu0 %v1204
  %1604 = vmatpush.bf16.msra.mxu0 %v1203
  %1605 = vmatpush.bf16.msra.mxu0 %v1202
  %1606 = vmatpush.bf16.msra.mxu0 %v1201
  %1607 = vmatpush.bf16.msra.mxu0 %v1200
  %1608 = vmatpush.bf16.msra.mxu0 %v1199
  %1609 = vmatpush.bf16.msra.mxu0 %v1198
  %1610 = vmatmul.bf16.gmra.mxu0 %v648
  %v1611 = vpop.f32.mrf.mxu0
  %v1612 = vadd.f32 %v1539, %v1611
  %v1613 = vpop.f32.mrf.mxu0
  %v1614 = vadd.f32 %v1541, %v1613
  %1615 = vmatmul.bf16.gmra.mxu0 %v657
  %v1616 = vpop.f32.mrf.mxu0
  %v1617 = vadd.f32 %v1544, %v1616
  %v1618 = vpop.f32.mrf.mxu0
  %v1619 = vadd.f32 %v1546, %v1618
  %1620 = vmatmul.bf16.gmra.mxu0 %v666
  %v1621 = vpop.f32.mrf.mxu0
  %v1622 = vadd.f32 %v1549, %v1621
  %v1623 = vpop.f32.mrf.mxu0
  %v1624 = vadd.f32 %v1551, %v1623
  %1625 = vmatmul.bf16.gmra.mxu0 %v675
  %v1626 = vpop.f32.mrf.mxu0
  %v1627 = vadd.f32 %v1554, %v1626
  %v1628 = vpop.f32.mrf.mxu0
  %v1629 = vadd.f32 %v1556, %v1628
  %1630 = vmatmul.bf16.gmra.mxu0 %v684
  %v1631 = vpop.f32.mrf.mxu0
  %v1632 = vadd.f32 %v1559, %v1631
  %v1633 = vpop.f32.mrf.mxu0
  %v1634 = vadd.f32 %v1561, %v1633
  %1635 = vmatmul.bf16.gmra.mxu0 %v693
  %v1636 = vpop.f32.mrf.mxu0
  %v1637 = vadd.f32 %v1564, %v1636
  %v1638 = vpop.f32.mrf.mxu0
  %v1639 = vadd.f32 %v1566, %v1638
  %1640 = vmatmul.bf16.gmra.mxu0 %v702
  %v1641 = vpop.f32.mrf.mxu0
  %v1642 = vadd.f32 %v1569, %v1641
  %v1643 = vpop.f32.mrf.mxu0
  %v1644 = vadd.f32 %v1571, %v1643
  %1645 = vmatmul.bf16.gmra.mxu0 %v711
  %v1646 = vpop.f32.mrf.mxu0
  %v1647 = vadd.f32 %v1574, %v1646
  %v1648 = vpop.f32.mrf.mxu0
  %v1649 = vadd.f32 %v1576, %v1648
  %1650 = vmatmul.bf16.gmra.mxu0 %v720
  %v1651 = vpop.f32.mrf.mxu0
  %v1652 = vadd.f32 %v1579, %v1651
  %v1653 = vpop.f32.mrf.mxu0
  %v1654 = vadd.f32 %v1581, %v1653
  %1655 = vmatmul.bf16.gmra.mxu0 %v729
  %v1656 = vpop.f32.mrf.mxu0
  %v1657 = vadd.f32 %v1584, %v1656
  %v1658 = vpop.f32.mrf.mxu0
  %v1659 = vadd.f32 %v1586, %v1658
  %1660 = vmatmul.bf16.gmra.mxu0 %v738
  %v1661 = vpop.f32.mrf.mxu0
  %v1662 = vadd.f32 %v1589, %v1661
  %v1663 = vpop.f32.mrf.mxu0
  %v1664 = vadd.f32 %v1591, %v1663
  %1665 = vmatmul.bf16.gmra.mxu0 %v747
  %v1666 = vpop.f32.mrf.mxu0
  %v1667 = vadd.f32 %v1594, %v1666
  %v1668 = vpop.f32.mrf.mxu0
  %v1669 = vadd.f32 %v1596, %v1668
  %1670 = vmatmul.bf16.gmra.mxu0 %v756
  %v1671 = vpop.f32.mrf.mxu0
  %v1672 = vadd.f32 %v1599, %v1671
  %v1673 = vpop.f32.mrf.mxu0
  %1674 = vdwg.mxu0
  %1675 = vmatpush.bf16.msra.mxu0 %v1213
  %1676 = vmatpush.bf16.msra.mxu0 %v1212
  %1677 = vmatpush.bf16.msra.mxu0 %v1211
  %1678 = vmatpush.bf16.msra.mxu0 %v1210
  %1679 = vmatpush.bf16.msra.mxu0 %v1209
  %1680 = vmatpush.bf16.msra.mxu0 %v1208
  %1681 = vmatpush.bf16.msra.mxu0 %v1207
  %1682 = vmatpush.bf16.msra.mxu0 %v1206
  %1683 = vmatmul.bf16.gmra.mxu0 %v649
  %v1684 = vpop.f32.mrf.mxu0
  %v1685 = vadd.f32 %v1612, %v1684
  %v1686 = vpop.f32.mrf.mxu0
  %v1687 = vadd.f32 %v1614, %v1686
  %1688 = vmatmul.bf16.gmra.mxu0 %v658
  %v1689 = vpop.f32.mrf.mxu0
  %v1690 = vadd.f32 %v1617, %v1689
  %v1691 = vpop.f32.mrf.mxu0
  %v1692 = vadd.f32 %v1619, %v1691
  %1693 = vmatmul.bf16.gmra.mxu0 %v667
  %v1694 = vpop.f32.mrf.mxu0
  %v1695 = vadd.f32 %v1622, %v1694
  %v1696 = vpop.f32.mrf.mxu0
  %v1697 = vadd.f32 %v1624, %v1696
  %1698 = vmatmul.bf16.gmra.mxu0 %v676
  %v1699 = vpop.f32.mrf.mxu0
  %v1700 = vadd.f32 %v1627, %v1699
  %v1701 = vpop.f32.mrf.mxu0
  %v1702 = vadd.f32 %v1629, %v1701
  %1703 = vmatmul.bf16.gmra.mxu0 %v685
  %v1704 = vpop.f32.mrf.mxu0
  %v1705 = vadd.f32 %v1632, %v1704
  %v1706 = vpop.f32.mrf.mxu0
  %v1707 = vadd.f32 %v1634, %v1706
  %1708 = vmatmul.bf16.gmra.mxu0 %v694
  %v1709 = vpop.f32.mrf.mxu0
  %v1710 = vadd.f32 %v1637, %v1709
  %v1711 = vpop.f32.mrf.mxu0
  %v1712 = vadd.f32 %v1639, %v1711
  %1713 = vmatmul.bf16.gmra.mxu0 %v703
  %v1714 = vpop.f32.mrf.mxu0
  %v1715 = vadd.f32 %v1642, %v1714
  %v1716 = vpop.f32.mrf.mxu0
  %v1717 = vadd.f32 %v1644, %v1716
  %1718 = vmatmul.bf16.gmra.mxu0 %v712
  %v1719 = vpop.f32.mrf.mxu0
  %v1720 = vadd.f32 %v1647, %v1719
  %v1721 = vpop.f32.mrf.mxu0
  %v1722 = vadd.f32 %v1649, %v1721
  %1723 = vmatmul.bf16.gmra.mxu0 %v721
  %v1724 = vpop.f32.mrf.mxu0
  %v1725 = vadd.f32 %v1652, %v1724
  %v1726 = vpop.f32.mrf.mxu0
  %v1727 = vadd.f32 %v1654, %v1726
  %1728 = vmatmul.bf16.gmra.mxu0 %v730
  %v1729 = vpop.f32.mrf.mxu0
  %v1730 = vadd.f32 %v1657, %v1729
  %v1731 = vpop.f32.mrf.mxu0
  %v1732 = vadd.f32 %v1659, %v1731
  %1733 = vmatmul.bf16.gmra.mxu0 %v739
  %v1734 = vpop.f32.mrf.mxu0
  %v1735 = vadd.f32 %v1662, %v1734
  %v1736 = vpop.f32.mrf.mxu0
  %v1737 = vadd.f32 %v1664, %v1736
  %1738 = vmatmul.bf16.gmra.mxu0 %v748
  %v1739 = vpop.f32.mrf.mxu0
  %v1740 = vadd.f32 %v1667, %v1739
  %v1741 = vpop.f32.mrf.mxu0
  %v1742 = vadd.f32 %v1669, %v1741
  %1743 = vmatmul.bf16.gmra.mxu0 %v757
  %v1744 = vpop.f32.mrf.mxu0
  %v1745 = vadd.f32 %v1672, %v1744
  %v1746 = vpop.f32.mrf.mxu0
  %1747 = vdwg.mxu0
  %1748 = vmatpush.bf16.msra.mxu0 %v1221
  %1749 = vmatpush.bf16.msra.mxu0 %v1220
  %1750 = vmatpush.bf16.msra.mxu0 %v1219
  %1751 = vmatpush.bf16.msra.mxu0 %v1218
  %1752 = vmatpush.bf16.msra.mxu0 %v1217
  %1753 = vmatpush.bf16.msra.mxu0 %v1216
  %1754 = vmatpush.bf16.msra.mxu0 %v1215
  %1755 = vmatpush.bf16.msra.mxu0 %v1214
  %1756 = vmatmul.bf16.gmra.mxu0 %v650
  %v1757 = vpop.f32.mrf.mxu0
  %v1758 = vadd.f32 %v1685, %v1757
  %v1759 = vpop.f32.mrf.mxu0
  %v1760 = vadd.f32 %v1687, %v1759
  %1761 = vmatmul.bf16.gmra.mxu0 %v659
  %v1762 = vpop.f32.mrf.mxu0
  %v1763 = vadd.f32 %v1690, %v1762
  %v1764 = vpop.f32.mrf.mxu0
  %v1765 = vadd.f32 %v1692, %v1764
  %1766 = vmatmul.bf16.gmra.mxu0 %v668
  %v1767 = vpop.f32.mrf.mxu0
  %v1768 = vadd.f32 %v1695, %v1767
  %v1769 = vpop.f32.mrf.mxu0
  %v1770 = vadd.f32 %v1697, %v1769
  %1771 = vmatmul.bf16.gmra.mxu0 %v677
  %v1772 = vpop.f32.mrf.mxu0
  %v1773 = vadd.f32 %v1700, %v1772
  %v1774 = vpop.f32.mrf.mxu0
  %v1775 = vadd.f32 %v1702, %v1774
  %1776 = vmatmul.bf16.gmra.mxu0 %v686
  %v1777 = vpop.f32.mrf.mxu0
  %v1778 = vadd.f32 %v1705, %v1777
  %v1779 = vpop.f32.mrf.mxu0
  %v1780 = vadd.f32 %v1707, %v1779
  %1781 = vmatmul.bf16.gmra.mxu0 %v695
  %v1782 = vpop.f32.mrf.mxu0
  %v1783 = vadd.f32 %v1710, %v1782
  %v1784 = vpop.f32.mrf.mxu0
  %v1785 = vadd.f32 %v1712, %v1784
  %1786 = vmatmul.bf16.gmra.mxu0 %v704
  %v1787 = vpop.f32.mrf.mxu0
  %v1788 = vadd.f32 %v1715, %v1787
  %v1789 = vpop.f32.mrf.mxu0
  %v1790 = vadd.f32 %v1717, %v1789
  %1791 = vmatmul.bf16.gmra.mxu0 %v713
  %v1792 = vpop.f32.mrf.mxu0
  %v1793 = vadd.f32 %v1720, %v1792
  %v1794 = vpop.f32.mrf.mxu0
  %v1795 = vadd.f32 %v1722, %v1794
  %1796 = vmatmul.bf16.gmra.mxu0 %v722
  %v1797 = vpop.f32.mrf.mxu0
  %v1798 = vadd.f32 %v1725, %v1797
  %v1799 = vpop.f32.mrf.mxu0
  %v1800 = vadd.f32 %v1727, %v1799
  %1801 = vmatmul.bf16.gmra.mxu0 %v731
  %v1802 = vpop.f32.mrf.mxu0
  %v1803 = vadd.f32 %v1730, %v1802
  %v1804 = vpop.f32.mrf.mxu0
  %v1805 = vadd.f32 %v1732, %v1804
  %1806 = vmatmul.bf16.gmra.mxu0 %v740
  %v1807 = vpop.f32.mrf.mxu0
  %v1808 = vadd.f32 %v1735, %v1807
  %v1809 = vpop.f32.mrf.mxu0
  %v1810 = vadd.f32 %v1737, %v1809
  %1811 = vmatmul.bf16.gmra.mxu0 %v749
  %v1812 = vpop.f32.mrf.mxu0
  %v1813 = vadd.f32 %v1740, %v1812
  %v1814 = vpop.f32.mrf.mxu0
  %v1815 = vadd.f32 %v1742, %v1814
  %1816 = vmatmul.bf16.gmra.mxu0 %v758
  %v1817 = vpop.f32.mrf.mxu0
  %v1818 = vadd.f32 %v1745, %v1817
  %v1819 = vpop.f32.mrf.mxu0
  %1820 = vdwg.mxu0
  %1821 = vmatpush.bf16.msra.mxu0 %v1229
  %1822 = vmatpush.bf16.msra.mxu0 %v1228
  %1823 = vmatpush.bf16.msra.mxu0 %v1227
  %1824 = vmatpush.bf16.msra.mxu0 %v1226
  %1825 = vmatpush.bf16.msra.mxu0 %v1225
  %1826 = vmatpush.bf16.msra.mxu0 %v1224
  %1827 = vmatpush.bf16.msra.mxu0 %v1223
  %1828 = vmatpush.bf16.msra.mxu0 %v1222
  %1829 = vmatmul.bf16.gmra.mxu0 %v651
  %v1830 = vpop.f32.mrf.mxu0
  %v1831 = vadd.f32 %v1758, %v1830
  %v1832 = vpop.f32.mrf.mxu0
  %v1833 = vadd.f32 %v1760, %v1832
  %1834 = vmatmul.bf16.gmra.mxu0 %v660
  %v1835 = vpop.f32.mrf.mxu0
  %v1836 = vadd.f32 %v1763, %v1835
  %v1837 = vpop.f32.mrf.mxu0
  %v1838 = vadd.f32 %v1765, %v1837
  %1839 = vmatmul.bf16.gmra.mxu0 %v669
  %v1840 = vpop.f32.mrf.mxu0
  %v1841 = vadd.f32 %v1768, %v1840
  %v1842 = vpop.f32.mrf.mxu0
  %v1843 = vadd.f32 %v1770, %v1842
  %1844 = vmatmul.bf16.gmra.mxu0 %v678
  %v1845 = vpop.f32.mrf.mxu0
  %v1846 = vadd.f32 %v1773, %v1845
  %v1847 = vpop.f32.mrf.mxu0
  %v1848 = vadd.f32 %v1775, %v1847
  %1849 = vmatmul.bf16.gmra.mxu0 %v687
  %v1850 = vpop.f32.mrf.mxu0
  %v1851 = vadd.f32 %v1778, %v1850
  %v1852 = vpop.f32.mrf.mxu0
  %v1853 = vadd.f32 %v1780, %v1852
  %1854 = vmatmul.bf16.gmra.mxu0 %v696
  %v1855 = vpop.f32.mrf.mxu0
  %v1856 = vadd.f32 %v1783, %v1855
  %v1857 = vpop.f32.mrf.mxu0
  %v1858 = vadd.f32 %v1785, %v1857
  %1859 = vmatmul.bf16.gmra.mxu0 %v705
  %v1860 = vpop.f32.mrf.mxu0
  %v1861 = vadd.f32 %v1788, %v1860
  %v1862 = vpop.f32.mrf.mxu0
  %v1863 = vadd.f32 %v1790, %v1862
  %1864 = vmatmul.bf16.gmra.mxu0 %v714
  %v1865 = vpop.f32.mrf.mxu0
  %v1866 = vadd.f32 %v1793, %v1865
  %v1867 = vpop.f32.mrf.mxu0
  %v1868 = vadd.f32 %v1795, %v1867
  %1869 = vmatmul.bf16.gmra.mxu0 %v723
  %v1870 = vpop.f32.mrf.mxu0
  %v1871 = vadd.f32 %v1798, %v1870
  %v1872 = vpop.f32.mrf.mxu0
  %v1873 = vadd.f32 %v1800, %v1872
  %1874 = vmatmul.bf16.gmra.mxu0 %v732
  %v1875 = vpop.f32.mrf.mxu0
  %v1876 = vadd.f32 %v1803, %v1875
  %v1877 = vpop.f32.mrf.mxu0
  %v1878 = vadd.f32 %v1805, %v1877
  %1879 = vmatmul.bf16.gmra.mxu0 %v741
  %v1880 = vpop.f32.mrf.mxu0
  %v1881 = vadd.f32 %v1808, %v1880
  %v1882 = vpop.f32.mrf.mxu0
  %v1883 = vadd.f32 %v1810, %v1882
  %1884 = vmatmul.bf16.gmra.mxu0 %v750
  %v1885 = vpop.f32.mrf.mxu0
  %v1886 = vadd.f32 %v1813, %v1885
  %v1887 = vpop.f32.mrf.mxu0
  %v1888 = vadd.f32 %v1815, %v1887
  %1889 = vmatmul.bf16.gmra.mxu0 %v759
  %v1890 = vpop.f32.mrf.mxu0
  %v1891 = vadd.f32 %v1818, %v1890
  %v1892 = vpop.f32.mrf.mxu0
  %1893 = vdwg.mxu0
  %1894 = vmatpush.bf16.msra.mxu0 %v1237
  %1895 = vmatpush.bf16.msra.mxu0 %v1236
  %1896 = vmatpush.bf16.msra.mxu0 %v1235
  %1897 = vmatpush.bf16.msra.mxu0 %v1234
  %1898 = vmatpush.bf16.msra.mxu0 %v1233
  %1899 = vmatpush.bf16.msra.mxu0 %v1232
  %1900 = vmatpush.bf16.msra.mxu0 %v1231
  %1901 = vmatpush.bf16.msra.mxu0 %v1230
  %1902 = vmatmul.bf16.gmra.mxu0 %v652
  %v1903 = vpop.f32.mrf.mxu0
  %v1904 = vadd.f32 %v1831, %v1903
  %v1905 = vpop.f32.mrf.mxu0
  %v1906 = vadd.f32 %v1833, %v1905
  %1907 = vmatmul.bf16.gmra.mxu0 %v661
  %v1908 = vpop.f32.mrf.mxu0
  %v1909 = vadd.f32 %v1836, %v1908
  %v1910 = vpop.f32.mrf.mxu0
  %v1911 = vadd.f32 %v1838, %v1910
  %1912 = vmatmul.bf16.gmra.mxu0 %v670
  %v1913 = vpop.f32.mrf.mxu0
  %v1914 = vadd.f32 %v1841, %v1913
  %v1915 = vpop.f32.mrf.mxu0
  %v1916 = vadd.f32 %v1843, %v1915
  %1917 = vmatmul.bf16.gmra.mxu0 %v679
  %v1918 = vpop.f32.mrf.mxu0
  %v1919 = vadd.f32 %v1846, %v1918
  %v1920 = vpop.f32.mrf.mxu0
  %v1921 = vadd.f32 %v1848, %v1920
  %1922 = vmatmul.bf16.gmra.mxu0 %v688
  %v1923 = vpop.f32.mrf.mxu0
  %v1924 = vadd.f32 %v1851, %v1923
  %v1925 = vpop.f32.mrf.mxu0
  %v1926 = vadd.f32 %v1853, %v1925
  %1927 = vmatmul.bf16.gmra.mxu0 %v697
  %v1928 = vpop.f32.mrf.mxu0
  %v1929 = vadd.f32 %v1856, %v1928
  %v1930 = vpop.f32.mrf.mxu0
  %v1931 = vadd.f32 %v1858, %v1930
  %1932 = vmatmul.bf16.gmra.mxu0 %v706
  %v1933 = vpop.f32.mrf.mxu0
  %v1934 = vadd.f32 %v1861, %v1933
  %v1935 = vpop.f32.mrf.mxu0
  %v1936 = vadd.f32 %v1863, %v1935
  %1937 = vmatmul.bf16.gmra.mxu0 %v715
  %v1938 = vpop.f32.mrf.mxu0
  %v1939 = vadd.f32 %v1866, %v1938
  %v1940 = vpop.f32.mrf.mxu0
  %v1941 = vadd.f32 %v1868, %v1940
  %1942 = vmatmul.bf16.gmra.mxu0 %v724
  %v1943 = vpop.f32.mrf.mxu0
  %v1944 = vadd.f32 %v1871, %v1943
  %v1945 = vpop.f32.mrf.mxu0
  %v1946 = vadd.f32 %v1873, %v1945
  %1947 = vmatmul.bf16.gmra.mxu0 %v733
  %v1948 = vpop.f32.mrf.mxu0
  %v1949 = vadd.f32 %v1876, %v1948
  %v1950 = vpop.f32.mrf.mxu0
  %v1951 = vadd.f32 %v1878, %v1950
  %1952 = vmatmul.bf16.gmra.mxu0 %v742
  %v1953 = vpop.f32.mrf.mxu0
  %v1954 = vadd.f32 %v1881, %v1953
  %v1955 = vpop.f32.mrf.mxu0
  %v1956 = vadd.f32 %v1883, %v1955
  %1957 = vmatmul.bf16.gmra.mxu0 %v751
  %v1958 = vpop.f32.mrf.mxu0
  %v1959 = vadd.f32 %v1886, %v1958
  %v1960 = vpop.f32.mrf.mxu0
  %v1961 = vadd.f32 %v1888, %v1960
  %1962 = vmatmul.bf16.gmra.mxu0 %v760
  %v1963 = vpop.f32.mrf.mxu0
  %v1964 = vadd.f32 %v1891, %v1963
  %v1965 = vpop.f32.mrf.mxu0
  %1966 = vdwg.mxu0
  %v1967 = vmax.f32 %v1904, 0.0
  %v1968 = vmax.f32 %v1906, 0.0
  %v1969 = vmax.f32 %v1909, 0.0
  %v1970 = vmax.f32 %v1911, 0.0
  %v1971 = vmax.f32 %v1914, 0.0
  %v1972 = vmax.f32 %v1916, 0.0
  %v1973 = vmax.f32 %v1919, 0.0
  %v1974 = vmax.f32 %v1921, 0.0
  %v1975 = vmax.f32 %v1924, 0.0
  %v1976 = vmax.f32 %v1926, 0.0
  %v1977 = vmax.f32 %v1929, 0.0
  %v1978 = vmax.f32 %v1931, 0.0
  %v1979 = vmax.f32 %v1934, 0.0
  %v1980 = vmax.f32 %v1936, 0.0
  %v1981 = vmax.f32 %v1939, 0.0
  %v1982 = vmax.f32 %v1941, 0.0
  %v1983 = vmax.f32 %v1944, 0.0
  %v1984 = vmax.f32 %v1946, 0.0
  %v1985 = vmax.f32 %v1949, 0.0
  %v1986 = vmax.f32 %v1951, 0.0
  %v1987 = vmax.f32 %v1954, 0.0
  %v1988 = vmax.f32 %v1956, 0.0
  %v1989 = vmax.f32 %v1959, 0.0
  %v1990 = vmax.f32 %v1961, 0.0
  %v1991 = vmax.f32 %v1964, 0.0
  %v1992 = vpack.c.bf16 %v1967, %v1967
  %v1993 = vpack.c.bf16 %v1968, %v1968
  %v1994 = vpack.c.bf16 %v1969, %v1969
  %v1995 = vpack.c.bf16 %v1970, %v1970
  %v1996 = vpack.c.bf16 %v1971, %v1971
  %v1997 = vpack.c.bf16 %v1972, %v1972
  %v1998 = vpack.c.bf16 %v1973, %v1973
  %v1999 = vpack.c.bf16 %v1974, %v1974
  %v2000 = vpack.c.bf16 %v1975, %v1975
  %v2001 = vpack.c.bf16 %v1976, %v1976
  %v2002 = vpack.c.bf16 %v1977, %v1977
  %v2003 = vpack.c.bf16 %v1978, %v1978
  %v2004 = vpack.c.bf16 %v1979, %v1979
  %v2005 = vpack.c.bf16 %v1980, %v1980
  %v2006 = vpack.c.bf16 %v1981, %v1981
  %v2007 = vpack.c.bf16 %v1982, %v1982
  %v2008 = vpack.c.bf16 %v1983, %v1983
  %v2009 = vpack.c.bf16 %v1984, %v1984
  %v2010 = vpack.c.bf16 %v1985, %v1985
  %v2011 = vpack.c.bf16 %v1986, %v1986
  %v2012 = vpack.c.bf16 %v1987, %v1987
  %v2013 = vpack.c.bf16 %v1988, %v1988
  %v2014 = vpack.c.bf16 %v1989, %v1989
  %v2015 = vpack.c.bf16 %v1990, %v1990
  %v2016 = vpack.c.bf16 %v1991, %v1991
  %vm2017 = vcmask 519168
  %2018 = vst.msk [vmem:[#allocation2] sm:$0xf] %vm2017, %v1992
  %2019 = vst.msk [vmem:[#allocation2 + $0x4] sm:$0xf] %vm2017, %v1993
  %2020 = vst.msk [vmem:[#allocation2 + $0x8] sm:$0xf] %vm2017, %v1994
  %2021 = vst.msk [vmem:[#allocation2 + $0xc] sm:$0xf] %vm2017, %v1995
  %2022 = vst.msk [vmem:[#allocation2 + $0x10] sm:$0xf] %vm2017, %v1996
  %2023 = vst.msk [vmem:[#allocation2 + $0x14] sm:$0xf] %vm2017, %v1997
  %2024 = vst.msk [vmem:[#allocation2 + $0x18] sm:$0xf] %vm2017, %v1998
  %2025 = vst.msk [vmem:[#allocation2 + $0x1c] sm:$0xf] %vm2017, %v1999
  %2026 = vst.msk [vmem:[#allocation2 + $0x20] sm:$0xf] %vm2017, %v2000
  %2027 = vst.msk [vmem:[#allocation2 + $0x24] sm:$0xf] %vm2017, %v2001
  %2028 = vst.msk [vmem:[#allocation2 + $0x28] sm:$0xf] %vm2017, %v2002
  %2029 = vst.msk [vmem:[#allocation2 + $0x2c] sm:$0xf] %vm2017, %v2003
  %2030 = vst.msk [vmem:[#allocation2 + $0x30] sm:$0xf] %vm2017, %v2004
  %2031 = vst.msk [vmem:[#allocation2 + $0x34] sm:$0xf] %vm2017, %v2005
  %2032 = vst.msk [vmem:[#allocation2 + $0x38] sm:$0xf] %vm2017, %v2006
  %2033 = vst.msk [vmem:[#allocation2 + $0x3c] sm:$0xf] %vm2017, %v2007
  %2034 = vst.msk [vmem:[#allocation2 + $0x40] sm:$0xf] %vm2017, %v2008
  %2035 = vst.msk [vmem:[#allocation2 + $0x44] sm:$0xf] %vm2017, %v2009
  %2036 = vst.msk [vmem:[#allocation2 + $0x48] sm:$0xf] %vm2017, %v2010
  %2037 = vst.msk [vmem:[#allocation2 + $0x4c] sm:$0xf] %vm2017, %v2011
  %2038 = vst.msk [vmem:[#allocation2 + $0x50] sm:$0xf] %vm2017, %v2012
  %2039 = vst.msk [vmem:[#allocation2 + $0x54] sm:$0xf] %vm2017, %v2013
  %2040 = vst.msk [vmem:[#allocation2 + $0x58] sm:$0xf] %vm2017, %v2014
  %2041 = vst.msk [vmem:[#allocation2 + $0x5c] sm:$0xf] %vm2017, %v2015
  %2042 = vst.msk [vmem:[#allocation2 + $0x60] sm:$0xf] %vm2017, %v2016
  %v2043 = vld [vmem:[#allocation2] sm:$0xf]
  %v2044 = vld [vmem:[%s3] sm:$0xf]
  %v2045 = vld [vmem:[%s3 + $0x4] sm:$0xf]
  %v2046 = vld [vmem:[%s3 + $0x8] sm:$0xf]
  %v2047 = vld [vmem:[%s3 + $0xc] sm:$0xf]
  %v2048 = vld [vmem:[%s3 + $0x10] sm:$0xf]
  %v2049 = vld [vmem:[%s3 + $0x14] sm:$0xf]
  %v2050 = vld [vmem:[%s3 + $0x18] sm:$0xf]
  %v2051 = vld [vmem:[%s3 + $0x1c] sm:$0xf]
  %v2052 = vld [vmem:[#allocation2 + $0x4] sm:$0xf]
  %s2053 = scalar_lea.vmem %s3, 32
  %v2054 = vld [vmem:[%s2053] sm:$0xf]
  %v2055 = vld [vmem:[%s2053 + $0x4] sm:$0xf]
  %v2056 = vld [vmem:[%s2053 + $0x8] sm:$0xf]
  %v2057 = vld [vmem:[%s2053 + $0xc] sm:$0xf]
  %v2058 = vld [vmem:[%s2053 + $0x10] sm:$0xf]
  %v2059 = vld [vmem:[%s2053 + $0x14] sm:$0xf]
  %v2060 = vld [vmem:[%s2053 + $0x18] sm:$0xf]
  %v2061 = vld [vmem:[%s2053 + $0x1c] sm:$0xf]
  %v2070 = vunpack.c.l.b16 %v2054
  %v2071 = vunpack.c.l.b16 %v2055
  %v2072 = vunpack.c.l.b16 %v2056
  %v2073 = vunpack.c.l.b16 %v2057
  %v2074 = vunpack.c.l.b16 %v2058
  %v2075 = vunpack.c.l.b16 %v2059
  %v2076 = vunpack.c.l.b16 %v2060
  %v2077 = vunpack.c.l.b16 %v2061
  %v2078 = vpack.c.b16 %v2071, %v2070
  %v2079 = vpack.c.b16 %v2073, %v2072
  %v2080 = vpack.c.b16 %v2075, %v2074
  %v2081 = vpack.c.b16 %v2077, %v2076
  %vm2086 = vcmask 523264
  %v2088 = vsel %vm2086, %v2052, 0
  %2090 = vmatpush.bf16.msra.mxu0 0
  %2091 = vmatpush.bf16.msra.mxu0 0
  %2092 = vmatpush.bf16.msra.mxu0 0
  %2093 = vmatpush.bf16.msra.mxu0 0
  %2094 = vmatpush.bf16.msra.mxu0 %v2081
  %2095 = vmatpush.bf16.msra.mxu0 %v2080
  %2096 = vmatpush.bf16.msra.mxu0 %v2079
  %2097 = vmatpush.bf16.msra.mxu0 %v2078
  %2098 = vmatmul.bf16.gmra.mxu0 %v2088
  %v2099 = vpop.f32.mrf.mxu0
  %v2100 = vadd.f32 0.0, %v2099
  %v2101 = vpop.f32.mrf.mxu0
  %2102 = vdwg.mxu0
  %v2111 = vunpack.c.l.b16 %v2044
  %v2112 = vunpack.c.l.b16 %v2045
  %v2113 = vunpack.c.l.b16 %v2046
  %v2114 = vunpack.c.l.b16 %v2047
  %v2115 = vunpack.c.l.b16 %v2048
  %v2116 = vunpack.c.l.b16 %v2049
  %v2117 = vunpack.c.l.b16 %v2050
  %v2118 = vunpack.c.l.b16 %v2051
  %v2119 = vpack.c.b16 %v2112, %v2111
  %v2120 = vpack.c.b16 %v2114, %v2113
  %v2121 = vpack.c.b16 %v2116, %v2115
  %v2122 = vpack.c.b16 %v2118, %v2117
  %v2128 = vsel %vm2086, %v2043, 0
  %2130 = vmatpush.bf16.msra.mxu0 0
  %2131 = vmatpush.bf16.msra.mxu0 0
  %2132 = vmatpush.bf16.msra.mxu0 0
  %2133 = vmatpush.bf16.msra.mxu0 0
  %2134 = vmatpush.bf16.msra.mxu0 %v2122
  %2135 = vmatpush.bf16.msra.mxu0 %v2121
  %2136 = vmatpush.bf16.msra.mxu0 %v2120
  %2137 = vmatpush.bf16.msra.mxu0 %v2119
  %2138 = vmatmul.bf16.gmra.mxu0 %v2128
  %v2139 = vpop.f32.mrf.mxu0
  %v2140 = vadd.f32 %v2100, %v2139
  %v2141 = vpop.f32.mrf.mxu0
  %2142 = vdwg.mxu0
  %v2143 = vld [vmem:[#allocation2 + $0x8] sm:$0xf]
  %s2144 = scalar_lea.vmem %s3, 64
  %v2145 = vld [vmem:[%s2144] sm:$0xf]
  %v2146 = vld [vmem:[%s2144 + $0x4] sm:$0xf]
  %v2147 = vld [vmem:[%s2144 + $0x8] sm:$0xf]
  %v2148 = vld [vmem:[%s2144 + $0xc] sm:$0xf]
  %v2149 = vld [vmem:[%s2144 + $0x10] sm:$0xf]
  %v2150 = vld [vmem:[%s2144 + $0x14] sm:$0xf]
  %v2151 = vld [vmem:[%s2144 + $0x18] sm:$0xf]
  %v2152 = vld [vmem:[%s2144 + $0x1c] sm:$0xf]
  %v2161 = vunpack.c.l.b16 %v2145
  %v2162 = vunpack.c.l.b16 %v2146
  %v2163 = vunpack.c.l.b16 %v2147
  %v2164 = vunpack.c.l.b16 %v2148
  %v2165 = vunpack.c.l.b16 %v2149
  %v2166 = vunpack.c.l.b16 %v2150
  %v2167 = vunpack.c.l.b16 %v2151
  %v2168 = vunpack.c.l.b16 %v2152
  %v2169 = vpack.c.b16 %v2162, %v2161
  %v2170 = vpack.c.b16 %v2164, %v2163
  %v2171 = vpack.c.b16 %v2166, %v2165
  %v2172 = vpack.c.b16 %v2168, %v2167
  %v2178 = vsel %vm2086, %v2143, 0
  %2180 = vmatpush.bf16.msra.mxu0 0
  %2181 = vmatpush.bf16.msra.mxu0 0
  %2182 = vmatpush.bf16.msra.mxu0 0
  %2183 = vmatpush.bf16.msra.mxu0 0
  %2184 = vmatpush.bf16.msra.mxu0 %v2172
  %2185 = vmatpush.bf16.msra.mxu0 %v2171
  %2186 = vmatpush.bf16.msra.mxu0 %v2170
  %2187 = vmatpush.bf16.msra.mxu0 %v2169
  %2188 = vmatmul.bf16.gmra.mxu0 %v2178
  %v2189 = vpop.f32.mrf.mxu0
  %v2190 = vadd.f32 0.0, %v2189
  %v2191 = vpop.f32.mrf.mxu0
  %2192 = vdwg.mxu0
  %v2193 = vadd.f32 %v2140, %v2190
  %v2194 = vld [vmem:[#allocation2 + $0xc] sm:$0xf]
  %s2195 = scalar_lea.vmem %s3, 96
  %v2196 = vld [vmem:[%s2195] sm:$0xf]
  %v2197 = vld [vmem:[%s2195 + $0x4] sm:$0xf]
  %v2198 = vld [vmem:[%s2195 + $0x8] sm:$0xf]
  %v2199 = vld [vmem:[%s2195 + $0xc] sm:$0xf]
  %v2200 = vld [vmem:[%s2195 + $0x10] sm:$0xf]
  %v2201 = vld [vmem:[%s2195 + $0x14] sm:$0xf]
  %v2202 = vld [vmem:[%s2195 + $0x18] sm:$0xf]
  %v2203 = vld [vmem:[%s2195 + $0x1c] sm:$0xf]
  %v2212 = vunpack.c.l.b16 %v2196
  %v2213 = vunpack.c.l.b16 %v2197
  %v2214 = vunpack.c.l.b16 %v2198
  %v2215 = vunpack.c.l.b16 %v2199
  %v2216 = vunpack.c.l.b16 %v2200
  %v2217 = vunpack.c.l.b16 %v2201
  %v2218 = vunpack.c.l.b16 %v2202
  %v2219 = vunpack.c.l.b16 %v2203
  %v2220 = vpack.c.b16 %v2213, %v2212
  %v2221 = vpack.c.b16 %v2215, %v2214
  %v2222 = vpack.c.b16 %v2217, %v2216
  %v2223 = vpack.c.b16 %v2219, %v2218
  %v2229 = vsel %vm2086, %v2194, 0
  %2231 = vmatpush.bf16.msra.mxu0 0
  %2232 = vmatpush.bf16.msra.mxu0 0
  %2233 = vmatpush.bf16.msra.mxu0 0
  %2234 = vmatpush.bf16.msra.mxu0 0
  %2235 = vmatpush.bf16.msra.mxu0 %v2223
  %2236 = vmatpush.bf16.msra.mxu0 %v2222
  %2237 = vmatpush.bf16.msra.mxu0 %v2221
  %2238 = vmatpush.bf16.msra.mxu0 %v2220
  %2239 = vmatmul.bf16.gmra.mxu0 %v2229
  %v2240 = vpop.f32.mrf.mxu0
  %v2241 = vadd.f32 0.0, %v2240
  %v2242 = vpop.f32.mrf.mxu0
  %2243 = vdwg.mxu0
  %v2244 = vadd.f32 %v2193, %v2241
  %v2245 = vld [vmem:[#allocation2 + $0x10] sm:$0xf]
  %s2246 = scalar_lea.vmem %s3, 128
  %v2247 = vld [vmem:[%s2246] sm:$0xf]
  %v2248 = vld [vmem:[%s2246 + $0x4] sm:$0xf]
  %v2249 = vld [vmem:[%s2246 + $0x8] sm:$0xf]
  %v2250 = vld [vmem:[%s2246 + $0xc] sm:$0xf]
  %v2251 = vld [vmem:[%s2246 + $0x10] sm:$0xf]
  %v2252 = vld [vmem:[%s2246 + $0x14] sm:$0xf]
  %v2253 = vld [vmem:[%s2246 + $0x18] sm:$0xf]
  %v2254 = vld [vmem:[%s2246 + $0x1c] sm:$0xf]
  %v2263 = vunpack.c.l.b16 %v2247
  %v2264 = vunpack.c.l.b16 %v2248
  %v2265 = vunpack.c.l.b16 %v2249
  %v2266 = vunpack.c.l.b16 %v2250
  %v2267 = vunpack.c.l.b16 %v2251
  %v2268 = vunpack.c.l.b16 %v2252
  %v2269 = vunpack.c.l.b16 %v2253
  %v2270 = vunpack.c.l.b16 %v2254
  %v2271 = vpack.c.b16 %v2264, %v2263
  %v2272 = vpack.c.b16 %v2266, %v2265
  %v2273 = vpack.c.b16 %v2268, %v2267
  %v2274 = vpack.c.b16 %v2270, %v2269
  %v2280 = vsel %vm2086, %v2245, 0
  %2282 = vmatpush.bf16.msra.mxu0 0
  %2283 = vmatpush.bf16.msra.mxu0 0
  %2284 = vmatpush.bf16.msra.mxu0 0
  %2285 = vmatpush.bf16.msra.mxu0 0
  %2286 = vmatpush.bf16.msra.mxu0 %v2274
  %2287 = vmatpush.bf16.msra.mxu0 %v2273
  %2288 = vmatpush.bf16.msra.mxu0 %v2272
  %2289 = vmatpush.bf16.msra.mxu0 %v2271
  %2290 = vmatmul.bf16.gmra.mxu0 %v2280
  %v2291 = vpop.f32.mrf.mxu0
  %v2292 = vadd.f32 0.0, %v2291
  %v2293 = vpop.f32.mrf.mxu0
  %2294 = vdwg.mxu0
  %v2295 = vadd.f32 %v2244, %v2292
  %v2296 = vld [vmem:[#allocation2 + $0x14] sm:$0xf]
  %s2297 = scalar_lea.vmem %s3, 160
  %v2298 = vld [vmem:[%s2297] sm:$0xf]
  %v2299 = vld [vmem:[%s2297 + $0x4] sm:$0xf]
  %v2300 = vld [vmem:[%s2297 + $0x8] sm:$0xf]
  %v2301 = vld [vmem:[%s2297 + $0xc] sm:$0xf]
  %v2302 = vld [vmem:[%s2297 + $0x10] sm:$0xf]
  %v2303 = vld [vmem:[%s2297 + $0x14] sm:$0xf]
  %v2304 = vld [vmem:[%s2297 + $0x18] sm:$0xf]
  %v2305 = vld [vmem:[%s2297 + $0x1c] sm:$0xf]
  %v2314 = vunpack.c.l.b16 %v2298
  %v2315 = vunpack.c.l.b16 %v2299
  %v2316 = vunpack.c.l.b16 %v2300
  %v2317 = vunpack.c.l.b16 %v2301
  %v2318 = vunpack.c.l.b16 %v2302
  %v2319 = vunpack.c.l.b16 %v2303
  %v2320 = vunpack.c.l.b16 %v2304
  %v2321 = vunpack.c.l.b16 %v2305
  %v2322 = vpack.c.b16 %v2315, %v2314
  %v2323 = vpack.c.b16 %v2317, %v2316
  %v2324 = vpack.c.b16 %v2319, %v2318
  %v2325 = vpack.c.b16 %v2321, %v2320
  %v2331 = vsel %vm2086, %v2296, 0
  %2333 = vmatpush.bf16.msra.mxu0 0
  %2334 = vmatpush.bf16.msra.mxu0 0
  %2335 = vmatpush.bf16.msra.mxu0 0
  %2336 = vmatpush.bf16.msra.mxu0 0
  %2337 = vmatpush.bf16.msra.mxu0 %v2325
  %2338 = vmatpush.bf16.msra.mxu0 %v2324
  %2339 = vmatpush.bf16.msra.mxu0 %v2323
  %2340 = vmatpush.bf16.msra.mxu0 %v2322
  %2341 = vmatmul.bf16.gmra.mxu0 %v2331
  %v2342 = vpop.f32.mrf.mxu0
  %v2343 = vadd.f32 0.0, %v2342
  %v2344 = vpop.f32.mrf.mxu0
  %2345 = vdwg.mxu0
  %v2346 = vadd.f32 %v2295, %v2343
  %v2347 = vld [vmem:[#allocation2 + $0x18] sm:$0xf]
  %s2348 = scalar_lea.vmem %s3, 192
  %v2349 = vld [vmem:[%s2348] sm:$0xf]
  %v2350 = vld [vmem:[%s2348 + $0x4] sm:$0xf]
  %v2351 = vld [vmem:[%s2348 + $0x8] sm:$0xf]
  %v2352 = vld [vmem:[%s2348 + $0xc] sm:$0xf]
  %v2353 = vld [vmem:[%s2348 + $0x10] sm:$0xf]
  %v2354 = vld [vmem:[%s2348 + $0x14] sm:$0xf]
  %v2355 = vld [vmem:[%s2348 + $0x18] sm:$0xf]
  %v2356 = vld [vmem:[%s2348 + $0x1c] sm:$0xf]
  %v2365 = vunpack.c.l.b16 %v2349
  %v2366 = vunpack.c.l.b16 %v2350
  %v2367 = vunpack.c.l.b16 %v2351
  %v2368 = vunpack.c.l.b16 %v2352
  %v2369 = vunpack.c.l.b16 %v2353
  %v2370 = vunpack.c.l.b16 %v2354
  %v2371 = vunpack.c.l.b16 %v2355
  %v2372 = vunpack.c.l.b16 %v2356
  %v2373 = vpack.c.b16 %v2366, %v2365
  %v2374 = vpack.c.b16 %v2368, %v2367
  %v2375 = vpack.c.b16 %v2370, %v2369
  %v2376 = vpack.c.b16 %v2372, %v2371
  %v2382 = vsel %vm2086, %v2347, 0
  %2384 = vmatpush.bf16.msra.mxu0 0
  %2385 = vmatpush.bf16.msra.mxu0 0
  %2386 = vmatpush.bf16.msra.mxu0 0
  %2387 = vmatpush.bf16.msra.mxu0 0
  %2388 = vmatpush.bf16.msra.mxu0 %v2376
  %2389 = vmatpush.bf16.msra.mxu0 %v2375
  %2390 = vmatpush.bf16.msra.mxu0 %v2374
  %2391 = vmatpush.bf16.msra.mxu0 %v2373
  %2392 = vmatmul.bf16.gmra.mxu0 %v2382
  %v2393 = vpop.f32.mrf.mxu0
  %v2394 = vadd.f32 0.0, %v2393
  %v2395 = vpop.f32.mrf.mxu0
  %2396 = vdwg.mxu0
  %v2397 = vadd.f32 %v2346, %v2394
  %v2398 = vld [vmem:[#allocation2 + $0x1c] sm:$0xf]
  %s2399 = scalar_lea.vmem %s3, 224
  %v2400 = vld [vmem:[%s2399] sm:$0xf]
  %v2401 = vld [vmem:[%s2399 + $0x4] sm:$0xf]
  %v2402 = vld [vmem:[%s2399 + $0x8] sm:$0xf]
  %v2403 = vld [vmem:[%s2399 + $0xc] sm:$0xf]
  %v2404 = vld [vmem:[%s2399 + $0x10] sm:$0xf]
  %v2405 = vld [vmem:[%s2399 + $0x14] sm:$0xf]
  %v2406 = vld [vmem:[%s2399 + $0x18] sm:$0xf]
  %v2407 = vld [vmem:[%s2399 + $0x1c] sm:$0xf]
  %v2416 = vunpack.c.l.b16 %v2400
  %v2417 = vunpack.c.l.b16 %v2401
  %v2418 = vunpack.c.l.b16 %v2402
  %v2419 = vunpack.c.l.b16 %v2403
  %v2420 = vunpack.c.l.b16 %v2404
  %v2421 = vunpack.c.l.b16 %v2405
  %v2422 = vunpack.c.l.b16 %v2406
  %v2423 = vunpack.c.l.b16 %v2407
  %v2424 = vpack.c.b16 %v2417, %v2416
  %v2425 = vpack.c.b16 %v2419, %v2418
  %v2426 = vpack.c.b16 %v2421, %v2420
  %v2427 = vpack.c.b16 %v2423, %v2422
  %v2433 = vsel %vm2086, %v2398, 0
  %2435 = vmatpush.bf16.msra.mxu0 0
  %2436 = vmatpush.bf16.msra.mxu0 0
  %2437 = vmatpush.bf16.msra.mxu0 0
  %2438 = vmatpush.bf16.msra.mxu0 0
  %2439 = vmatpush.bf16.msra.mxu0 %v2427
  %2440 = vmatpush.bf16.msra.mxu0 %v2426
  %2441 = vmatpush.bf16.msra.mxu0 %v2425
  %2442 = vmatpush.bf16.msra.mxu0 %v2424
  %2443 = vmatmul.bf16.gmra.mxu0 %v2433
  %v2444 = vpop.f32.mrf.mxu0
  %v2445 = vadd.f32 0.0, %v2444
  %v2446 = vpop.f32.mrf.mxu0
  %2447 = vdwg.mxu0
  %v2448 = vadd.f32 %v2397, %v2445
  %v2449 = vld [vmem:[#allocation2 + $0x20] sm:$0xf]
  %s2450 = scalar_lea.vmem %s3, 256
  %v2451 = vld [vmem:[%s2450] sm:$0xf]
  %v2452 = vld [vmem:[%s2450 + $0x4] sm:$0xf]
  %v2453 = vld [vmem:[%s2450 + $0x8] sm:$0xf]
  %v2454 = vld [vmem:[%s2450 + $0xc] sm:$0xf]
  %v2455 = vld [vmem:[%s2450 + $0x10] sm:$0xf]
  %v2456 = vld [vmem:[%s2450 + $0x14] sm:$0xf]
  %v2457 = vld [vmem:[%s2450 + $0x18] sm:$0xf]
  %v2458 = vld [vmem:[%s2450 + $0x1c] sm:$0xf]
  %v2467 = vunpack.c.l.b16 %v2451
  %v2468 = vunpack.c.l.b16 %v2452
  %v2469 = vunpack.c.l.b16 %v2453
  %v2470 = vunpack.c.l.b16 %v2454
  %v2471 = vunpack.c.l.b16 %v2455
  %v2472 = vunpack.c.l.b16 %v2456
  %v2473 = vunpack.c.l.b16 %v2457
  %v2474 = vunpack.c.l.b16 %v2458
  %v2475 = vpack.c.b16 %v2468, %v2467
  %v2476 = vpack.c.b16 %v2470, %v2469
  %v2477 = vpack.c.b16 %v2472, %v2471
  %v2478 = vpack.c.b16 %v2474, %v2473
  %v2484 = vsel %vm2086, %v2449, 0
  %2486 = vmatpush.bf16.msra.mxu0 0
  %2487 = vmatpush.bf16.msra.mxu0 0
  %2488 = vmatpush.bf16.msra.mxu0 0
  %2489 = vmatpush.bf16.msra.mxu0 0
  %2490 = vmatpush.bf16.msra.mxu0 %v2478
  %2491 = vmatpush.bf16.msra.mxu0 %v2477
  %2492 = vmatpush.bf16.msra.mxu0 %v2476
  %2493 = vmatpush.bf16.msra.mxu0 %v2475
  %2494 = vmatmul.bf16.gmra.mxu0 %v2484
  %v2495 = vpop.f32.mrf.mxu0
  %v2496 = vadd.f32 0.0, %v2495
  %v2497 = vpop.f32.mrf.mxu0
  %2498 = vdwg.mxu0
  %v2499 = vadd.f32 %v2448, %v2496
  %v2500 = vld [vmem:[#allocation2 + $0x24] sm:$0xf]
  %s2501 = scalar_lea.vmem %s3, 288
  %v2502 = vld [vmem:[%s2501] sm:$0xf]
  %v2503 = vld [vmem:[%s2501 + $0x4] sm:$0xf]
  %v2504 = vld [vmem:[%s2501 + $0x8] sm:$0xf]
  %v2505 = vld [vmem:[%s2501 + $0xc] sm:$0xf]
  %v2506 = vld [vmem:[%s2501 + $0x10] sm:$0xf]
  %v2507 = vld [vmem:[%s2501 + $0x14] sm:$0xf]
  %v2508 = vld [vmem:[%s2501 + $0x18] sm:$0xf]
  %v2509 = vld [vmem:[%s2501 + $0x1c] sm:$0xf]
  %v2518 = vunpack.c.l.b16 %v2502
  %v2519 = vunpack.c.l.b16 %v2503
  %v2520 = vunpack.c.l.b16 %v2504
  %v2521 = vunpack.c.l.b16 %v2505
  %v2522 = vunpack.c.l.b16 %v2506
  %v2523 = vunpack.c.l.b16 %v2507
  %v2524 = vunpack.c.l.b16 %v2508
  %v2525 = vunpack.c.l.b16 %v2509
  %v2526 = vpack.c.b16 %v2519, %v2518
  %v2527 = vpack.c.b16 %v2521, %v2520
  %v2528 = vpack.c.b16 %v2523, %v2522
  %v2529 = vpack.c.b16 %v2525, %v2524
  %v2535 = vsel %vm2086, %v2500, 0
  %2537 = vmatpush.bf16.msra.mxu0 0
  %2538 = vmatpush.bf16.msra.mxu0 0
  %2539 = vmatpush.bf16.msra.mxu0 0
  %2540 = vmatpush.bf16.msra.mxu0 0
  %2541 = vmatpush.bf16.msra.mxu0 %v2529
  %2542 = vmatpush.bf16.msra.mxu0 %v2528
  %2543 = vmatpush.bf16.msra.mxu0 %v2527
  %2544 = vmatpush.bf16.msra.mxu0 %v2526
  %2545 = vmatmul.bf16.gmra.mxu0 %v2535
  %v2546 = vpop.f32.mrf.mxu0
  %v2547 = vadd.f32 0.0, %v2546
  %v2548 = vpop.f32.mrf.mxu0
  %2549 = vdwg.mxu0
  %v2550 = vadd.f32 %v2499, %v2547
  %v2551 = vld [vmem:[#allocation2 + $0x28] sm:$0xf]
  %s2552 = scalar_lea.vmem %s3, 320
  %v2553 = vld [vmem:[%s2552] sm:$0xf]
  %v2554 = vld [vmem:[%s2552 + $0x4] sm:$0xf]
  %v2555 = vld [vmem:[%s2552 + $0x8] sm:$0xf]
  %v2556 = vld [vmem:[%s2552 + $0xc] sm:$0xf]
  %v2557 = vld [vmem:[%s2552 + $0x10] sm:$0xf]
  %v2558 = vld [vmem:[%s2552 + $0x14] sm:$0xf]
  %v2559 = vld [vmem:[%s2552 + $0x18] sm:$0xf]
  %v2560 = vld [vmem:[%s2552 + $0x1c] sm:$0xf]
  %v2569 = vunpack.c.l.b16 %v2553
  %v2570 = vunpack.c.l.b16 %v2554
  %v2571 = vunpack.c.l.b16 %v2555
  %v2572 = vunpack.c.l.b16 %v2556
  %v2573 = vunpack.c.l.b16 %v2557
  %v2574 = vunpack.c.l.b16 %v2558
  %v2575 = vunpack.c.l.b16 %v2559
  %v2576 = vunpack.c.l.b16 %v2560
  %v2577 = vpack.c.b16 %v2570, %v2569
  %v2578 = vpack.c.b16 %v2572, %v2571
  %v2579 = vpack.c.b16 %v2574, %v2573
  %v2580 = vpack.c.b16 %v2576, %v2575
  %v2586 = vsel %vm2086, %v2551, 0
  %2588 = vmatpush.bf16.msra.mxu0 0
  %2589 = vmatpush.bf16.msra.mxu0 0
  %2590 = vmatpush.bf16.msra.mxu0 0
  %2591 = vmatpush.bf16.msra.mxu0 0
  %2592 = vmatpush.bf16.msra.mxu0 %v2580
  %2593 = vmatpush.bf16.msra.mxu0 %v2579
  %2594 = vmatpush.bf16.msra.mxu0 %v2578
  %2595 = vmatpush.bf16.msra.mxu0 %v2577
  %2596 = vmatmul.bf16.gmra.mxu0 %v2586
  %v2597 = vpop.f32.mrf.mxu0
  %v2598 = vadd.f32 0.0, %v2597
  %v2599 = vpop.f32.mrf.mxu0
  %2600 = vdwg.mxu0
  %v2601 = vadd.f32 %v2550, %v2598
  %v2602 = vld [vmem:[#allocation2 + $0x2c] sm:$0xf]
  %s2603 = scalar_lea.vmem %s3, 352
  %v2604 = vld [vmem:[%s2603] sm:$0xf]
  %v2605 = vld [vmem:[%s2603 + $0x4] sm:$0xf]
  %v2606 = vld [vmem:[%s2603 + $0x8] sm:$0xf]
  %v2607 = vld [vmem:[%s2603 + $0xc] sm:$0xf]
  %v2608 = vld [vmem:[%s2603 + $0x10] sm:$0xf]
  %v2609 = vld [vmem:[%s2603 + $0x14] sm:$0xf]
  %v2610 = vld [vmem:[%s2603 + $0x18] sm:$0xf]
  %v2611 = vld [vmem:[%s2603 + $0x1c] sm:$0xf]
  %v2620 = vunpack.c.l.b16 %v2604
  %v2621 = vunpack.c.l.b16 %v2605
  %v2622 = vunpack.c.l.b16 %v2606
  %v2623 = vunpack.c.l.b16 %v2607
  %v2624 = vunpack.c.l.b16 %v2608
  %v2625 = vunpack.c.l.b16 %v2609
  %v2626 = vunpack.c.l.b16 %v2610
  %v2627 = vunpack.c.l.b16 %v2611
  %v2628 = vpack.c.b16 %v2621, %v2620
  %v2629 = vpack.c.b16 %v2623, %v2622
  %v2630 = vpack.c.b16 %v2625, %v2624
  %v2631 = vpack.c.b16 %v2627, %v2626
  %v2637 = vsel %vm2086, %v2602, 0
  %2639 = vmatpush.bf16.msra.mxu0 0
  %2640 = vmatpush.bf16.msra.mxu0 0
  %2641 = vmatpush.bf16.msra.mxu0 0
  %2642 = vmatpush.bf16.msra.mxu0 0
  %2643 = vmatpush.bf16.msra.mxu0 %v2631
  %2644 = vmatpush.bf16.msra.mxu0 %v2630
  %2645 = vmatpush.bf16.msra.mxu0 %v2629
  %2646 = vmatpush.bf16.msra.mxu0 %v2628
  %2647 = vmatmul.bf16.gmra.mxu0 %v2637
  %v2648 = vpop.f32.mrf.mxu0
  %v2649 = vadd.f32 0.0, %v2648
  %v2650 = vpop.f32.mrf.mxu0
  %2651 = vdwg.mxu0
  %v2652 = vadd.f32 %v2601, %v2649
  %v2653 = vld [vmem:[#allocation2 + $0x30] sm:$0xf]
  %s2654 = scalar_lea.vmem %s3, 384
  %v2655 = vld [vmem:[%s2654] sm:$0xf]
  %v2656 = vld [vmem:[%s2654 + $0x4] sm:$0xf]
  %v2657 = vld [vmem:[%s2654 + $0x8] sm:$0xf]
  %v2658 = vld [vmem:[%s2654 + $0xc] sm:$0xf]
  %v2659 = vld [vmem:[%s2654 + $0x10] sm:$0xf]
  %v2660 = vld [vmem:[%s2654 + $0x14] sm:$0xf]
  %v2661 = vld [vmem:[%s2654 + $0x18] sm:$0xf]
  %v2662 = vld [vmem:[%s2654 + $0x1c] sm:$0xf]
  %v2671 = vunpack.c.l.b16 %v2655
  %v2672 = vunpack.c.l.b16 %v2656
  %v2673 = vunpack.c.l.b16 %v2657
  %v2674 = vunpack.c.l.b16 %v2658
  %v2675 = vunpack.c.l.b16 %v2659
  %v2676 = vunpack.c.l.b16 %v2660
  %v2677 = vunpack.c.l.b16 %v2661
  %v2678 = vunpack.c.l.b16 %v2662
  %v2679 = vpack.c.b16 %v2672, %v2671
  %v2680 = vpack.c.b16 %v2674, %v2673
  %v2681 = vpack.c.b16 %v2676, %v2675
  %v2682 = vpack.c.b16 %v2678, %v2677
  %v2688 = vsel %vm2086, %v2653, 0
  %2690 = vmatpush.bf16.msra.mxu0 0
  %2691 = vmatpush.bf16.msra.mxu0 0
  %2692 = vmatpush.bf16.msra.mxu0 0
  %2693 = vmatpush.bf16.msra.mxu0 0
  %2694 = vmatpush.bf16.msra.mxu0 %v2682
  %2695 = vmatpush.bf16.msra.mxu0 %v2681
  %2696 = vmatpush.bf16.msra.mxu0 %v2680
  %2697 = vmatpush.bf16.msra.mxu0 %v2679
  %2698 = vmatmul.bf16.gmra.mxu0 %v2688
  %v2699 = vpop.f32.mrf.mxu0
  %v2700 = vadd.f32 0.0, %v2699
  %v2701 = vpop.f32.mrf.mxu0
  %2702 = vdwg.mxu0
  %v2703 = vadd.f32 %v2652, %v2700
  %v2704 = vld [vmem:[#allocation2 + $0x34] sm:$0xf]
  %s2705 = scalar_lea.vmem %s3, 416
  %v2706 = vld [vmem:[%s2705] sm:$0xf]
  %v2707 = vld [vmem:[%s2705 + $0x4] sm:$0xf]
  %v2708 = vld [vmem:[%s2705 + $0x8] sm:$0xf]
  %v2709 = vld [vmem:[%s2705 + $0xc] sm:$0xf]
  %v2710 = vld [vmem:[%s2705 + $0x10] sm:$0xf]
  %v2711 = vld [vmem:[%s2705 + $0x14] sm:$0xf]
  %v2712 = vld [vmem:[%s2705 + $0x18] sm:$0xf]
  %v2713 = vld [vmem:[%s2705 + $0x1c] sm:$0xf]
  %v2722 = vunpack.c.l.b16 %v2706
  %v2723 = vunpack.c.l.b16 %v2707
  %v2724 = vunpack.c.l.b16 %v2708
  %v2725 = vunpack.c.l.b16 %v2709
  %v2726 = vunpack.c.l.b16 %v2710
  %v2727 = vunpack.c.l.b16 %v2711
  %v2728 = vunpack.c.l.b16 %v2712
  %v2729 = vunpack.c.l.b16 %v2713
  %v2730 = vpack.c.b16 %v2723, %v2722
  %v2731 = vpack.c.b16 %v2725, %v2724
  %v2732 = vpack.c.b16 %v2727, %v2726
  %v2733 = vpack.c.b16 %v2729, %v2728
  %v2739 = vsel %vm2086, %v2704, 0
  %2741 = vmatpush.bf16.msra.mxu0 0
  %2742 = vmatpush.bf16.msra.mxu0 0
  %2743 = vmatpush.bf16.msra.mxu0 0
  %2744 = vmatpush.bf16.msra.mxu0 0
  %2745 = vmatpush.bf16.msra.mxu0 %v2733
  %2746 = vmatpush.bf16.msra.mxu0 %v2732
  %2747 = vmatpush.bf16.msra.mxu0 %v2731
  %2748 = vmatpush.bf16.msra.mxu0 %v2730
  %2749 = vmatmul.bf16.gmra.mxu0 %v2739
  %v2750 = vpop.f32.mrf.mxu0
  %v2751 = vadd.f32 0.0, %v2750
  %v2752 = vpop.f32.mrf.mxu0
  %2753 = vdwg.mxu0
  %v2754 = vadd.f32 %v2703, %v2751
  %v2755 = vld [vmem:[#allocation2 + $0x38] sm:$0xf]
  %s2756 = scalar_lea.vmem %s3, 448
  %v2757 = vld [vmem:[%s2756] sm:$0xf]
  %v2758 = vld [vmem:[%s2756 + $0x4] sm:$0xf]
  %v2759 = vld [vmem:[%s2756 + $0x8] sm:$0xf]
  %v2760 = vld [vmem:[%s2756 + $0xc] sm:$0xf]
  %v2761 = vld [vmem:[%s2756 + $0x10] sm:$0xf]
  %v2762 = vld [vmem:[%s2756 + $0x14] sm:$0xf]
  %v2763 = vld [vmem:[%s2756 + $0x18] sm:$0xf]
  %v2764 = vld [vmem:[%s2756 + $0x1c] sm:$0xf]
  %v2773 = vunpack.c.l.b16 %v2757
  %v2774 = vunpack.c.l.b16 %v2758
  %v2775 = vunpack.c.l.b16 %v2759
  %v2776 = vunpack.c.l.b16 %v2760
  %v2777 = vunpack.c.l.b16 %v2761
  %v2778 = vunpack.c.l.b16 %v2762
  %v2779 = vunpack.c.l.b16 %v2763
  %v2780 = vunpack.c.l.b16 %v2764
  %v2781 = vpack.c.b16 %v2774, %v2773
  %v2782 = vpack.c.b16 %v2776, %v2775
  %v2783 = vpack.c.b16 %v2778, %v2777
  %v2784 = vpack.c.b16 %v2780, %v2779
  %v2790 = vsel %vm2086, %v2755, 0
  %2792 = vmatpush.bf16.msra.mxu0 0
  %2793 = vmatpush.bf16.msra.mxu0 0
  %2794 = vmatpush.bf16.msra.mxu0 0
  %2795 = vmatpush.bf16.msra.mxu0 0
  %2796 = vmatpush.bf16.msra.mxu0 %v2784
  %2797 = vmatpush.bf16.msra.mxu0 %v2783
  %2798 = vmatpush.bf16.msra.mxu0 %v2782
  %2799 = vmatpush.bf16.msra.mxu0 %v2781
  %2800 = vmatmul.bf16.gmra.mxu0 %v2790
  %v2801 = vpop.f32.mrf.mxu0
  %v2802 = vadd.f32 0.0, %v2801
  %v2803 = vpop.f32.mrf.mxu0
  %2804 = vdwg.mxu0
  %v2805 = vadd.f32 %v2754, %v2802
  %v2806 = vld [vmem:[#allocation2 + $0x3c] sm:$0xf]
  %s2807 = scalar_lea.vmem %s3, 480
  %v2808 = vld [vmem:[%s2807] sm:$0xf]
  %v2809 = vld [vmem:[%s2807 + $0x4] sm:$0xf]
  %v2810 = vld [vmem:[%s2807 + $0x8] sm:$0xf]
  %v2811 = vld [vmem:[%s2807 + $0xc] sm:$0xf]
  %v2812 = vld [vmem:[%s2807 + $0x10] sm:$0xf]
  %v2813 = vld [vmem:[%s2807 + $0x14] sm:$0xf]
  %v2814 = vld [vmem:[%s2807 + $0x18] sm:$0xf]
  %v2815 = vld [vmem:[%s2807 + $0x1c] sm:$0xf]
  %v2824 = vunpack.c.l.b16 %v2808
  %v2825 = vunpack.c.l.b16 %v2809
  %v2826 = vunpack.c.l.b16 %v2810
  %v2827 = vunpack.c.l.b16 %v2811
  %v2828 = vunpack.c.l.b16 %v2812
  %v2829 = vunpack.c.l.b16 %v2813
  %v2830 = vunpack.c.l.b16 %v2814
  %v2831 = vunpack.c.l.b16 %v2815
  %v2832 = vpack.c.b16 %v2825, %v2824
  %v2833 = vpack.c.b16 %v2827, %v2826
  %v2834 = vpack.c.b16 %v2829, %v2828
  %v2835 = vpack.c.b16 %v2831, %v2830
  %v2841 = vsel %vm2086, %v2806, 0
  %2843 = vmatpush.bf16.msra.mxu0 0
  %2844 = vmatpush.bf16.msra.mxu0 0
  %2845 = vmatpush.bf16.msra.mxu0 0
  %2846 = vmatpush.bf16.msra.mxu0 0
  %2847 = vmatpush.bf16.msra.mxu0 %v2835
  %2848 = vmatpush.bf16.msra.mxu0 %v2834
  %2849 = vmatpush.bf16.msra.mxu0 %v2833
  %2850 = vmatpush.bf16.msra.mxu0 %v2832
  %2851 = vmatmul.bf16.gmra.mxu0 %v2841
  %v2852 = vpop.f32.mrf.mxu0
  %v2853 = vadd.f32 0.0, %v2852
  %v2854 = vpop.f32.mrf.mxu0
  %2855 = vdwg.mxu0
  %v2856 = vadd.f32 %v2805, %v2853
  %v2857 = vld [vmem:[#allocation2 + $0x40] sm:$0xf]
  %s2858 = scalar_lea.vmem %s3, 512
  %v2859 = vld [vmem:[%s2858] sm:$0xf]
  %v2860 = vld [vmem:[%s2858 + $0x4] sm:$0xf]
  %v2861 = vld [vmem:[%s2858 + $0x8] sm:$0xf]
  %v2862 = vld [vmem:[%s2858 + $0xc] sm:$0xf]
  %v2863 = vld [vmem:[%s2858 + $0x10] sm:$0xf]
  %v2864 = vld [vmem:[%s2858 + $0x14] sm:$0xf]
  %v2865 = vld [vmem:[%s2858 + $0x18] sm:$0xf]
  %v2866 = vld [vmem:[%s2858 + $0x1c] sm:$0xf]
  %v2875 = vunpack.c.l.b16 %v2859
  %v2876 = vunpack.c.l.b16 %v2860
  %v2877 = vunpack.c.l.b16 %v2861
  %v2878 = vunpack.c.l.b16 %v2862
  %v2879 = vunpack.c.l.b16 %v2863
  %v2880 = vunpack.c.l.b16 %v2864
  %v2881 = vunpack.c.l.b16 %v2865
  %v2882 = vunpack.c.l.b16 %v2866
  %v2883 = vpack.c.b16 %v2876, %v2875
  %v2884 = vpack.c.b16 %v2878, %v2877
  %v2885 = vpack.c.b16 %v2880, %v2879
  %v2886 = vpack.c.b16 %v2882, %v2881
  %v2892 = vsel %vm2086, %v2857, 0
  %2894 = vmatpush.bf16.msra.mxu0 0
  %2895 = vmatpush.bf16.msra.mxu0 0
  %2896 = vmatpush.bf16.msra.mxu0 0
  %2897 = vmatpush.bf16.msra.mxu0 0
  %2898 = vmatpush.bf16.msra.mxu0 %v2886
  %2899 = vmatpush.bf16.msra.mxu0 %v2885
  %2900 = vmatpush.bf16.msra.mxu0 %v2884
  %2901 = vmatpush.bf16.msra.mxu0 %v2883
  %2902 = vmatmul.bf16.gmra.mxu0 %v2892
  %v2903 = vpop.f32.mrf.mxu0
  %v2904 = vadd.f32 0.0, %v2903
  %v2905 = vpop.f32.mrf.mxu0
  %2906 = vdwg.mxu0
  %v2907 = vadd.f32 %v2856, %v2904
  %v2908 = vld [vmem:[#allocation2 + $0x44] sm:$0xf]
  %s2909 = scalar_lea.vmem %s3, 544
  %v2910 = vld [vmem:[%s2909] sm:$0xf]
  %v2911 = vld [vmem:[%s2909 + $0x4] sm:$0xf]
  %v2912 = vld [vmem:[%s2909 + $0x8] sm:$0xf]
  %v2913 = vld [vmem:[%s2909 + $0xc] sm:$0xf]
  %v2914 = vld [vmem:[%s2909 + $0x10] sm:$0xf]
  %v2915 = vld [vmem:[%s2909 + $0x14] sm:$0xf]
  %v2916 = vld [vmem:[%s2909 + $0x18] sm:$0xf]
  %v2917 = vld [vmem:[%s2909 + $0x1c] sm:$0xf]
  %v2926 = vunpack.c.l.b16 %v2910
  %v2927 = vunpack.c.l.b16 %v2911
  %v2928 = vunpack.c.l.b16 %v2912
  %v2929 = vunpack.c.l.b16 %v2913
  %v2930 = vunpack.c.l.b16 %v2914
  %v2931 = vunpack.c.l.b16 %v2915
  %v2932 = vunpack.c.l.b16 %v2916
  %v2933 = vunpack.c.l.b16 %v2917
  %v2934 = vpack.c.b16 %v2927, %v2926
  %v2935 = vpack.c.b16 %v2929, %v2928
  %v2936 = vpack.c.b16 %v2931, %v2930
  %v2937 = vpack.c.b16 %v2933, %v2932
  %v2943 = vsel %vm2086, %v2908, 0
  %2945 = vmatpush.bf16.msra.mxu0 0
  %2946 = vmatpush.bf16.msra.mxu0 0
  %2947 = vmatpush.bf16.msra.mxu0 0
  %2948 = vmatpush.bf16.msra.mxu0 0
  %2949 = vmatpush.bf16.msra.mxu0 %v2937
  %2950 = vmatpush.bf16.msra.mxu0 %v2936
  %2951 = vmatpush.bf16.msra.mxu0 %v2935
  %2952 = vmatpush.bf16.msra.mxu0 %v2934
  %2953 = vmatmul.bf16.gmra.mxu0 %v2943
  %v2954 = vpop.f32.mrf.mxu0
  %v2955 = vadd.f32 0.0, %v2954
  %v2956 = vpop.f32.mrf.mxu0
  %2957 = vdwg.mxu0
  %v2958 = vadd.f32 %v2907, %v2955
  %v2959 = vld [vmem:[#allocation2 + $0x48] sm:$0xf]
  %s2960 = scalar_lea.vmem %s3, 576
  %v2961 = vld [vmem:[%s2960] sm:$0xf]
  %v2962 = vld [vmem:[%s2960 + $0x4] sm:$0xf]
  %v2963 = vld [vmem:[%s2960 + $0x8] sm:$0xf]
  %v2964 = vld [vmem:[%s2960 + $0xc] sm:$0xf]
  %v2965 = vld [vmem:[%s2960 + $0x10] sm:$0xf]
  %v2966 = vld [vmem:[%s2960 + $0x14] sm:$0xf]
  %v2967 = vld [vmem:[%s2960 + $0x18] sm:$0xf]
  %v2968 = vld [vmem:[%s2960 + $0x1c] sm:$0xf]
  %v2977 = vunpack.c.l.b16 %v2961
  %v2978 = vunpack.c.l.b16 %v2962
  %v2979 = vunpack.c.l.b16 %v2963
  %v2980 = vunpack.c.l.b16 %v2964
  %v2981 = vunpack.c.l.b16 %v2965
  %v2982 = vunpack.c.l.b16 %v2966
  %v2983 = vunpack.c.l.b16 %v2967
  %v2984 = vunpack.c.l.b16 %v2968
  %v2985 = vpack.c.b16 %v2978, %v2977
  %v2986 = vpack.c.b16 %v2980, %v2979
  %v2987 = vpack.c.b16 %v2982, %v2981
  %v2988 = vpack.c.b16 %v2984, %v2983
  %v2994 = vsel %vm2086, %v2959, 0
  %2996 = vmatpush.bf16.msra.mxu0 0
  %2997 = vmatpush.bf16.msra.mxu0 0
  %2998 = vmatpush.bf16.msra.mxu0 0
  %2999 = vmatpush.bf16.msra.mxu0 0
  %3000 = vmatpush.bf16.msra.mxu0 %v2988
  %3001 = vmatpush.bf16.msra.mxu0 %v2987
  %3002 = vmatpush.bf16.msra.mxu0 %v2986
  %3003 = vmatpush.bf16.msra.mxu0 %v2985
  %3004 = vmatmul.bf16.gmra.mxu0 %v2994
  %v3005 = vpop.f32.mrf.mxu0
  %v3006 = vadd.f32 0.0, %v3005
  %v3007 = vpop.f32.mrf.mxu0
  %3008 = vdwg.mxu0
  %v3009 = vadd.f32 %v2958, %v3006
  %v3010 = vld [vmem:[#allocation2 + $0x4c] sm:$0xf]
  %s3011 = scalar_lea.vmem %s3, 608
  %v3012 = vld [vmem:[%s3011] sm:$0xf]
  %v3013 = vld [vmem:[%s3011 + $0x4] sm:$0xf]
  %v3014 = vld [vmem:[%s3011 + $0x8] sm:$0xf]
  %v3015 = vld [vmem:[%s3011 + $0xc] sm:$0xf]
  %v3016 = vld [vmem:[%s3011 + $0x10] sm:$0xf]
  %v3017 = vld [vmem:[%s3011 + $0x14] sm:$0xf]
  %v3018 = vld [vmem:[%s3011 + $0x18] sm:$0xf]
  %v3019 = vld [vmem:[%s3011 + $0x1c] sm:$0xf]
  %v3028 = vunpack.c.l.b16 %v3012
  %v3029 = vunpack.c.l.b16 %v3013
  %v3030 = vunpack.c.l.b16 %v3014
  %v3031 = vunpack.c.l.b16 %v3015
  %v3032 = vunpack.c.l.b16 %v3016
  %v3033 = vunpack.c.l.b16 %v3017
  %v3034 = vunpack.c.l.b16 %v3018
  %v3035 = vunpack.c.l.b16 %v3019
  %v3036 = vpack.c.b16 %v3029, %v3028
  %v3037 = vpack.c.b16 %v3031, %v3030
  %v3038 = vpack.c.b16 %v3033, %v3032
  %v3039 = vpack.c.b16 %v3035, %v3034
  %v3045 = vsel %vm2086, %v3010, 0
  %3047 = vmatpush.bf16.msra.mxu0 0
  %3048 = vmatpush.bf16.msra.mxu0 0
  %3049 = vmatpush.bf16.msra.mxu0 0
  %3050 = vmatpush.bf16.msra.mxu0 0
  %3051 = vmatpush.bf16.msra.mxu0 %v3039
  %3052 = vmatpush.bf16.msra.mxu0 %v3038
  %3053 = vmatpush.bf16.msra.mxu0 %v3037
  %3054 = vmatpush.bf16.msra.mxu0 %v3036
  %3055 = vmatmul.bf16.gmra.mxu0 %v3045
  %v3056 = vpop.f32.mrf.mxu0
  %v3057 = vadd.f32 0.0, %v3056
  %v3058 = vpop.f32.mrf.mxu0
  %3059 = vdwg.mxu0
  %v3060 = vadd.f32 %v3009, %v3057
  %v3061 = vld [vmem:[#allocation2 + $0x50] sm:$0xf]
  %s3062 = scalar_lea.vmem %s3, 640
  %v3063 = vld [vmem:[%s3062] sm:$0xf]
  %v3064 = vld [vmem:[%s3062 + $0x4] sm:$0xf]
  %v3065 = vld [vmem:[%s3062 + $0x8] sm:$0xf]
  %v3066 = vld [vmem:[%s3062 + $0xc] sm:$0xf]
  %v3067 = vld [vmem:[%s3062 + $0x10] sm:$0xf]
  %v3068 = vld [vmem:[%s3062 + $0x14] sm:$0xf]
  %v3069 = vld [vmem:[%s3062 + $0x18] sm:$0xf]
  %v3070 = vld [vmem:[%s3062 + $0x1c] sm:$0xf]
  %v3079 = vunpack.c.l.b16 %v3063
  %v3080 = vunpack.c.l.b16 %v3064
  %v3081 = vunpack.c.l.b16 %v3065
  %v3082 = vunpack.c.l.b16 %v3066
  %v3083 = vunpack.c.l.b16 %v3067
  %v3084 = vunpack.c.l.b16 %v3068
  %v3085 = vunpack.c.l.b16 %v3069
  %v3086 = vunpack.c.l.b16 %v3070
  %v3087 = vpack.c.b16 %v3080, %v3079
  %v3088 = vpack.c.b16 %v3082, %v3081
  %v3089 = vpack.c.b16 %v3084, %v3083
  %v3090 = vpack.c.b16 %v3086, %v3085
  %v3096 = vsel %vm2086, %v3061, 0
  %3098 = vmatpush.bf16.msra.mxu0 0
  %3099 = vmatpush.bf16.msra.mxu0 0
  %3100 = vmatpush.bf16.msra.mxu0 0
  %3101 = vmatpush.bf16.msra.mxu0 0
  %3102 = vmatpush.bf16.msra.mxu0 %v3090
  %3103 = vmatpush.bf16.msra.mxu0 %v3089
  %3104 = vmatpush.bf16.msra.mxu0 %v3088
  %3105 = vmatpush.bf16.msra.mxu0 %v3087
  %3106 = vmatmul.bf16.gmra.mxu0 %v3096
  %v3107 = vpop.f32.mrf.mxu0
  %v3108 = vadd.f32 0.0, %v3107
  %v3109 = vpop.f32.mrf.mxu0
  %3110 = vdwg.mxu0
  %v3111 = vadd.f32 %v3060, %v3108
  %v3112 = vld [vmem:[#allocation2 + $0x54] sm:$0xf]
  %s3113 = scalar_lea.vmem %s3, 672
  %v3114 = vld [vmem:[%s3113] sm:$0xf]
  %v3115 = vld [vmem:[%s3113 + $0x4] sm:$0xf]
  %v3116 = vld [vmem:[%s3113 + $0x8] sm:$0xf]
  %v3117 = vld [vmem:[%s3113 + $0xc] sm:$0xf]
  %v3118 = vld [vmem:[%s3113 + $0x10] sm:$0xf]
  %v3119 = vld [vmem:[%s3113 + $0x14] sm:$0xf]
  %v3120 = vld [vmem:[%s3113 + $0x18] sm:$0xf]
  %v3121 = vld [vmem:[%s3113 + $0x1c] sm:$0xf]
  %v3130 = vunpack.c.l.b16 %v3114
  %v3131 = vunpack.c.l.b16 %v3115
  %v3132 = vunpack.c.l.b16 %v3116
  %v3133 = vunpack.c.l.b16 %v3117
  %v3134 = vunpack.c.l.b16 %v3118
  %v3135 = vunpack.c.l.b16 %v3119
  %v3136 = vunpack.c.l.b16 %v3120
  %v3137 = vunpack.c.l.b16 %v3121
  %v3138 = vpack.c.b16 %v3131, %v3130
  %v3139 = vpack.c.b16 %v3133, %v3132
  %v3140 = vpack.c.b16 %v3135, %v3134
  %v3141 = vpack.c.b16 %v3137, %v3136
  %v3147 = vsel %vm2086, %v3112, 0
  %3149 = vmatpush.bf16.msra.mxu0 0
  %3150 = vmatpush.bf16.msra.mxu0 0
  %3151 = vmatpush.bf16.msra.mxu0 0
  %3152 = vmatpush.bf16.msra.mxu0 0
  %3153 = vmatpush.bf16.msra.mxu0 %v3141
  %3154 = vmatpush.bf16.msra.mxu0 %v3140
  %3155 = vmatpush.bf16.msra.mxu0 %v3139
  %3156 = vmatpush.bf16.msra.mxu0 %v3138
  %3157 = vmatmul.bf16.gmra.mxu0 %v3147
  %v3158 = vpop.f32.mrf.mxu0
  %v3159 = vadd.f32 0.0, %v3158
  %v3160 = vpop.f32.mrf.mxu0
  %3161 = vdwg.mxu0
  %v3162 = vadd.f32 %v3111, %v3159
  %v3163 = vld [vmem:[#allocation2 + $0x58] sm:$0xf]
  %s3164 = scalar_lea.vmem %s3, 704
  %v3165 = vld [vmem:[%s3164] sm:$0xf]
  %v3166 = vld [vmem:[%s3164 + $0x4] sm:$0xf]
  %v3167 = vld [vmem:[%s3164 + $0x8] sm:$0xf]
  %v3168 = vld [vmem:[%s3164 + $0xc] sm:$0xf]
  %v3169 = vld [vmem:[%s3164 + $0x10] sm:$0xf]
  %v3170 = vld [vmem:[%s3164 + $0x14] sm:$0xf]
  %v3171 = vld [vmem:[%s3164 + $0x18] sm:$0xf]
  %v3172 = vld [vmem:[%s3164 + $0x1c] sm:$0xf]
  %v3181 = vunpack.c.l.b16 %v3165
  %v3182 = vunpack.c.l.b16 %v3166
  %v3183 = vunpack.c.l.b16 %v3167
  %v3184 = vunpack.c.l.b16 %v3168
  %v3185 = vunpack.c.l.b16 %v3169
  %v3186 = vunpack.c.l.b16 %v3170
  %v3187 = vunpack.c.l.b16 %v3171
  %v3188 = vunpack.c.l.b16 %v3172
  %v3189 = vpack.c.b16 %v3182, %v3181
  %v3190 = vpack.c.b16 %v3184, %v3183
  %v3191 = vpack.c.b16 %v3186, %v3185
  %v3192 = vpack.c.b16 %v3188, %v3187
  %v3198 = vsel %vm2086, %v3163, 0
  %3200 = vmatpush.bf16.msra.mxu0 0
  %3201 = vmatpush.bf16.msra.mxu0 0
  %3202 = vmatpush.bf16.msra.mxu0 0
  %3203 = vmatpush.bf16.msra.mxu0 0
  %3204 = vmatpush.bf16.msra.mxu0 %v3192
  %3205 = vmatpush.bf16.msra.mxu0 %v3191
  %3206 = vmatpush.bf16.msra.mxu0 %v3190
  %3207 = vmatpush.bf16.msra.mxu0 %v3189
  %3208 = vmatmul.bf16.gmra.mxu0 %v3198
  %v3209 = vpop.f32.mrf.mxu0
  %v3210 = vadd.f32 0.0, %v3209
  %v3211 = vpop.f32.mrf.mxu0
  %3212 = vdwg.mxu0
  %v3213 = vadd.f32 %v3162, %v3210
  %v3214 = vld [vmem:[#allocation2 + $0x5c] sm:$0xf]
  %s3215 = scalar_lea.vmem %s3, 736
  %v3216 = vld [vmem:[%s3215] sm:$0xf]
  %v3217 = vld [vmem:[%s3215 + $0x4] sm:$0xf]
  %v3218 = vld [vmem:[%s3215 + $0x8] sm:$0xf]
  %v3219 = vld [vmem:[%s3215 + $0xc] sm:$0xf]
  %v3220 = vld [vmem:[%s3215 + $0x10] sm:$0xf]
  %v3221 = vld [vmem:[%s3215 + $0x14] sm:$0xf]
  %v3222 = vld [vmem:[%s3215 + $0x18] sm:$0xf]
  %v3223 = vld [vmem:[%s3215 + $0x1c] sm:$0xf]
  %v3232 = vunpack.c.l.b16 %v3216
  %v3233 = vunpack.c.l.b16 %v3217
  %v3234 = vunpack.c.l.b16 %v3218
  %v3235 = vunpack.c.l.b16 %v3219
  %v3236 = vunpack.c.l.b16 %v3220
  %v3237 = vunpack.c.l.b16 %v3221
  %v3238 = vunpack.c.l.b16 %v3222
  %v3239 = vunpack.c.l.b16 %v3223
  %v3240 = vpack.c.b16 %v3233, %v3232
  %v3241 = vpack.c.b16 %v3235, %v3234
  %v3242 = vpack.c.b16 %v3237, %v3236
  %v3243 = vpack.c.b16 %v3239, %v3238
  %v3249 = vsel %vm2086, %v3214, 0
  %3251 = vmatpush.bf16.msra.mxu0 0
  %3252 = vmatpush.bf16.msra.mxu0 0
  %3253 = vmatpush.bf16.msra.mxu0 0
  %3254 = vmatpush.bf16.msra.mxu0 0
  %3255 = vmatpush.bf16.msra.mxu0 %v3243
  %3256 = vmatpush.bf16.msra.mxu0 %v3242
  %3257 = vmatpush.bf16.msra.mxu0 %v3241
  %3258 = vmatpush.bf16.msra.mxu0 %v3240
  %3259 = vmatmul.bf16.gmra.mxu0 %v3249
  %v3260 = vpop.f32.mrf.mxu0
  %v3261 = vadd.f32 0.0, %v3260
  %v3262 = vpop.f32.mrf.mxu0
  %3263 = vdwg.mxu0
  %v3264 = vadd.f32 %v3213, %v3261
  %v3265 = vld [vmem:[#allocation2 + $0x60] sm:$0xf]
  %s3266 = scalar_lea.vmem %s3, 768
  %v3267 = vld [vmem:[%s3266] sm:$0xf]
  %v3268 = vld [vmem:[%s3266 + $0x4] sm:$0xf]
  %v3269 = vld [vmem:[%s3266 + $0x8] sm:$0xf]
  %v3270 = vld [vmem:[%s3266 + $0xc] sm:$0xf]
  %v3271 = vld [vmem:[%s3266 + $0x10] sm:$0xf]
  %v3272 = vld [vmem:[%s3266 + $0x14] sm:$0xf]
  %v3273 = vld [vmem:[%s3266 + $0x18] sm:$0xf]
  %v3274 = vld [vmem:[%s3266 + $0x1c] sm:$0xf]
  %v3283 = vunpack.c.l.b16 %v3267
  %v3284 = vunpack.c.l.b16 %v3268
  %v3285 = vunpack.c.l.b16 %v3269
  %v3286 = vunpack.c.l.b16 %v3270
  %v3287 = vunpack.c.l.b16 %v3271
  %v3288 = vunpack.c.l.b16 %v3272
  %v3289 = vunpack.c.l.b16 %v3273
  %v3290 = vunpack.c.l.b16 %v3274
  %v3291 = vpack.c.b16 %v3284, %v3283
  %v3292 = vpack.c.b16 %v3286, %v3285
  %v3293 = vpack.c.b16 %v3288, %v3287
  %v3294 = vpack.c.b16 %v3290, %v3289
  %v3300 = vsel %vm2086, %v3265, 0
  %3302 = vmatpush.bf16.msra.mxu0 0
  %3303 = vmatpush.bf16.msra.mxu0 0
  %3304 = vmatpush.bf16.msra.mxu0 0
  %3305 = vmatpush.bf16.msra.mxu0 0
  %3306 = vmatpush.bf16.msra.mxu0 %v3294
  %3307 = vmatpush.bf16.msra.mxu0 %v3293
  %3308 = vmatpush.bf16.msra.mxu0 %v3292
  %3309 = vmatpush.bf16.msra.mxu0 %v3291
  %3310 = vmatmul.bf16.gmra.mxu0 %v3300
  %v3311 = vpop.f32.mrf.mxu0
  %v3312 = vadd.f32 0.0, %v3311
  %v3313 = vpop.f32.mrf.mxu0
  %3314 = vdwg.mxu0
  %v3315 = vadd.f32 %v3264, %v3312
  %v3316 = vld [vmem:[%s4] sm:$0x1]
  %v3318 = vperm.slane %v3316, 0
  %v3320 = vadd.f32 %v3315, %v3318
  %3321 = vst [vmem:[%s5] sm:$0xff] %v3320
  // Predicated region
  $region22: #{triplet_forward.3} parent=0 // pred_check
    _
  $region23: #{triplet_forward.3} parent=0 // pred_check_branch
    %3323 = sbr.rel (0) target = $region25
  $region24: #{triplet_forward.3} parent=0 // pred_region
    _
  $region25: #{triplet_forward.3} parent=0 // pred_fallthru
    _
  // Predicated region
  $region26: #{triplet_forward.3} parent=0 // pred_check
    _
  $region27: #{triplet_forward.3} parent=0 // pred_check_branch
    %3325 = sbr.rel (0) target = $region29
  $region28: #{triplet_forward.3} parent=0 // pred_region
    _
  $region29: #{triplet_forward.3} parent=0 // pred_fallthru
    _

</llo_original>
